<compile_context>
chip_gen: v7x
topology: tpu7x:2x2x1
jax: 0.10.0
libtpu: 0.0.40
codegen_flags: <defaults>
</compile_context>

<pallas_src>
import jax
import jax.numpy as jnp
from jax.experimental import pallas as pl
from jax.experimental.pallas import tpu as pltpu

# ----------------------------- model sizes ---------------------------------
V = 10        # OutputSize (vocab)
E = 16        # embeddingSize
H = 32        # hiddenSize
L = 2         # n_layers  (cellType='LSTM', dropoutProb=0.0 -> identity)
VPAD = 128    # lane-dense padded vocab width for the output head
NEG = -1e30   # pad bias so padded logits contribute exp(.) == 0 to the softmax


def decoder_kernel(tok_ref,                        # SMEM (T,) token ids (scalar prefetch)
                   emb_ref,                        # (V, 1, E) full embedding table in VMEM
                   wx0_ref, wh0_ref, b0_ref,       # layer 0: (E, 4H), (H, 4H), (1, 4H)
                   wx1_ref, wh1_ref, b1_ref,       # layer 1: (H, 4H), (H, 4H), (1, 4H)
                   wout_ref, bout_ref,             # (H, VPAD), (1, VPAD)
                   h0_ref, c0_ref,                 # (L, 1, H) initial state
                   logp_ref, state_ref):           # outputs: (T, VPAD), (1, 4H)
    T = tok_ref.shape[0]

    wx0 = wx0_ref[...]
    wh0 = wh0_ref[...]
    b0 = b0_ref[...]
    wx1 = wx1_ref[...]
    wh1 = wh1_ref[...]
    b1 = b1_ref[...]
    wout = wout_ref[...]
    bout = bout_ref[...]

    def lstm_cell(x, h_prev, c_prev, wx, wh, b):
        # two M=1 MXU dots (no in-kernel lane concat of [x, h_prev])
        gates = (jnp.dot(x, wx, preferred_element_type=jnp.float32)
                 + jnp.dot(h_prev, wh, preferred_element_type=jnp.float32)
                 + b)                                             # (1, 4H)
        sig = jax.nn.sigmoid(gates)                               # full-vreg (EUP)
        i = sig[:, 0 * H:1 * H]
        f = sig[:, 1 * H:2 * H]
        o = sig[:, 3 * H:4 * H]
        g = jnp.tanh(gates[:, 2 * H:3 * H])                       # tanh only on g-gate
        c_new = f * c_prev + i * g
        h_new = o * jnp.tanh(c_new)
        return h_new, c_new

    # initial recurrent state
    h_prev0 = h0_ref[0]
    h_prev1 = h0_ref[1]
    c_prev0 = c0_ref[0]
    c_prev1 = c0_ref[1]

    rows = []
    # T is static & small: fully-unrolled loop (equivalent to fori_loop(unroll=True))
    for t in range(T):
        tok = tok_ref[t]                                          # SMEM scalar read
        # embedding row gather (dynamic leading-dim index) + .view(1,1,-1) + relu
        x = jnp.maximum(emb_ref[tok], 0.0)                        # (1, E)

        # layer 0
        h_prev0, c_prev0 = lstm_cell(x, h_prev0, c_prev0, wx0, wh0, b0)
        # layer 1 (inter-layer dropout p=0 -> identity)
        h_prev1, c_prev1 = lstm_cell(h_prev0, h_prev1, c_prev1, wx1, wh1, b1)

        # out Linear (lane-padded to 128) + LogSoftmax(dim=1)
        logits = (jnp.dot(h_prev1, wout, preferred_element_type=jnp.float32)
                  + bout)                                         # (1, VPAD)
        m = jnp.max(logits, axis=1, keepdims=True)
        lse = jnp.log(jnp.sum(jnp.exp(logits - m), axis=1, keepdims=True)) + m
        rows.append(logits - lse)

    # single lane-dense (T, 128) writeback (T=8 -> one full f32 vreg, unmasked)
    logp_ref[...] = jnp.concatenate(rows, axis=0)

    # packed final state written exactly once: [h0 | h1 | c0 | c1] -> (1, 4H)=(1,128)
    state_ref[...] = jnp.concatenate([h_prev0, h_prev1, c_prev0, c_prev1], axis=1)


# --------------------------- parameter preparation ---------------------------
def prepare_params(emb, params):
    """Transpose / fuse / pad torch-layout params once, outside the hot loop."""
    (w_ih0, w_hh0, b_ih0, b_hh0,
     w_ih1, w_hh1, b_ih1, b_hh1,
     w_out, b_out) = params

    emb3 = emb.reshape(V, 1, E)                               # row-gatherable layout
    wx0 = w_ih0.T                                             # (E, 4H)
    wh0 = w_hh0.T                                             # (H, 4H)
    b0 = b_ih0 + b_hh0                                        # (1, 4H)
    wx1 = w_ih1.T                                             # (H, 4H)
    wh1 = w_hh1.T                                             # (H, 4H)
    b1 = b_ih1 + b_hh1                                        # (1, 4H)
    wout = jnp.zeros((H, VPAD), jnp.float32).at[:, :V].set(w_out.T)
    bout = jnp.full((1, VPAD), NEG, jnp.float32).at[:, :V].set(b_out)
    return emb3, wx0, wh0, b0, wx1, wh1, b1, wout, bout


# --------------------------------- wrapper -----------------------------------
def decoder_forward(tokens, fused, h0, c0):
    emb3, wx0, wh0, b0, wx1, wh1, b1, wout, bout = fused
    T = tokens.shape[0]
    # NOTE: torch would raise on out-of-range ids; we clip instead (documented diff)
    tokens = jnp.clip(tokens.astype(jnp.int32), 0, V - 1)

    def const(shp):
        return pl.BlockSpec(shp, lambda i, tok, _n=len(shp): (0,) * _n)

    grid_spec = pltpu.PrefetchScalarGridSpec(
        num_scalar_prefetch=1,
        grid=(1,),                                  # whole decode in one invocation
        in_specs=[
            const(emb3.shape),                      # full embedding table, DMA'd once
            const(wx0.shape), const(wh0.shape), const(b0.shape),
            const(wx1.shape), const(wh1.shape), const(b1.shape),
            const(wout.shape), const(bout.shape),
            const(h0.shape), const(c0.shape),
        ],
        out_specs=[
            pl.BlockSpec((T, VPAD), lambda i, tok: (0, 0)),   # lane-dense log-prob slab
            pl.BlockSpec((1, 4 * H), lambda i, tok: (0, 0)),  # packed final h/c
        ],
        scratch_shapes=[],
    )

    logp_pad, state = pl.pallas_call(
        decoder_kernel,
        grid_spec=grid_spec,
        out_shape=(
            jax.ShapeDtypeStruct((T, VPAD), jnp.float32),
            jax.ShapeDtypeStruct((1, 4 * H), jnp.float32),
        ),
        compiler_params=pltpu.CompilerParams(
            dimension_semantics=("arbitrary",)),
    )(tokens, emb3, wx0, wh0, b0, wx1, wh1, b1, wout, bout, h0, c0)

    logp = logp_pad[:, :V]
    h_new = state[:, :L * H].reshape(L, 1, H)
    c_new = state[:, L * H:].reshape(L, 1, H)
    return logp, h_new, c_new
    # TODO(synk): batching independent sequences along M (and 'parallel' sharding
    # across v7x's 2 TensorCores) would raise MXU utilization, but the reference
    # module decodes a single sequence, so semantics are kept at batch=1.


# --------------------------- pure-JAX reference -------------------------------
def ref_forward(tokens, emb, params, h0, c0):
    (w_ih0, w_hh0, b_ih0, b_hh0,
     w_ih1, w_hh1, b_ih1, b_hh1,
     w_out, b_out) = params

    def cell(x, h, c, w_ih, w_hh, b_ih, b_hh):
        g = x @ w_ih.T + b_ih + h @ w_hh.T + b_hh
        i = jax.nn.sigmoid(g[:, 0 * H:1 * H])
        f = jax.nn.sigmoid(g[:, 1 * H:2 * H])
        gg = jnp.tanh(g[:, 2 * H:3 * H])
        o = jax.nn.sigmoid(g[:, 3 * H:4 * H])
        c_new = f * c + i * gg
        return o * jnp.tanh(c_new), c_new

    h, c = h0, c0
    logps = []
    for t in range(tokens.shape[0]):
        x = jnp.maximum(emb[tokens[t]][None, :], 0.0)
        h0n, c0n = cell(x, h[0], c[0], w_ih0, w_hh0, b_ih0, b_hh0)
        h1n, c1n = cell(h0n, h[1], c[1], w_ih1, w_hh1, b_ih1, b_hh1)
        logits = h1n @ w_out.T + b_out
        logps.append(logits - jax.scipy.special.logsumexp(logits, axis=1, keepdims=True))
        h = jnp.stack([h0n, h1n])
        c = jnp.stack([c0n, c1n])
    return jnp.concatenate(logps, axis=0), h, c


# --------------------------------- main ---------------------------------------
if __name__ == "__main__":
    key = jax.random.PRNGKey(0)
    ks = jax.random.split(key, 16)
    scale = 1.0 / jnp.sqrt(H)

    emb = jax.random.normal(ks[0], (V, E), jnp.float32) * 0.1

    def u(k, shape):
        return jax.random.uniform(k, shape, jnp.float32, -scale, scale)

    params = (
        u(ks[1], (4 * H, E)),  u(ks[2], (4 * H, H)),    # layer 0 W_ih, W_hh
        u(ks[3], (1, 4 * H)),  u(ks[4], (1, 4 * H)),    # layer 0 b_ih, b_hh
        u(ks[5], (4 * H, H)),  u(ks[6], (4 * H, H)),    # layer 1 W_ih, W_hh
        u(ks[7], (1, 4 * H)),  u(ks[8], (1, 4 * H)),    # layer 1 b_ih, b_hh
        u(ks[9], (V, H)),      u(ks[10], (1, V)),       # out Linear W, b
    )

    T = 8
    tokens = jax.random.randint(ks[11], (T,), 0, V, dtype=jnp.int32)
    h0 = jax.random.normal(ks[12], (L, 1, H), jnp.float32) * 0.1
    c0 = jax.random.normal(ks[13], (L, 1, H), jnp.float32) * 0.1

    fused = prepare_params(emb, params)
    logp, h_new, c_new = decoder_forward(tokens, fused, h0, c0)
    jax.block_until_ready((logp, h_new, c_new))

    logp_r, h_r, c_r = ref_forward(tokens, emb, params, h0, c0)
    assert jnp.allclose(logp, logp_r, atol=3e-5), "log-softmax mismatch"
    assert jnp.allclose(h_new, h_r, atol=3e-5), "hidden mismatch"
    assert jnp.allclose(c_new, c_r, atol=3e-5), "cell-state mismatch"

    print("KERNEL_OK")
</pallas_src>

<mosaic_0001>
module attributes {stable_mosaic.version = 11 : i64} {
  func.func @decoder_kernel(%arg0: i32, %arg1: memref<8xi32, #tpu.memory_space<smem>>, %arg2: memref<10x1x16xf32, #tpu.memory_space<vmem>>, %arg3: memref<16x128xf32, #tpu.memory_space<vmem>>, %arg4: memref<32x128xf32, #tpu.memory_space<vmem>>, %arg5: memref<1x128xf32, #tpu.memory_space<vmem>>, %arg6: memref<32x128xf32, #tpu.memory_space<vmem>>, %arg7: memref<32x128xf32, #tpu.memory_space<vmem>>, %arg8: memref<1x128xf32, #tpu.memory_space<vmem>>, %arg9: memref<32x128xf32, #tpu.memory_space<vmem>>, %arg10: memref<1x128xf32, #tpu.memory_space<vmem>>, %arg11: memref<2x1x32xf32, #tpu.memory_space<vmem>>, %arg12: memref<2x1x32xf32, #tpu.memory_space<vmem>>, %arg13: memref<8x128xf32, #tpu.memory_space<vmem>>, %arg14: memref<1x128xf32, #tpu.memory_space<vmem>>) attributes {dimension_semantics = [#tpu.dimension_semantics<arbitrary>], iteration_bounds = array<i64: 1>, scalar_prefetch = 1 : i64, scratch_operands = 0 : i64, tpu.core_type = #tpu.core_type<tc>, window_params = [{pipeline_mode = #tpu.pipeline_mode<synchronous>, transform_indices = @transform_0, window_bounds = array<i64: 10, 1, 16>}, {pipeline_mode = #tpu.pipeline_mode<synchronous>, transform_indices = @transform_1, window_bounds = array<i64: 16, 128>}, {pipeline_mode = #tpu.pipeline_mode<synchronous>, transform_indices = @transform_2, window_bounds = array<i64: 32, 128>}, {pipeline_mode = #tpu.pipeline_mode<synchronous>, transform_indices = @transform_3, window_bounds = array<i64: 1, 128>}, {pipeline_mode = #tpu.pipeline_mode<synchronous>, transform_indices = @transform_4, window_bounds = array<i64: 32, 128>}, {pipeline_mode = #tpu.pipeline_mode<synchronous>, transform_indices = @transform_5, window_bounds = array<i64: 32, 128>}, {pipeline_mode = #tpu.pipeline_mode<synchronous>, transform_indices = @transform_6, window_bounds = array<i64: 1, 128>}, {pipeline_mode = #tpu.pipeline_mode<synchronous>, transform_indices = @transform_7, window_bounds = array<i64: 32, 128>}, {pipeline_mode = #tpu.pipeline_mode<synchronous>, transform_indices = @transform_8, window_bounds = array<i64: 1, 128>}, {pipeline_mode = #tpu.pipeline_mode<synchronous>, transform_indices = @transform_9, window_bounds = array<i64: 2, 1, 32>}, {pipeline_mode = #tpu.pipeline_mode<synchronous>, transform_indices = @transform_10, window_bounds = array<i64: 2, 1, 32>}, {pipeline_mode = #tpu.pipeline_mode<synchronous>, transform_indices = @transform_11, window_bounds = array<i64: 8, 128>}, {pipeline_mode = #tpu.pipeline_mode<synchronous>, transform_indices = @transform_12, window_bounds = array<i64: 1, 128>}]} {
    %c0 = arith.constant 0 : index
    %c0_0 = arith.constant 0 : index
    %0 = vector.load %arg3[%c0, %c0_0] : memref<16x128xf32, #tpu.memory_space<vmem>>, vector<16x128xf32>
    %c0_1 = arith.constant 0 : index
    %c0_2 = arith.constant 0 : index
    %1 = vector.load %arg4[%c0_1, %c0_2] : memref<32x128xf32, #tpu.memory_space<vmem>>, vector<32x128xf32>
    %c0_3 = arith.constant 0 : index
    %c0_4 = arith.constant 0 : index
    %2 = vector.load %arg5[%c0_3, %c0_4] : memref<1x128xf32, #tpu.memory_space<vmem>>, vector<1x128xf32>
    %c0_5 = arith.constant 0 : index
    %c0_6 = arith.constant 0 : index
    %3 = vector.load %arg6[%c0_5, %c0_6] : memref<32x128xf32, #tpu.memory_space<vmem>>, vector<32x128xf32>
    %c0_7 = arith.constant 0 : index
    %c0_8 = arith.constant 0 : index
    %4 = vector.load %arg7[%c0_7, %c0_8] : memref<32x128xf32, #tpu.memory_space<vmem>>, vector<32x128xf32>
    %c0_9 = arith.constant 0 : index
    %c0_10 = arith.constant 0 : index
    %5 = vector.load %arg8[%c0_9, %c0_10] : memref<1x128xf32, #tpu.memory_space<vmem>>, vector<1x128xf32>
    %c0_11 = arith.constant 0 : index
    %c0_12 = arith.constant 0 : index
    %6 = vector.load %arg9[%c0_11, %c0_12] : memref<32x128xf32, #tpu.memory_space<vmem>>, vector<32x128xf32>
    %c0_13 = arith.constant 0 : index
    %c0_14 = arith.constant 0 : index
    %7 = vector.load %arg10[%c0_13, %c0_14] : memref<1x128xf32, #tpu.memory_space<vmem>>, vector<1x128xf32>
    %c0_15 = arith.constant 0 : index
    %c0_16 = arith.constant 0 : index
    %c0_17 = arith.constant 0 : index
    %8 = vector.load %arg11[%c0_15, %c0_16, %c0_17] : memref<2x1x32xf32, #tpu.memory_space<vmem>>, vector<1x1x32xf32>
    %9 = vector.shape_cast %8 : vector<1x1x32xf32> to vector<1x32xf32>
    %c1 = arith.constant 1 : index
    %c0_18 = arith.constant 0 : index
    %c0_19 = arith.constant 0 : index
    %10 = vector.load %arg11[%c1, %c0_18, %c0_19] : memref<2x1x32xf32, #tpu.memory_space<vmem>>, vector<1x1x32xf32>
    %11 = vector.shape_cast %10 : vector<1x1x32xf32> to vector<1x32xf32>
    %c0_20 = arith.constant 0 : index
    %c0_21 = arith.constant 0 : index
    %c0_22 = arith.constant 0 : index
    %12 = vector.load %arg12[%c0_20, %c0_21, %c0_22] : memref<2x1x32xf32, #tpu.memory_space<vmem>>, vector<1x1x32xf32>
    %13 = vector.shape_cast %12 : vector<1x1x32xf32> to vector<1x32xf32>
    %c1_23 = arith.constant 1 : index
    %c0_24 = arith.constant 0 : index
    %c0_25 = arith.constant 0 : index
    %14 = vector.load %arg12[%c1_23, %c0_24, %c0_25] : memref<2x1x32xf32, #tpu.memory_space<vmem>>, vector<1x1x32xf32>
    %15 = vector.shape_cast %14 : vector<1x1x32xf32> to vector<1x32xf32>
    %c0_26 = arith.constant 0 : index
    %16 = memref.load %arg1[%c0_26] : memref<8xi32, #tpu.memory_space<smem>>
    %17 = arith.index_cast %16 : i32 to index
    %c0_27 = arith.constant 0 : index
    %c0_28 = arith.constant 0 : index
    %18 = vector.load %arg2[%17, %c0_27, %c0_28] : memref<10x1x16xf32, #tpu.memory_space<vmem>>, vector<1x1x16xf32>
    %19 = vector.shape_cast %18 : vector<1x1x16xf32> to vector<1x16xf32>
    %cst = arith.constant 0.000000e+00 : f32
    %20 = vector.broadcast %cst : f32 to vector<1x16xf32>
    %21 = arith.maximumf %19, %20 : vector<1x16xf32>
    %cst_29 = arith.constant dense<0.000000e+00> : vector<1x128xf32>
    %22 = tpu.matmul %21, %0, %cst_29 {dimension_numbers = #tpu.dot_dimension_numbers<[1], [0], [0], [1], [0, 0, 1, 1], [], []>} : vector<1x16xf32>, vector<16x128xf32>, vector<1x128xf32> -> vector<1x128xf32>
    %cst_30 = arith.constant dense<0.000000e+00> : vector<1x128xf32>
    %23 = tpu.matmul %9, %1, %cst_30 {dimension_numbers = #tpu.dot_dimension_numbers<[1], [0], [0], [1], [0, 0, 1, 1], [], []>} : vector<1x32xf32>, vector<32x128xf32>, vector<1x128xf32> -> vector<1x128xf32>
    %24 = arith.addf %22, %23 : vector<1x128xf32>
    %25 = arith.addf %24, %2 : vector<1x128xf32>
    %26 = arith.negf %25 : vector<1x128xf32>
    %27 = math.exp %26 : vector<1x128xf32>
    %cst_31 = arith.constant 1.000000e+00 : f32
    %28 = vector.broadcast %cst_31 : f32 to vector<1x128xf32>
    %29 = arith.addf %28, %27 : vector<1x128xf32>
    %30 = arith.divf %28, %29 : vector<1x128xf32>
    %31 = vector.extract_strided_slice %30 {offsets = [0, 0], sizes = [1, 32], strides = [1, 1]} : vector<1x128xf32> to vector<1x32xf32>
    %32 = vector.extract_strided_slice %30 {offsets = [0, 32], sizes = [1, 32], strides = [1, 1]} : vector<1x128xf32> to vector<1x32xf32>
    %33 = vector.extract_strided_slice %30 {offsets = [0, 96], sizes = [1, 32], strides = [1, 1]} : vector<1x128xf32> to vector<1x32xf32>
    %34 = vector.extract_strided_slice %25 {offsets = [0, 64], sizes = [1, 32], strides = [1, 1]} : vector<1x128xf32> to vector<1x32xf32>
    %35 = math.tanh %34 : vector<1x32xf32>
    %36 = arith.mulf %32, %13 : vector<1x32xf32>
    %37 = arith.mulf %31, %35 : vector<1x32xf32>
    %38 = arith.addf %36, %37 : vector<1x32xf32>
    %39 = math.tanh %38 : vector<1x32xf32>
    %40 = arith.mulf %33, %39 : vector<1x32xf32>
    %cst_32 = arith.constant dense<0.000000e+00> : vector<1x128xf32>
    %41 = tpu.matmul %40, %3, %cst_32 {dimension_numbers = #tpu.dot_dimension_numbers<[1], [0], [0], [1], [0, 0, 1, 1], [], []>} : vector<1x32xf32>, vector<32x128xf32>, vector<1x128xf32> -> vector<1x128xf32>
    %cst_33 = arith.constant dense<0.000000e+00> : vector<1x128xf32>
    %42 = tpu.matmul %11, %4, %cst_33 {dimension_numbers = #tpu.dot_dimension_numbers<[1], [0], [0], [1], [0, 0, 1, 1], [], []>} : vector<1x32xf32>, vector<32x128xf32>, vector<1x128xf32> -> vector<1x128xf32>
    %43 = arith.addf %41, %42 : vector<1x128xf32>
    %44 = arith.addf %43, %5 : vector<1x128xf32>
    %45 = arith.negf %44 : vector<1x128xf32>
    %46 = math.exp %45 : vector<1x128xf32>
    %cst_34 = arith.constant 1.000000e+00 : f32
    %47 = vector.broadcast %cst_34 : f32 to vector<1x128xf32>
    %48 = arith.addf %47, %46 : vector<1x128xf32>
    %49 = arith.divf %47, %48 : vector<1x128xf32>
    %50 = vector.extract_strided_slice %49 {offsets = [0, 0], sizes = [1, 32], strides = [1, 1]} : vector<1x128xf32> to vector<1x32xf32>
    %51 = vector.extract_strided_slice %49 {offsets = [0, 32], sizes = [1, 32], strides = [1, 1]} : vector<1x128xf32> to vector<1x32xf32>
    %52 = vector.extract_strided_slice %49 {offsets = [0, 96], sizes = [1, 32], strides = [1, 1]} : vector<1x128xf32> to vector<1x32xf32>
    %53 = vector.extract_strided_slice %44 {offsets = [0, 64], sizes = [1, 32], strides = [1, 1]} : vector<1x128xf32> to vector<1x32xf32>
    %54 = math.tanh %53 : vector<1x32xf32>
    %55 = arith.mulf %51, %15 : vector<1x32xf32>
    %56 = arith.mulf %50, %54 : vector<1x32xf32>
    %57 = arith.addf %55, %56 : vector<1x32xf32>
    %58 = math.tanh %57 : vector<1x32xf32>
    %59 = arith.mulf %52, %58 : vector<1x32xf32>
    %cst_35 = arith.constant dense<0.000000e+00> : vector<1x128xf32>
    %60 = tpu.matmul %59, %6, %cst_35 {dimension_numbers = #tpu.dot_dimension_numbers<[1], [0], [0], [1], [0, 0, 1, 1], [], []>} : vector<1x32xf32>, vector<32x128xf32>, vector<1x128xf32> -> vector<1x128xf32>
    %61 = arith.addf %60, %7 : vector<1x128xf32>
    %cst_36 = arith.constant dense<0xFF800000> : vector<1xf32>
    %62 = vector.multi_reduction <maximumf>, %61, %cst_36 [1] : vector<1x128xf32> to vector<1xf32>
    %63 = vector.shape_cast %62 : vector<1xf32> to vector<1x1xf32>
    %64 = vector.broadcast %63 : vector<1x1xf32> to vector<1x128xf32>
    %65 = arith.subf %61, %64 : vector<1x128xf32>
    %66 = math.exp %65 : vector<1x128xf32>
    %cst_37 = arith.constant dense<0.000000e+00> : vector<1xf32>
    %67 = vector.multi_reduction <add>, %66, %cst_37 [1] : vector<1x128xf32> to vector<1xf32>
    %68 = vector.shape_cast %67 : vector<1xf32> to vector<1x1xf32>
    %69 = math.log %68 : vector<1x1xf32>
    %70 = arith.addf %69, %63 : vector<1x1xf32>
    %71 = vector.broadcast %70 : vector<1x1xf32> to vector<1x128xf32>
    %72 = arith.subf %61, %71 : vector<1x128xf32>
    %c1_38 = arith.constant 1 : index
    %73 = memref.load %arg1[%c1_38] : memref<8xi32, #tpu.memory_space<smem>>
    %74 = arith.index_cast %73 : i32 to index
    %c0_39 = arith.constant 0 : index
    %c0_40 = arith.constant 0 : index
    %75 = vector.load %arg2[%74, %c0_39, %c0_40] : memref<10x1x16xf32, #tpu.memory_space<vmem>>, vector<1x1x16xf32>
    %76 = vector.shape_cast %75 : vector<1x1x16xf32> to vector<1x16xf32>
    %cst_41 = arith.constant 0.000000e+00 : f32
    %77 = vector.broadcast %cst_41 : f32 to vector<1x16xf32>
    %78 = arith.maximumf %76, %77 : vector<1x16xf32>
    %cst_42 = arith.constant dense<0.000000e+00> : vector<1x128xf32>
    %79 = tpu.matmul %78, %0, %cst_42 {dimension_numbers = #tpu.dot_dimension_numbers<[1], [0], [0], [1], [0, 0, 1, 1], [], []>} : vector<1x16xf32>, vector<16x128xf32>, vector<1x128xf32> -> vector<1x128xf32>
    %cst_43 = arith.constant dense<0.000000e+00> : vector<1x128xf32>
    %80 = tpu.matmul %40, %1, %cst_43 {dimension_numbers = #tpu.dot_dimension_numbers<[1], [0], [0], [1], [0, 0, 1, 1], [], []>} : vector<1x32xf32>, vector<32x128xf32>, vector<1x128xf32> -> vector<1x128xf32>
    %81 = arith.addf %79, %80 : vector<1x128xf32>
    %82 = arith.addf %81, %2 : vector<1x128xf32>
    %83 = arith.negf %82 : vector<1x128xf32>
    %84 = math.exp %83 : vector<1x128xf32>
    %cst_44 = arith.constant 1.000000e+00 : f32
    %85 = vector.broadcast %cst_44 : f32 to vector<1x128xf32>
    %86 = arith.addf %85, %84 : vector<1x128xf32>
    %87 = arith.divf %85, %86 : vector<1x128xf32>
    %88 = vector.extract_strided_slice %87 {offsets = [0, 0], sizes = [1, 32], strides = [1, 1]} : vector<1x128xf32> to vector<1x32xf32>
    %89 = vector.extract_strided_slice %87 {offsets = [0, 32], sizes = [1, 32], strides = [1, 1]} : vector<1x128xf32> to vector<1x32xf32>
    %90 = vector.extract_strided_slice %87 {offsets = [0, 96], sizes = [1, 32], strides = [1, 1]} : vector<1x128xf32> to vector<1x32xf32>
    %91 = vector.extract_strided_slice %82 {offsets = [0, 64], sizes = [1, 32], strides = [1, 1]} : vector<1x128xf32> to vector<1x32xf32>
    %92 = math.tanh %91 : vector<1x32xf32>
    %93 = arith.mulf %89, %38 : vector<1x32xf32>
    %94 = arith.mulf %88, %92 : vector<1x32xf32>
    %95 = arith.addf %93, %94 : vector<1x32xf32>
    %96 = math.tanh %95 : vector<1x32xf32>
    %97 = arith.mulf %90, %96 : vector<1x32xf32>
    %cst_45 = arith.constant dense<0.000000e+00> : vector<1x128xf32>
    %98 = tpu.matmul %97, %3, %cst_45 {dimension_numbers = #tpu.dot_dimension_numbers<[1], [0], [0], [1], [0, 0, 1, 1], [], []>} : vector<1x32xf32>, vector<32x128xf32>, vector<1x128xf32> -> vector<1x128xf32>
    %cst_46 = arith.constant dense<0.000000e+00> : vector<1x128xf32>
    %99 = tpu.matmul %59, %4, %cst_46 {dimension_numbers = #tpu.dot_dimension_numbers<[1], [0], [0], [1], [0, 0, 1, 1], [], []>} : vector<1x32xf32>, vector<32x128xf32>, vector<1x128xf32> -> vector<1x128xf32>
    %100 = arith.addf %98, %99 : vector<1x128xf32>
    %101 = arith.addf %100, %5 : vector<1x128xf32>
    %102 = arith.negf %101 : vector<1x128xf32>
    %103 = math.exp %102 : vector<1x128xf32>
    %cst_47 = arith.constant 1.000000e+00 : f32
    %104 = vector.broadcast %cst_47 : f32 to vector<1x128xf32>
    %105 = arith.addf %104, %103 : vector<1x128xf32>
    %106 = arith.divf %104, %105 : vector<1x128xf32>
    %107 = vector.extract_strided_slice %106 {offsets = [0, 0], sizes = [1, 32], strides = [1, 1]} : vector<1x128xf32> to vector<1x32xf32>
    %108 = vector.extract_strided_slice %106 {offsets = [0, 32], sizes = [1, 32], strides = [1, 1]} : vector<1x128xf32> to vector<1x32xf32>
    %109 = vector.extract_strided_slice %106 {offsets = [0, 96], sizes = [1, 32], strides = [1, 1]} : vector<1x128xf32> to vector<1x32xf32>
    %110 = vector.extract_strided_slice %101 {offsets = [0, 64], sizes = [1, 32], strides = [1, 1]} : vector<1x128xf32> to vector<1x32xf32>
    %111 = math.tanh %110 : vector<1x32xf32>
    %112 = arith.mulf %108, %57 : vector<1x32xf32>
    %113 = arith.mulf %107, %111 : vector<1x32xf32>
    %114 = arith.addf %112, %113 : vector<1x32xf32>
    %115 = math.tanh %114 : vector<1x32xf32>
    %116 = arith.mulf %109, %115 : vector<1x32xf32>
    %cst_48 = arith.constant dense<0.000000e+00> : vector<1x128xf32>
    %117 = tpu.matmul %116, %6, %cst_48 {dimension_numbers = #tpu.dot_dimension_numbers<[1], [0], [0], [1], [0, 0, 1, 1], [], []>} : vector<1x32xf32>, vector<32x128xf32>, vector<1x128xf32> -> vector<1x128xf32>
    %118 = arith.addf %117, %7 : vector<1x128xf32>
    %cst_49 = arith.constant dense<0xFF800000> : vector<1xf32>
    %119 = vector.multi_reduction <maximumf>, %118, %cst_49 [1] : vector<1x128xf32> to vector<1xf32>
    %120 = vector.shape_cast %119 : vector<1xf32> to vector<1x1xf32>
    %121 = vector.broadcast %120 : vector<1x1xf32> to vector<1x128xf32>
    %122 = arith.subf %118, %121 : vector<1x128xf32>
    %123 = math.exp %122 : vector<1x128xf32>
    %cst_50 = arith.constant dense<0.000000e+00> : vector<1xf32>
    %124 = vector.multi_reduction <add>, %123, %cst_50 [1] : vector<1x128xf32> to vector<1xf32>
    %125 = vector.shape_cast %124 : vector<1xf32> to vector<1x1xf32>
    %126 = math.log %125 : vector<1x1xf32>
    %127 = arith.addf %126, %120 : vector<1x1xf32>
    %128 = vector.broadcast %127 : vector<1x1xf32> to vector<1x128xf32>
    %129 = arith.subf %118, %128 : vector<1x128xf32>
    %c2 = arith.constant 2 : index
    %130 = memref.load %arg1[%c2] : memref<8xi32, #tpu.memory_space<smem>>
    %131 = arith.index_cast %130 : i32 to index
    %c0_51 = arith.constant 0 : index
    %c0_52 = arith.constant 0 : index
    %132 = vector.load %arg2[%131, %c0_51, %c0_52] : memref<10x1x16xf32, #tpu.memory_space<vmem>>, vector<1x1x16xf32>
    %133 = vector.shape_cast %132 : vector<1x1x16xf32> to vector<1x16xf32>
    %cst_53 = arith.constant 0.000000e+00 : f32
    %134 = vector.broadcast %cst_53 : f32 to vector<1x16xf32>
    %135 = arith.maximumf %133, %134 : vector<1x16xf32>
    %cst_54 = arith.constant dense<0.000000e+00> : vector<1x128xf32>
    %136 = tpu.matmul %135, %0, %cst_54 {dimension_numbers = #tpu.dot_dimension_numbers<[1], [0], [0], [1], [0, 0, 1, 1], [], []>} : vector<1x16xf32>, vector<16x128xf32>, vector<1x128xf32> -> vector<1x128xf32>
    %cst_55 = arith.constant dense<0.000000e+00> : vector<1x128xf32>
    %137 = tpu.matmul %97, %1, %cst_55 {dimension_numbers = #tpu.dot_dimension_numbers<[1], [0], [0], [1], [0, 0, 1, 1], [], []>} : vector<1x32xf32>, vector<32x128xf32>, vector<1x128xf32> -> vector<1x128xf32>
    %138 = arith.addf %136, %137 : vector<1x128xf32>
    %139 = arith.addf %138, %2 : vector<1x128xf32>
    %140 = arith.negf %139 : vector<1x128xf32>
    %141 = math.exp %140 : vector<1x128xf32>
    %cst_56 = arith.constant 1.000000e+00 : f32
    %142 = vector.broadcast %cst_56 : f32 to vector<1x128xf32>
    %143 = arith.addf %142, %141 : vector<1x128xf32>
    %144 = arith.divf %142, %143 : vector<1x128xf32>
    %145 = vector.extract_strided_slice %144 {offsets = [0, 0], sizes = [1, 32], strides = [1, 1]} : vector<1x128xf32> to vector<1x32xf32>
    %146 = vector.extract_strided_slice %144 {offsets = [0, 32], sizes = [1, 32], strides = [1, 1]} : vector<1x128xf32> to vector<1x32xf32>
    %147 = vector.extract_strided_slice %144 {offsets = [0, 96], sizes = [1, 32], strides = [1, 1]} : vector<1x128xf32> to vector<1x32xf32>
    %148 = vector.extract_strided_slice %139 {offsets = [0, 64], sizes = [1, 32], strides = [1, 1]} : vector<1x128xf32> to vector<1x32xf32>
    %149 = math.tanh %148 : vector<1x32xf32>
    %150 = arith.mulf %146, %95 : vector<1x32xf32>
    %151 = arith.mulf %145, %149 : vector<1x32xf32>
    %152 = arith.addf %150, %151 : vector<1x32xf32>
    %153 = math.tanh %152 : vector<1x32xf32>
    %154 = arith.mulf %147, %153 : vector<1x32xf32>
    %cst_57 = arith.constant dense<0.000000e+00> : vector<1x128xf32>
    %155 = tpu.matmul %154, %3, %cst_57 {dimension_numbers = #tpu.dot_dimension_numbers<[1], [0], [0], [1], [0, 0, 1, 1], [], []>} : vector<1x32xf32>, vector<32x128xf32>, vector<1x128xf32> -> vector<1x128xf32>
    %cst_58 = arith.constant dense<0.000000e+00> : vector<1x128xf32>
    %156 = tpu.matmul %116, %4, %cst_58 {dimension_numbers = #tpu.dot_dimension_numbers<[1], [0], [0], [1], [0, 0, 1, 1], [], []>} : vector<1x32xf32>, vector<32x128xf32>, vector<1x128xf32> -> vector<1x128xf32>
    %157 = arith.addf %155, %156 : vector<1x128xf32>
    %158 = arith.addf %157, %5 : vector<1x128xf32>
    %159 = arith.negf %158 : vector<1x128xf32>
    %160 = math.exp %159 : vector<1x128xf32>
    %cst_59 = arith.constant 1.000000e+00 : f32
    %161 = vector.broadcast %cst_59 : f32 to vector<1x128xf32>
    %162 = arith.addf %161, %160 : vector<1x128xf32>
    %163 = arith.divf %161, %162 : vector<1x128xf32>
    %164 = vector.extract_strided_slice %163 {offsets = [0, 0], sizes = [1, 32], strides = [1, 1]} : vector<1x128xf32> to vector<1x32xf32>
    %165 = vector.extract_strided_slice %163 {offsets = [0, 32], sizes = [1, 32], strides = [1, 1]} : vector<1x128xf32> to vector<1x32xf32>
    %166 = vector.extract_strided_slice %163 {offsets = [0, 96], sizes = [1, 32], strides = [1, 1]} : vector<1x128xf32> to vector<1x32xf32>
    %167 = vector.extract_strided_slice %158 {offsets = [0, 64], sizes = [1, 32], strides = [1, 1]} : vector<1x128xf32> to vector<1x32xf32>
    %168 = math.tanh %167 : vector<1x32xf32>
    %169 = arith.mulf %165, %114 : vector<1x32xf32>
    %170 = arith.mulf %164, %168 : vector<1x32xf32>
    %171 = arith.addf %169, %170 : vector<1x32xf32>
    %172 = math.tanh %171 : vector<1x32xf32>
    %173 = arith.mulf %166, %172 : vector<1x32xf32>
    %cst_60 = arith.constant dense<0.000000e+00> : vector<1x128xf32>
    %174 = tpu.matmul %173, %6, %cst_60 {dimension_numbers = #tpu.dot_dimension_numbers<[1], [0], [0], [1], [0, 0, 1, 1], [], []>} : vector<1x32xf32>, vector<32x128xf32>, vector<1x128xf32> -> vector<1x128xf32>
    %175 = arith.addf %174, %7 : vector<1x128xf32>
    %cst_61 = arith.constant dense<0xFF800000> : vector<1xf32>
    %176 = vector.multi_reduction <maximumf>, %175, %cst_61 [1] : vector<1x128xf32> to vector<1xf32>
    %177 = vector.shape_cast %176 : vector<1xf32> to vector<1x1xf32>
    %178 = vector.broadcast %177 : vector<1x1xf32> to vector<1x128xf32>
    %179 = arith.subf %175, %178 : vector<1x128xf32>
    %180 = math.exp %179 : vector<1x128xf32>
    %cst_62 = arith.constant dense<0.000000e+00> : vector<1xf32>
    %181 = vector.multi_reduction <add>, %180, %cst_62 [1] : vector<1x128xf32> to vector<1xf32>
    %182 = vector.shape_cast %181 : vector<1xf32> to vector<1x1xf32>
    %183 = math.log %182 : vector<1x1xf32>
    %184 = arith.addf %183, %177 : vector<1x1xf32>
    %185 = vector.broadcast %184 : vector<1x1xf32> to vector<1x128xf32>
    %186 = arith.subf %175, %185 : vector<1x128xf32>
    %c3 = arith.constant 3 : index
    %187 = memref.load %arg1[%c3] : memref<8xi32, #tpu.memory_space<smem>>
    %188 = arith.index_cast %187 : i32 to index
    %c0_63 = arith.constant 0 : index
    %c0_64 = arith.constant 0 : index
    %189 = vector.load %arg2[%188, %c0_63, %c0_64] : memref<10x1x16xf32, #tpu.memory_space<vmem>>, vector<1x1x16xf32>
    %190 = vector.shape_cast %189 : vector<1x1x16xf32> to vector<1x16xf32>
    %cst_65 = arith.constant 0.000000e+00 : f32
    %191 = vector.broadcast %cst_65 : f32 to vector<1x16xf32>
    %192 = arith.maximumf %190, %191 : vector<1x16xf32>
    %cst_66 = arith.constant dense<0.000000e+00> : vector<1x128xf32>
    %193 = tpu.matmul %192, %0, %cst_66 {dimension_numbers = #tpu.dot_dimension_numbers<[1], [0], [0], [1], [0, 0, 1, 1], [], []>} : vector<1x16xf32>, vector<16x128xf32>, vector<1x128xf32> -> vector<1x128xf32>
    %cst_67 = arith.constant dense<0.000000e+00> : vector<1x128xf32>
    %194 = tpu.matmul %154, %1, %cst_67 {dimension_numbers = #tpu.dot_dimension_numbers<[1], [0], [0], [1], [0, 0, 1, 1], [], []>} : vector<1x32xf32>, vector<32x128xf32>, vector<1x128xf32> -> vector<1x128xf32>
    %195 = arith.addf %193, %194 : vector<1x128xf32>
    %196 = arith.addf %195, %2 : vector<1x128xf32>
    %197 = arith.negf %196 : vector<1x128xf32>
    %198 = math.exp %197 : vector<1x128xf32>
    %cst_68 = arith.constant 1.000000e+00 : f32
    %199 = vector.broadcast %cst_68 : f32 to vector<1x128xf32>
    %200 = arith.addf %199, %198 : vector<1x128xf32>
    %201 = arith.divf %199, %200 : vector<1x128xf32>
    %202 = vector.extract_strided_slice %201 {offsets = [0, 0], sizes = [1, 32], strides = [1, 1]} : vector<1x128xf32> to vector<1x32xf32>
    %203 = vector.extract_strided_slice %201 {offsets = [0, 32], sizes = [1, 32], strides = [1, 1]} : vector<1x128xf32> to vector<1x32xf32>
    %204 = vector.extract_strided_slice %201 {offsets = [0, 96], sizes = [1, 32], strides = [1, 1]} : vector<1x128xf32> to vector<1x32xf32>
    %205 = vector.extract_strided_slice %196 {offsets = [0, 64], sizes = [1, 32], strides = [1, 1]} : vector<1x128xf32> to vector<1x32xf32>
    %206 = math.tanh %205 : vector<1x32xf32>
    %207 = arith.mulf %203, %152 : vector<1x32xf32>
    %208 = arith.mulf %202, %206 : vector<1x32xf32>
    %209 = arith.addf %207, %208 : vector<1x32xf32>
    %210 = math.tanh %209 : vector<1x32xf32>
    %211 = arith.mulf %204, %210 : vector<1x32xf32>
    %cst_69 = arith.constant dense<0.000000e+00> : vector<1x128xf32>
    %212 = tpu.matmul %211, %3, %cst_69 {dimension_numbers = #tpu.dot_dimension_numbers<[1], [0], [0], [1], [0, 0, 1, 1], [], []>} : vector<1x32xf32>, vector<32x128xf32>, vector<1x128xf32> -> vector<1x128xf32>
    %cst_70 = arith.constant dense<0.000000e+00> : vector<1x128xf32>
    %213 = tpu.matmul %173, %4, %cst_70 {dimension_numbers = #tpu.dot_dimension_numbers<[1], [0], [0], [1], [0, 0, 1, 1], [], []>} : vector<1x32xf32>, vector<32x128xf32>, vector<1x128xf32> -> vector<1x128xf32>
    %214 = arith.addf %212, %213 : vector<1x128xf32>
    %215 = arith.addf %214, %5 : vector<1x128xf32>
    %216 = arith.negf %215 : vector<1x128xf32>
    %217 = math.exp %216 : vector<1x128xf32>
    %cst_71 = arith.constant 1.000000e+00 : f32
    %218 = vector.broadcast %cst_71 : f32 to vector<1x128xf32>
    %219 = arith.addf %218, %217 : vector<1x128xf32>
    %220 = arith.divf %218, %219 : vector<1x128xf32>
    %221 = vector.extract_strided_slice %220 {offsets = [0, 0], sizes = [1, 32], strides = [1, 1]} : vector<1x128xf32> to vector<1x32xf32>
    %222 = vector.extract_strided_slice %220 {offsets = [0, 32], sizes = [1, 32], strides = [1, 1]} : vector<1x128xf32> to vector<1x32xf32>
    %223 = vector.extract_strided_slice %220 {offsets = [0, 96], sizes = [1, 32], strides = [1, 1]} : vector<1x128xf32> to vector<1x32xf32>
    %224 = vector.extract_strided_slice %215 {offsets = [0, 64], sizes = [1, 32], strides = [1, 1]} : vector<1x128xf32> to vector<1x32xf32>
    %225 = math.tanh %224 : vector<1x32xf32>
    %226 = arith.mulf %222, %171 : vector<1x32xf32>
    %227 = arith.mulf %221, %225 : vector<1x32xf32>
    %228 = arith.addf %226, %227 : vector<1x32xf32>
    %229 = math.tanh %228 : vector<1x32xf32>
    %230 = arith.mulf %223, %229 : vector<1x32xf32>
    %cst_72 = arith.constant dense<0.000000e+00> : vector<1x128xf32>
    %231 = tpu.matmul %230, %6, %cst_72 {dimension_numbers = #tpu.dot_dimension_numbers<[1], [0], [0], [1], [0, 0, 1, 1], [], []>} : vector<1x32xf32>, vector<32x128xf32>, vector<1x128xf32> -> vector<1x128xf32>
    %232 = arith.addf %231, %7 : vector<1x128xf32>
    %cst_73 = arith.constant dense<0xFF800000> : vector<1xf32>
    %233 = vector.multi_reduction <maximumf>, %232, %cst_73 [1] : vector<1x128xf32> to vector<1xf32>
    %234 = vector.shape_cast %233 : vector<1xf32> to vector<1x1xf32>
    %235 = vector.broadcast %234 : vector<1x1xf32> to vector<1x128xf32>
    %236 = arith.subf %232, %235 : vector<1x128xf32>
    %237 = math.exp %236 : vector<1x128xf32>
    %cst_74 = arith.constant dense<0.000000e+00> : vector<1xf32>
    %238 = vector.multi_reduction <add>, %237, %cst_74 [1] : vector<1x128xf32> to vector<1xf32>
    %239 = vector.shape_cast %238 : vector<1xf32> to vector<1x1xf32>
    %240 = math.log %239 : vector<1x1xf32>
    %241 = arith.addf %240, %234 : vector<1x1xf32>
    %242 = vector.broadcast %241 : vector<1x1xf32> to vector<1x128xf32>
    %243 = arith.subf %232, %242 : vector<1x128xf32>
    %c4 = arith.constant 4 : index
    %244 = memref.load %arg1[%c4] : memref<8xi32, #tpu.memory_space<smem>>
    %245 = arith.index_cast %244 : i32 to index
    %c0_75 = arith.constant 0 : index
    %c0_76 = arith.constant 0 : index
    %246 = vector.load %arg2[%245, %c0_75, %c0_76] : memref<10x1x16xf32, #tpu.memory_space<vmem>>, vector<1x1x16xf32>
    %247 = vector.shape_cast %246 : vector<1x1x16xf32> to vector<1x16xf32>
    %cst_77 = arith.constant 0.000000e+00 : f32
    %248 = vector.broadcast %cst_77 : f32 to vector<1x16xf32>
    %249 = arith.maximumf %247, %248 : vector<1x16xf32>
    %cst_78 = arith.constant dense<0.000000e+00> : vector<1x128xf32>
    %250 = tpu.matmul %249, %0, %cst_78 {dimension_numbers = #tpu.dot_dimension_numbers<[1], [0], [0], [1], [0, 0, 1, 1], [], []>} : vector<1x16xf32>, vector<16x128xf32>, vector<1x128xf32> -> vector<1x128xf32>
    %cst_79 = arith.constant dense<0.000000e+00> : vector<1x128xf32>
    %251 = tpu.matmul %211, %1, %cst_79 {dimension_numbers = #tpu.dot_dimension_numbers<[1], [0], [0], [1], [0, 0, 1, 1], [], []>} : vector<1x32xf32>, vector<32x128xf32>, vector<1x128xf32> -> vector<1x128xf32>
    %252 = arith.addf %250, %251 : vector<1x128xf32>
    %253 = arith.addf %252, %2 : vector<1x128xf32>
    %254 = arith.negf %253 : vector<1x128xf32>
    %255 = math.exp %254 : vector<1x128xf32>
    %cst_80 = arith.constant 1.000000e+00 : f32
    %256 = vector.broadcast %cst_80 : f32 to vector<1x128xf32>
    %257 = arith.addf %256, %255 : vector<1x128xf32>
    %258 = arith.divf %256, %257 : vector<1x128xf32>
    %259 = vector.extract_strided_slice %258 {offsets = [0, 0], sizes = [1, 32], strides = [1, 1]} : vector<1x128xf32> to vector<1x32xf32>
    %260 = vector.extract_strided_slice %258 {offsets = [0, 32], sizes = [1, 32], strides = [1, 1]} : vector<1x128xf32> to vector<1x32xf32>
    %261 = vector.extract_strided_slice %258 {offsets = [0, 96], sizes = [1, 32], strides = [1, 1]} : vector<1x128xf32> to vector<1x32xf32>
    %262 = vector.extract_strided_slice %253 {offsets = [0, 64], sizes = [1, 32], strides = [1, 1]} : vector<1x128xf32> to vector<1x32xf32>
    %263 = math.tanh %262 : vector<1x32xf32>
    %264 = arith.mulf %260, %209 : vector<1x32xf32>
    %265 = arith.mulf %259, %263 : vector<1x32xf32>
    %266 = arith.addf %264, %265 : vector<1x32xf32>
    %267 = math.tanh %266 : vector<1x32xf32>
    %268 = arith.mulf %261, %267 : vector<1x32xf32>
    %cst_81 = arith.constant dense<0.000000e+00> : vector<1x128xf32>
    %269 = tpu.matmul %268, %3, %cst_81 {dimension_numbers = #tpu.dot_dimension_numbers<[1], [0], [0], [1], [0, 0, 1, 1], [], []>} : vector<1x32xf32>, vector<32x128xf32>, vector<1x128xf32> -> vector<1x128xf32>
    %cst_82 = arith.constant dense<0.000000e+00> : vector<1x128xf32>
    %270 = tpu.matmul %230, %4, %cst_82 {dimension_numbers = #tpu.dot_dimension_numbers<[1], [0], [0], [1], [0, 0, 1, 1], [], []>} : vector<1x32xf32>, vector<32x128xf32>, vector<1x128xf32> -> vector<1x128xf32>
    %271 = arith.addf %269, %270 : vector<1x128xf32>
    %272 = arith.addf %271, %5 : vector<1x128xf32>
    %273 = arith.negf %272 : vector<1x128xf32>
    %274 = math.exp %273 : vector<1x128xf32>
    %cst_83 = arith.constant 1.000000e+00 : f32
    %275 = vector.broadcast %cst_83 : f32 to vector<1x128xf32>
    %276 = arith.addf %275, %274 : vector<1x128xf32>
    %277 = arith.divf %275, %276 : vector<1x128xf32>
    %278 = vector.extract_strided_slice %277 {offsets = [0, 0], sizes = [1, 32], strides = [1, 1]} : vector<1x128xf32> to vector<1x32xf32>
    %279 = vector.extract_strided_slice %277 {offsets = [0, 32], sizes = [1, 32], strides = [1, 1]} : vector<1x128xf32> to vector<1x32xf32>
    %280 = vector.extract_strided_slice %277 {offsets = [0, 96], sizes = [1, 32], strides = [1, 1]} : vector<1x128xf32> to vector<1x32xf32>
    %281 = vector.extract_strided_slice %272 {offsets = [0, 64], sizes = [1, 32], strides = [1, 1]} : vector<1x128xf32> to vector<1x32xf32>
    %282 = math.tanh %281 : vector<1x32xf32>
    %283 = arith.mulf %279, %228 : vector<1x32xf32>
    %284 = arith.mulf %278, %282 : vector<1x32xf32>
    %285 = arith.addf %283, %284 : vector<1x32xf32>
    %286 = math.tanh %285 : vector<1x32xf32>
    %287 = arith.mulf %280, %286 : vector<1x32xf32>
    %cst_84 = arith.constant dense<0.000000e+00> : vector<1x128xf32>
    %288 = tpu.matmul %287, %6, %cst_84 {dimension_numbers = #tpu.dot_dimension_numbers<[1], [0], [0], [1], [0, 0, 1, 1], [], []>} : vector<1x32xf32>, vector<32x128xf32>, vector<1x128xf32> -> vector<1x128xf32>
    %289 = arith.addf %288, %7 : vector<1x128xf32>
    %cst_85 = arith.constant dense<0xFF800000> : vector<1xf32>
    %290 = vector.multi_reduction <maximumf>, %289, %cst_85 [1] : vector<1x128xf32> to vector<1xf32>
    %291 = vector.shape_cast %290 : vector<1xf32> to vector<1x1xf32>
    %292 = vector.broadcast %291 : vector<1x1xf32> to vector<1x128xf32>
    %293 = arith.subf %289, %292 : vector<1x128xf32>
    %294 = math.exp %293 : vector<1x128xf32>
    %cst_86 = arith.constant dense<0.000000e+00> : vector<1xf32>
    %295 = vector.multi_reduction <add>, %294, %cst_86 [1] : vector<1x128xf32> to vector<1xf32>
    %296 = vector.shape_cast %295 : vector<1xf32> to vector<1x1xf32>
    %297 = math.log %296 : vector<1x1xf32>
    %298 = arith.addf %297, %291 : vector<1x1xf32>
    %299 = vector.broadcast %298 : vector<1x1xf32> to vector<1x128xf32>
    %300 = arith.subf %289, %299 : vector<1x128xf32>
    %c5 = arith.constant 5 : index
    %301 = memref.load %arg1[%c5] : memref<8xi32, #tpu.memory_space<smem>>
    %302 = arith.index_cast %301 : i32 to index
    %c0_87 = arith.constant 0 : index
    %c0_88 = arith.constant 0 : index
    %303 = vector.load %arg2[%302, %c0_87, %c0_88] : memref<10x1x16xf32, #tpu.memory_space<vmem>>, vector<1x1x16xf32>
    %304 = vector.shape_cast %303 : vector<1x1x16xf32> to vector<1x16xf32>
    %cst_89 = arith.constant 0.000000e+00 : f32
    %305 = vector.broadcast %cst_89 : f32 to vector<1x16xf32>
    %306 = arith.maximumf %304, %305 : vector<1x16xf32>
    %cst_90 = arith.constant dense<0.000000e+00> : vector<1x128xf32>
    %307 = tpu.matmul %306, %0, %cst_90 {dimension_numbers = #tpu.dot_dimension_numbers<[1], [0], [0], [1], [0, 0, 1, 1], [], []>} : vector<1x16xf32>, vector<16x128xf32>, vector<1x128xf32> -> vector<1x128xf32>
    %cst_91 = arith.constant dense<0.000000e+00> : vector<1x128xf32>
    %308 = tpu.matmul %268, %1, %cst_91 {dimension_numbers = #tpu.dot_dimension_numbers<[1], [0], [0], [1], [0, 0, 1, 1], [], []>} : vector<1x32xf32>, vector<32x128xf32>, vector<1x128xf32> -> vector<1x128xf32>
    %309 = arith.addf %307, %308 : vector<1x128xf32>
    %310 = arith.addf %309, %2 : vector<1x128xf32>
    %311 = arith.negf %310 : vector<1x128xf32>
    %312 = math.exp %311 : vector<1x128xf32>
    %cst_92 = arith.constant 1.000000e+00 : f32
    %313 = vector.broadcast %cst_92 : f32 to vector<1x128xf32>
    %314 = arith.addf %313, %312 : vector<1x128xf32>
    %315 = arith.divf %313, %314 : vector<1x128xf32>
    %316 = vector.extract_strided_slice %315 {offsets = [0, 0], sizes = [1, 32], strides = [1, 1]} : vector<1x128xf32> to vector<1x32xf32>
    %317 = vector.extract_strided_slice %315 {offsets = [0, 32], sizes = [1, 32], strides = [1, 1]} : vector<1x128xf32> to vector<1x32xf32>
    %318 = vector.extract_strided_slice %315 {offsets = [0, 96], sizes = [1, 32], strides = [1, 1]} : vector<1x128xf32> to vector<1x32xf32>
    %319 = vector.extract_strided_slice %310 {offsets = [0, 64], sizes = [1, 32], strides = [1, 1]} : vector<1x128xf32> to vector<1x32xf32>
    %320 = math.tanh %319 : vector<1x32xf32>
    %321 = arith.mulf %317, %266 : vector<1x32xf32>
    %322 = arith.mulf %316, %320 : vector<1x32xf32>
    %323 = arith.addf %321, %322 : vector<1x32xf32>
    %324 = math.tanh %323 : vector<1x32xf32>
    %325 = arith.mulf %318, %324 : vector<1x32xf32>
    %cst_93 = arith.constant dense<0.000000e+00> : vector<1x128xf32>
    %326 = tpu.matmul %325, %3, %cst_93 {dimension_numbers = #tpu.dot_dimension_numbers<[1], [0], [0], [1], [0, 0, 1, 1], [], []>} : vector<1x32xf32>, vector<32x128xf32>, vector<1x128xf32> -> vector<1x128xf32>
    %cst_94 = arith.constant dense<0.000000e+00> : vector<1x128xf32>
    %327 = tpu.matmul %287, %4, %cst_94 {dimension_numbers = #tpu.dot_dimension_numbers<[1], [0], [0], [1], [0, 0, 1, 1], [], []>} : vector<1x32xf32>, vector<32x128xf32>, vector<1x128xf32> -> vector<1x128xf32>
    %328 = arith.addf %326, %327 : vector<1x128xf32>
    %329 = arith.addf %328, %5 : vector<1x128xf32>
    %330 = arith.negf %329 : vector<1x128xf32>
    %331 = math.exp %330 : vector<1x128xf32>
    %cst_95 = arith.constant 1.000000e+00 : f32
    %332 = vector.broadcast %cst_95 : f32 to vector<1x128xf32>
    %333 = arith.addf %332, %331 : vector<1x128xf32>
    %334 = arith.divf %332, %333 : vector<1x128xf32>
    %335 = vector.extract_strided_slice %334 {offsets = [0, 0], sizes = [1, 32], strides = [1, 1]} : vector<1x128xf32> to vector<1x32xf32>
    %336 = vector.extract_strided_slice %334 {offsets = [0, 32], sizes = [1, 32], strides = [1, 1]} : vector<1x128xf32> to vector<1x32xf32>
    %337 = vector.extract_strided_slice %334 {offsets = [0, 96], sizes = [1, 32], strides = [1, 1]} : vector<1x128xf32> to vector<1x32xf32>
    %338 = vector.extract_strided_slice %329 {offsets = [0, 64], sizes = [1, 32], strides = [1, 1]} : vector<1x128xf32> to vector<1x32xf32>
    %339 = math.tanh %338 : vector<1x32xf32>
    %340 = arith.mulf %336, %285 : vector<1x32xf32>
    %341 = arith.mulf %335, %339 : vector<1x32xf32>
    %342 = arith.addf %340, %341 : vector<1x32xf32>
    %343 = math.tanh %342 : vector<1x32xf32>
    %344 = arith.mulf %337, %343 : vector<1x32xf32>
    %cst_96 = arith.constant dense<0.000000e+00> : vector<1x128xf32>
    %345 = tpu.matmul %344, %6, %cst_96 {dimension_numbers = #tpu.dot_dimension_numbers<[1], [0], [0], [1], [0, 0, 1, 1], [], []>} : vector<1x32xf32>, vector<32x128xf32>, vector<1x128xf32> -> vector<1x128xf32>
    %346 = arith.addf %345, %7 : vector<1x128xf32>
    %cst_97 = arith.constant dense<0xFF800000> : vector<1xf32>
    %347 = vector.multi_reduction <maximumf>, %346, %cst_97 [1] : vector<1x128xf32> to vector<1xf32>
    %348 = vector.shape_cast %347 : vector<1xf32> to vector<1x1xf32>
    %349 = vector.broadcast %348 : vector<1x1xf32> to vector<1x128xf32>
    %350 = arith.subf %346, %349 : vector<1x128xf32>
    %351 = math.exp %350 : vector<1x128xf32>
    %cst_98 = arith.constant dense<0.000000e+00> : vector<1xf32>
    %352 = vector.multi_reduction <add>, %351, %cst_98 [1] : vector<1x128xf32> to vector<1xf32>
    %353 = vector.shape_cast %352 : vector<1xf32> to vector<1x1xf32>
    %354 = math.log %353 : vector<1x1xf32>
    %355 = arith.addf %354, %348 : vector<1x1xf32>
    %356 = vector.broadcast %355 : vector<1x1xf32> to vector<1x128xf32>
    %357 = arith.subf %346, %356 : vector<1x128xf32>
    %c6 = arith.constant 6 : index
    %358 = memref.load %arg1[%c6] : memref<8xi32, #tpu.memory_space<smem>>
    %359 = arith.index_cast %358 : i32 to index
    %c0_99 = arith.constant 0 : index
    %c0_100 = arith.constant 0 : index
    %360 = vector.load %arg2[%359, %c0_99, %c0_100] : memref<10x1x16xf32, #tpu.memory_space<vmem>>, vector<1x1x16xf32>
    %361 = vector.shape_cast %360 : vector<1x1x16xf32> to vector<1x16xf32>
    %cst_101 = arith.constant 0.000000e+00 : f32
    %362 = vector.broadcast %cst_101 : f32 to vector<1x16xf32>
    %363 = arith.maximumf %361, %362 : vector<1x16xf32>
    %cst_102 = arith.constant dense<0.000000e+00> : vector<1x128xf32>
    %364 = tpu.matmul %363, %0, %cst_102 {dimension_numbers = #tpu.dot_dimension_numbers<[1], [0], [0], [1], [0, 0, 1, 1], [], []>} : vector<1x16xf32>, vector<16x128xf32>, vector<1x128xf32> -> vector<1x128xf32>
    %cst_103 = arith.constant dense<0.000000e+00> : vector<1x128xf32>
    %365 = tpu.matmul %325, %1, %cst_103 {dimension_numbers = #tpu.dot_dimension_numbers<[1], [0], [0], [1], [0, 0, 1, 1], [], []>} : vector<1x32xf32>, vector<32x128xf32>, vector<1x128xf32> -> vector<1x128xf32>
    %366 = arith.addf %364, %365 : vector<1x128xf32>
    %367 = arith.addf %366, %2 : vector<1x128xf32>
    %368 = arith.negf %367 : vector<1x128xf32>
    %369 = math.exp %368 : vector<1x128xf32>
    %cst_104 = arith.constant 1.000000e+00 : f32
    %370 = vector.broadcast %cst_104 : f32 to vector<1x128xf32>
    %371 = arith.addf %370, %369 : vector<1x128xf32>
    %372 = arith.divf %370, %371 : vector<1x128xf32>
    %373 = vector.extract_strided_slice %372 {offsets = [0, 0], sizes = [1, 32], strides = [1, 1]} : vector<1x128xf32> to vector<1x32xf32>
    %374 = vector.extract_strided_slice %372 {offsets = [0, 32], sizes = [1, 32], strides = [1, 1]} : vector<1x128xf32> to vector<1x32xf32>
    %375 = vector.extract_strided_slice %372 {offsets = [0, 96], sizes = [1, 32], strides = [1, 1]} : vector<1x128xf32> to vector<1x32xf32>
    %376 = vector.extract_strided_slice %367 {offsets = [0, 64], sizes = [1, 32], strides = [1, 1]} : vector<1x128xf32> to vector<1x32xf32>
    %377 = math.tanh %376 : vector<1x32xf32>
    %378 = arith.mulf %374, %323 : vector<1x32xf32>
    %379 = arith.mulf %373, %377 : vector<1x32xf32>
    %380 = arith.addf %378, %379 : vector<1x32xf32>
    %381 = math.tanh %380 : vector<1x32xf32>
    %382 = arith.mulf %375, %381 : vector<1x32xf32>
    %cst_105 = arith.constant dense<0.000000e+00> : vector<1x128xf32>
    %383 = tpu.matmul %382, %3, %cst_105 {dimension_numbers = #tpu.dot_dimension_numbers<[1], [0], [0], [1], [0, 0, 1, 1], [], []>} : vector<1x32xf32>, vector<32x128xf32>, vector<1x128xf32> -> vector<1x128xf32>
    %cst_106 = arith.constant dense<0.000000e+00> : vector<1x128xf32>
    %384 = tpu.matmul %344, %4, %cst_106 {dimension_numbers = #tpu.dot_dimension_numbers<[1], [0], [0], [1], [0, 0, 1, 1], [], []>} : vector<1x32xf32>, vector<32x128xf32>, vector<1x128xf32> -> vector<1x128xf32>
    %385 = arith.addf %383, %384 : vector<1x128xf32>
    %386 = arith.addf %385, %5 : vector<1x128xf32>
    %387 = arith.negf %386 : vector<1x128xf32>
    %388 = math.exp %387 : vector<1x128xf32>
    %cst_107 = arith.constant 1.000000e+00 : f32
    %389 = vector.broadcast %cst_107 : f32 to vector<1x128xf32>
    %390 = arith.addf %389, %388 : vector<1x128xf32>
    %391 = arith.divf %389, %390 : vector<1x128xf32>
    %392 = vector.extract_strided_slice %391 {offsets = [0, 0], sizes = [1, 32], strides = [1, 1]} : vector<1x128xf32> to vector<1x32xf32>
    %393 = vector.extract_strided_slice %391 {offsets = [0, 32], sizes = [1, 32], strides = [1, 1]} : vector<1x128xf32> to vector<1x32xf32>
    %394 = vector.extract_strided_slice %391 {offsets = [0, 96], sizes = [1, 32], strides = [1, 1]} : vector<1x128xf32> to vector<1x32xf32>
    %395 = vector.extract_strided_slice %386 {offsets = [0, 64], sizes = [1, 32], strides = [1, 1]} : vector<1x128xf32> to vector<1x32xf32>
    %396 = math.tanh %395 : vector<1x32xf32>
    %397 = arith.mulf %393, %342 : vector<1x32xf32>
    %398 = arith.mulf %392, %396 : vector<1x32xf32>
    %399 = arith.addf %397, %398 : vector<1x32xf32>
    %400 = math.tanh %399 : vector<1x32xf32>
    %401 = arith.mulf %394, %400 : vector<1x32xf32>
    %cst_108 = arith.constant dense<0.000000e+00> : vector<1x128xf32>
    %402 = tpu.matmul %401, %6, %cst_108 {dimension_numbers = #tpu.dot_dimension_numbers<[1], [0], [0], [1], [0, 0, 1, 1], [], []>} : vector<1x32xf32>, vector<32x128xf32>, vector<1x128xf32> -> vector<1x128xf32>
    %403 = arith.addf %402, %7 : vector<1x128xf32>
    %cst_109 = arith.constant dense<0xFF800000> : vector<1xf32>
    %404 = vector.multi_reduction <maximumf>, %403, %cst_109 [1] : vector<1x128xf32> to vector<1xf32>
    %405 = vector.shape_cast %404 : vector<1xf32> to vector<1x1xf32>
    %406 = vector.broadcast %405 : vector<1x1xf32> to vector<1x128xf32>
    %407 = arith.subf %403, %406 : vector<1x128xf32>
    %408 = math.exp %407 : vector<1x128xf32>
    %cst_110 = arith.constant dense<0.000000e+00> : vector<1xf32>
    %409 = vector.multi_reduction <add>, %408, %cst_110 [1] : vector<1x128xf32> to vector<1xf32>
    %410 = vector.shape_cast %409 : vector<1xf32> to vector<1x1xf32>
    %411 = math.log %410 : vector<1x1xf32>
    %412 = arith.addf %411, %405 : vector<1x1xf32>
    %413 = vector.broadcast %412 : vector<1x1xf32> to vector<1x128xf32>
    %414 = arith.subf %403, %413 : vector<1x128xf32>
    %c7 = arith.constant 7 : index
    %415 = memref.load %arg1[%c7] : memref<8xi32, #tpu.memory_space<smem>>
    %416 = arith.index_cast %415 : i32 to index
    %c0_111 = arith.constant 0 : index
    %c0_112 = arith.constant 0 : index
    %417 = vector.load %arg2[%416, %c0_111, %c0_112] : memref<10x1x16xf32, #tpu.memory_space<vmem>>, vector<1x1x16xf32>
    %418 = vector.shape_cast %417 : vector<1x1x16xf32> to vector<1x16xf32>
    %cst_113 = arith.constant 0.000000e+00 : f32
    %419 = vector.broadcast %cst_113 : f32 to vector<1x16xf32>
    %420 = arith.maximumf %418, %419 : vector<1x16xf32>
    %cst_114 = arith.constant dense<0.000000e+00> : vector<1x128xf32>
    %421 = tpu.matmul %420, %0, %cst_114 {dimension_numbers = #tpu.dot_dimension_numbers<[1], [0], [0], [1], [0, 0, 1, 1], [], []>} : vector<1x16xf32>, vector<16x128xf32>, vector<1x128xf32> -> vector<1x128xf32>
    %cst_115 = arith.constant dense<0.000000e+00> : vector<1x128xf32>
    %422 = tpu.matmul %382, %1, %cst_115 {dimension_numbers = #tpu.dot_dimension_numbers<[1], [0], [0], [1], [0, 0, 1, 1], [], []>} : vector<1x32xf32>, vector<32x128xf32>, vector<1x128xf32> -> vector<1x128xf32>
    %423 = arith.addf %421, %422 : vector<1x128xf32>
    %424 = arith.addf %423, %2 : vector<1x128xf32>
    %425 = arith.negf %424 : vector<1x128xf32>
    %426 = math.exp %425 : vector<1x128xf32>
    %cst_116 = arith.constant 1.000000e+00 : f32
    %427 = vector.broadcast %cst_116 : f32 to vector<1x128xf32>
    %428 = arith.addf %427, %426 : vector<1x128xf32>
    %429 = arith.divf %427, %428 : vector<1x128xf32>
    %430 = vector.extract_strided_slice %429 {offsets = [0, 0], sizes = [1, 32], strides = [1, 1]} : vector<1x128xf32> to vector<1x32xf32>
    %431 = vector.extract_strided_slice %429 {offsets = [0, 32], sizes = [1, 32], strides = [1, 1]} : vector<1x128xf32> to vector<1x32xf32>
    %432 = vector.extract_strided_slice %429 {offsets = [0, 96], sizes = [1, 32], strides = [1, 1]} : vector<1x128xf32> to vector<1x32xf32>
    %433 = vector.extract_strided_slice %424 {offsets = [0, 64], sizes = [1, 32], strides = [1, 1]} : vector<1x128xf32> to vector<1x32xf32>
    %434 = math.tanh %433 : vector<1x32xf32>
    %435 = arith.mulf %431, %380 : vector<1x32xf32>
    %436 = arith.mulf %430, %434 : vector<1x32xf32>
    %437 = arith.addf %435, %436 : vector<1x32xf32>
    %438 = math.tanh %437 : vector<1x32xf32>
    %439 = arith.mulf %432, %438 : vector<1x32xf32>
    %cst_117 = arith.constant dense<0.000000e+00> : vector<1x128xf32>
    %440 = tpu.matmul %439, %3, %cst_117 {dimension_numbers = #tpu.dot_dimension_numbers<[1], [0], [0], [1], [0, 0, 1, 1], [], []>} : vector<1x32xf32>, vector<32x128xf32>, vector<1x128xf32> -> vector<1x128xf32>
    %cst_118 = arith.constant dense<0.000000e+00> : vector<1x128xf32>
    %441 = tpu.matmul %401, %4, %cst_118 {dimension_numbers = #tpu.dot_dimension_numbers<[1], [0], [0], [1], [0, 0, 1, 1], [], []>} : vector<1x32xf32>, vector<32x128xf32>, vector<1x128xf32> -> vector<1x128xf32>
    %442 = arith.addf %440, %441 : vector<1x128xf32>
    %443 = arith.addf %442, %5 : vector<1x128xf32>
    %444 = arith.negf %443 : vector<1x128xf32>
    %445 = math.exp %444 : vector<1x128xf32>
    %cst_119 = arith.constant 1.000000e+00 : f32
    %446 = vector.broadcast %cst_119 : f32 to vector<1x128xf32>
    %447 = arith.addf %446, %445 : vector<1x128xf32>
    %448 = arith.divf %446, %447 : vector<1x128xf32>
    %449 = vector.extract_strided_slice %448 {offsets = [0, 0], sizes = [1, 32], strides = [1, 1]} : vector<1x128xf32> to vector<1x32xf32>
    %450 = vector.extract_strided_slice %448 {offsets = [0, 32], sizes = [1, 32], strides = [1, 1]} : vector<1x128xf32> to vector<1x32xf32>
    %451 = vector.extract_strided_slice %448 {offsets = [0, 96], sizes = [1, 32], strides = [1, 1]} : vector<1x128xf32> to vector<1x32xf32>
    %452 = vector.extract_strided_slice %443 {offsets = [0, 64], sizes = [1, 32], strides = [1, 1]} : vector<1x128xf32> to vector<1x32xf32>
    %453 = math.tanh %452 : vector<1x32xf32>
    %454 = arith.mulf %450, %399 : vector<1x32xf32>
    %455 = arith.mulf %449, %453 : vector<1x32xf32>
    %456 = arith.addf %454, %455 : vector<1x32xf32>
    %457 = math.tanh %456 : vector<1x32xf32>
    %458 = arith.mulf %451, %457 : vector<1x32xf32>
    %cst_120 = arith.constant dense<0.000000e+00> : vector<1x128xf32>
    %459 = tpu.matmul %458, %6, %cst_120 {dimension_numbers = #tpu.dot_dimension_numbers<[1], [0], [0], [1], [0, 0, 1, 1], [], []>} : vector<1x32xf32>, vector<32x128xf32>, vector<1x128xf32> -> vector<1x128xf32>
    %460 = arith.addf %459, %7 : vector<1x128xf32>
    %cst_121 = arith.constant dense<0xFF800000> : vector<1xf32>
    %461 = vector.multi_reduction <maximumf>, %460, %cst_121 [1] : vector<1x128xf32> to vector<1xf32>
    %462 = vector.shape_cast %461 : vector<1xf32> to vector<1x1xf32>
    %463 = vector.broadcast %462 : vector<1x1xf32> to vector<1x128xf32>
    %464 = arith.subf %460, %463 : vector<1x128xf32>
    %465 = math.exp %464 : vector<1x128xf32>
    %cst_122 = arith.constant dense<0.000000e+00> : vector<1xf32>
    %466 = vector.multi_reduction <add>, %465, %cst_122 [1] : vector<1x128xf32> to vector<1xf32>
    %467 = vector.shape_cast %466 : vector<1xf32> to vector<1x1xf32>
    %468 = math.log %467 : vector<1x1xf32>
    %469 = arith.addf %468, %462 : vector<1x1xf32>
    %470 = vector.broadcast %469 : vector<1x1xf32> to vector<1x128xf32>
    %471 = arith.subf %460, %470 : vector<1x128xf32>
    %472 = tpu.concatenate %72, %129, %186, %243, %300, %357, %414, %471 in 0 : vector<1x128xf32>, vector<1x128xf32>, vector<1x128xf32>, vector<1x128xf32>, vector<1x128xf32>, vector<1x128xf32>, vector<1x128xf32>, vector<1x128xf32> -> vector<8x128xf32>
    %c0_123 = arith.constant 0 : index
    %c0_124 = arith.constant 0 : index
    %473 = vector.load %arg13[%c0_123, %c0_124] : memref<8x128xf32, #tpu.memory_space<vmem>>, vector<8x128xf32>
    tpu.vector_store %arg13[%c0_123, %c0_124], %472 {strides = array<i32>} : memref<8x128xf32, #tpu.memory_space<vmem>>, vector<8x128xf32>,
    %474 = tpu.concatenate %439, %458, %437, %456 in 1 : vector<1x32xf32>, vector<1x32xf32>, vector<1x32xf32>, vector<1x32xf32> -> vector<1x128xf32>
    %c0_125 = arith.constant 0 : index
    %c0_126 = arith.constant 0 : index
    %475 = vector.load %arg14[%c0_125, %c0_126] : memref<1x128xf32, #tpu.memory_space<vmem>>, vector<1x128xf32>
    tpu.vector_store %arg14[%c0_125, %c0_126], %474 {strides = array<i32>} : memref<1x128xf32, #tpu.memory_space<vmem>>, vector<1x128xf32>,
    return
  }
  func.func @transform_0(%arg0: i32, %arg1: memref<8xi32, #tpu.memory_space<smem>>) -> (i32, i32, i32) {
    %c0_i32 = arith.constant 0 : i32
    %c0_i32_0 = arith.constant 0 : i32
    %c0_i32_1 = arith.constant 0 : i32
    %c0_i32_2 = arith.constant 0 : i32
    return %c0_i32, %c0_i32_0, %c0_i32_1 : i32, i32, i32
  }
  func.func @transform_1(%arg0: i32, %arg1: memref<8xi32, #tpu.memory_space<smem>>) -> (i32, i32) {
    %c0_i32 = arith.constant 0 : i32
    %c0_i32_0 = arith.constant 0 : i32
    %c0_i32_1 = arith.constant 0 : i32
    return %c0_i32, %c0_i32_0 : i32, i32
  }
  func.func @transform_2(%arg0: i32, %arg1: memref<8xi32, #tpu.memory_space<smem>>) -> (i32, i32) {
    %c0_i32 = arith.constant 0 : i32
    %c0_i32_0 = arith.constant 0 : i32
    %c0_i32_1 = arith.constant 0 : i32
    return %c0_i32, %c0_i32_0 : i32, i32
  }
  func.func @transform_3(%arg0: i32, %arg1: memref<8xi32, #tpu.memory_space<smem>>) -> (i32, i32) {
    %c0_i32 = arith.constant 0 : i32
    %c0_i32_0 = arith.constant 0 : i32
    %c0_i32_1 = arith.constant 0 : i32
    return %c0_i32, %c0_i32_0 : i32, i32
  }
  func.func @transform_4(%arg0: i32, %arg1: memref<8xi32, #tpu.memory_space<smem>>) -> (i32, i32) {
    %c0_i32 = arith.constant 0 : i32
    %c0_i32_0 = arith.constant 0 : i32
    %c0_i32_1 = arith.constant 0 : i32
    return %c0_i32, %c0_i32_0 : i32, i32
  }
  func.func @transform_5(%arg0: i32, %arg1: memref<8xi32, #tpu.memory_space<smem>>) -> (i32, i32) {
    %c0_i32 = arith.constant 0 : i32
    %c0_i32_0 = arith.constant 0 : i32
    %c0_i32_1 = arith.constant 0 : i32
    return %c0_i32, %c0_i32_0 : i32, i32
  }
  func.func @transform_6(%arg0: i32, %arg1: memref<8xi32, #tpu.memory_space<smem>>) -> (i32, i32) {
    %c0_i32 = arith.constant 0 : i32
    %c0_i32_0 = arith.constant 0 : i32
    %c0_i32_1 = arith.constant 0 : i32
    return %c0_i32, %c0_i32_0 : i32, i32
  }
  func.func @transform_7(%arg0: i32, %arg1: memref<8xi32, #tpu.memory_space<smem>>) -> (i32, i32) {
    %c0_i32 = arith.constant 0 : i32
    %c0_i32_0 = arith.constant 0 : i32
    %c0_i32_1 = arith.constant 0 : i32
    return %c0_i32, %c0_i32_0 : i32, i32
  }
  func.func @transform_8(%arg0: i32, %arg1: memref<8xi32, #tpu.memory_space<smem>>) -> (i32, i32) {
    %c0_i32 = arith.constant 0 : i32
    %c0_i32_0 = arith.constant 0 : i32
    %c0_i32_1 = arith.constant 0 : i32
    return %c0_i32, %c0_i32_0 : i32, i32
  }
  func.func @transform_9(%arg0: i32, %arg1: memref<8xi32, #tpu.memory_space<smem>>) -> (i32, i32, i32) {
    %c0_i32 = arith.constant 0 : i32
    %c0_i32_0 = arith.constant 0 : i32
    %c0_i32_1 = arith.constant 0 : i32
    %c0_i32_2 = arith.constant 0 : i32
    return %c0_i32, %c0_i32_0, %c0_i32_1 : i32, i32, i32
  }
  func.func @transform_10(%arg0: i32, %arg1: memref<8xi32, #tpu.memory_space<smem>>) -> (i32, i32, i32) {
    %c0_i32 = arith.constant 0 : i32
    %c0_i32_0 = arith.constant 0 : i32
    %c0_i32_1 = arith.constant 0 : i32
    %c0_i32_2 = arith.constant 0 : i32
    return %c0_i32, %c0_i32_0, %c0_i32_1 : i32, i32, i32
  }
  func.func @transform_11(%arg0: i32, %arg1: memref<8xi32, #tpu.memory_space<smem>>) -> (i32, i32) {
    %c0_i32 = arith.constant 0 : i32
    %c0_i32_0 = arith.constant 0 : i32
    %c0_i32_1 = arith.constant 0 : i32
    return %c0_i32, %c0_i32_0 : i32, i32
  }
  func.func @transform_12(%arg0: i32, %arg1: memref<8xi32, #tpu.memory_space<smem>>) -> (i32, i32) {
    %c0_i32 = arith.constant 0 : i32
    %c0_i32_0 = arith.constant 0 : i32
    %c0_i32_1 = arith.constant 0 : i32
    return %c0_i32, %c0_i32_0 : i32, i32
  }
}

</mosaic_0001>

<llo_original>
// kernel: tpu_custom_call.1
$region0: #{tpu_custom_call.1}
  #allocation0 [shape = 'u32[]', space=smem, size = 0x4, offset = 0x4, fixed_abs, tag = 'smem constant byte address 0x4 - core index']
  #allocation1 [shape = 'u32[144,128]{1,0:T(1,128)}', space=vmem, size = 0x12000, scoped, tag = 'internal scratch']
  #allocation2 [shape = 's32[1]{0}', space=sflag, size = 0x4, scoped, tag = 'scoped memory for tpu_custom_call.1']
  #allocation3 [shape = 'u8[512]{0}', space=smem, size = 0x200, scoped, tag = 'prefetched SMEM operand 0']
  %s0 = inlined_call_operand.hbm [shape: s32[8], index: 0, kind: input, shape index: {}]
  %s1 = inlined_call_operand.hbm [shape: f32[10,1,16], index: 1, kind: input, shape index: {}]
  %s2 = inlined_call_operand.hbm [shape: f32[16,128], index: 2, kind: input, shape index: {}]
  %s3 = inlined_call_operand.hbm [shape: f32[32,128], index: 3, kind: input, shape index: {}]
  %s4 = inlined_call_operand.vmem [shape: f32[1,128], index: 4, kind: input, shape index: {}]
  %s5 = inlined_call_operand.hbm [shape: f32[32,128], index: 5, kind: input, shape index: {}]
  %s6 = inlined_call_operand.hbm [shape: f32[32,128], index: 6, kind: input, shape index: {}]
  %s7 = inlined_call_operand.vmem [shape: f32[1,128], index: 7, kind: input, shape index: {}]
  %s8 = inlined_call_operand.hbm [shape: f32[32,128], index: 8, kind: input, shape index: {}]
  %s9 = inlined_call_operand.vmem [shape: f32[1,128], index: 9, kind: input, shape index: {}]
  %s10 = inlined_call_operand.vmem [shape: f32[2,1,32], index: 10, kind: input, shape index: {}]
  %s11 = inlined_call_operand.vmem [shape: f32[2,1,32], index: 11, kind: input, shape index: {}]
  %s12 = inlined_call_operand.hbm [shape: f32[8,128], index: 12, kind: output, shape index: {0}]
  %s13 = inlined_call_operand.hbm [shape: f32[1,128], index: 13, kind: output, shape index: {1}]
  %14 = xla_tuple %s12, %s13
  %s15 = sld [smem:[#allocation0]]
  $region86: #{tpu_custom_call.1} parent=0
    _
  %s17 = ssub.s32 1, %s15
  %s18 = scalar_select 0, %s17, %s15
  %20 = dma.hbm_to_smem %s0, 16, [#allocation3], [#allocation2]
  %21 = dma.done [#allocation2], 16
  %22 = sfence
  $region1: #{tpu_custom_call.1} parent=0
    #allocation4 [shape = 'u8[5120]{0}', space=vmem, size = 0x1400, scoped, tag = 'input window, operand 1, single buffered']
    #allocation5 [shape = 's32[1]{0}', space=sflag, size = 0x4, scoped, tag = 'scoped memory for tpu_custom_call.1']
    #allocation6 [shape = 's32[1]{0}', space=sflag, size = 0x4, scoped, tag = 'scoped memory for tpu_custom_call.1']
    #allocation7 [shape = 'u8[8192]{0}', space=vmem, size = 0x2000, scoped, tag = 'input window, operand 2, single buffered']
    #allocation8 [shape = 's32[1]{0}', space=sflag, size = 0x4, scoped, tag = 'scoped memory for tpu_custom_call.1']
    #allocation9 [shape = 'u8[16384]{0}', space=vmem, size = 0x4000, scoped, tag = 'input window, operand 3, single buffered']
    #allocation10 [shape = 'u8[16384]{0}', space=vmem, size = 0x4000, scoped, tag = 'input window, operand 5, single buffered']
    #allocation11 [shape = 's32[1]{0}', space=sflag, size = 0x4, scoped, tag = 'scoped memory for tpu_custom_call.1']
    #allocation12 [shape = 'u8[16384]{0}', space=vmem, size = 0x4000, scoped, tag = 'input window, operand 6, single buffered']
    #allocation13 [shape = 'u8[16384]{0}', space=vmem, size = 0x4000, scoped, tag = 'input window, operand 8, single buffered']
    #allocation14 [shape = 's32[1]{0}', space=sflag, size = 0x4, scoped, tag = 'scoped memory for tpu_custom_call.1']
    #allocation15 [shape = 'u8[4096]{0}', space=vmem, size = 0x1000, scoped, tag = 'output window, operand 0, single buffered']
    #allocation16 [shape = 'u8[512]{0}', space=vmem, size = 0x400, scoped, tag = 'output window, operand 1, single buffered']
    #allocation17 [shape = 's32[1]{0}', space=sflag, size = 0x4, scoped, tag = 'scoped memory for tpu_custom_call.1']
    %23 = vsyncpa [#allocation5], 0
    %24 = vsyncpa [#allocation8], 0
    %25 = vsyncpa [#allocation11], 0
    %26 = vsyncpa [#allocation14], 0
    %27 = vsyncpa [#allocation6], 0
    %28 = vsyncpa [#allocation17], 0
    // Predicated region
    $region2: #{tpu_custom_call.1} parent=1 // pred_check
      _
    $region3: #{tpu_custom_call.1} parent=1 // pred_check_branch
      %30 = sbr.rel (0) target = $region5
    $region4: #{tpu_custom_call.1} parent=1 // pred_region
      %s32 = ssub.s32 160, 160
      %33 = vsyncadd [#allocation5], %s32
      %s34 = sshll.u32 [#allocation4], 4
      %s35 = int_to_ptr.vmem [resolvable:$true] %s34
      %40 = dma.hbm_to_vmem [thread:$0]  %s1, 160, %s35, [#allocation5], 16, 16, 1
    $region5: #{tpu_custom_call.1} parent=1 // pred_fallthru
      _
    // Predicated region
    $region6: #{tpu_custom_call.1} parent=1 // pred_check
      _
    $region7: #{tpu_custom_call.1} parent=1 // pred_check_branch
      %42 = sbr.rel (0) target = $region9
    $region8: #{tpu_custom_call.1} parent=1 // pred_region
      %s44 = ssub.s32 256, 256
      %45 = vsyncadd [#allocation8], %s44
      %s46 = sshll.u32 [#allocation7], 4
      %s47 = int_to_ptr.vmem [resolvable:$true] %s46
      %52 = dma.hbm_to_vmem [thread:$0]  %s2, 256, %s47, [#allocation8], 128, 128, 8
    $region9: #{tpu_custom_call.1} parent=1 // pred_fallthru
      _
    // Predicated region
    $region10: #{tpu_custom_call.1} parent=1 // pred_check
      _
    $region11: #{tpu_custom_call.1} parent=1 // pred_check_branch
      %54 = sbr.rel (0) target = $region13
    $region12: #{tpu_custom_call.1} parent=1 // pred_region
      %s56 = ssub.s32 512, 512
      %57 = vsyncadd [#allocation8], %s56
      %s58 = sshll.u32 [#allocation9], 4
      %s59 = int_to_ptr.vmem [resolvable:$true] %s58
      %64 = dma.hbm_to_vmem [thread:$0]  %s3, 512, %s59, [#allocation8], 128, 128, 8
    $region13: #{tpu_custom_call.1} parent=1 // pred_fallthru
      _
    // Predicated region
    $region14: #{tpu_custom_call.1} parent=1 // pred_check
      _
    $region15: #{tpu_custom_call.1} parent=1 // pred_check_branch
      %66 = sbr.rel (0) target = $region17
    $region16: #{tpu_custom_call.1} parent=1 // pred_region
      _
    $region17: #{tpu_custom_call.1} parent=1 // pred_fallthru
      _
    // Predicated region
    $region18: #{tpu_custom_call.1} parent=1 // pred_check
      _
    $region19: #{tpu_custom_call.1} parent=1 // pred_check_branch
      %68 = sbr.rel (0) target = $region21
    $region20: #{tpu_custom_call.1} parent=1 // pred_region
      %s70 = ssub.s32 512, 512
      %71 = vsyncadd [#allocation11], %s70
      %s72 = sshll.u32 [#allocation10], 4
      %s73 = int_to_ptr.vmem [resolvable:$true] %s72
      %78 = dma.hbm_to_vmem [thread:$0]  %s5, 512, %s73, [#allocation11], 128, 128, 8
    $region21: #{tpu_custom_call.1} parent=1 // pred_fallthru
      _
    // Predicated region
    $region22: #{tpu_custom_call.1} parent=1 // pred_check
      _
    $region23: #{tpu_custom_call.1} parent=1 // pred_check_branch
      %80 = sbr.rel (0) target = $region25
    $region24: #{tpu_custom_call.1} parent=1 // pred_region
      %s82 = ssub.s32 512, 512
      %83 = vsyncadd [#allocation11], %s82
      %s84 = sshll.u32 [#allocation12], 4
      %s85 = int_to_ptr.vmem [resolvable:$true] %s84
      %90 = dma.hbm_to_vmem [thread:$0]  %s6, 512, %s85, [#allocation11], 128, 128, 8
    $region25: #{tpu_custom_call.1} parent=1 // pred_fallthru
      _
    // Predicated region
    $region26: #{tpu_custom_call.1} parent=1 // pred_check
      _
    $region27: #{tpu_custom_call.1} parent=1 // pred_check_branch
      %92 = sbr.rel (0) target = $region29
    $region28: #{tpu_custom_call.1} parent=1 // pred_region
      _
    $region29: #{tpu_custom_call.1} parent=1 // pred_fallthru
      _
    // Predicated region
    $region30: #{tpu_custom_call.1} parent=1 // pred_check
      _
    $region31: #{tpu_custom_call.1} parent=1 // pred_check_branch
      %94 = sbr.rel (0) target = $region33
    $region32: #{tpu_custom_call.1} parent=1 // pred_region
      %s96 = ssub.s32 512, 512
      %97 = vsyncadd [#allocation14], %s96
      %s98 = sshll.u32 [#allocation13], 4
      %s99 = int_to_ptr.vmem [resolvable:$true] %s98
      %104 = dma.hbm_to_vmem [thread:$0]  %s8, 512, %s99, [#allocation14], 128, 128, 8
    $region33: #{tpu_custom_call.1} parent=1 // pred_fallthru
      _
    // Predicated region
    $region34: #{tpu_custom_call.1} parent=1 // pred_check
      _
    $region35: #{tpu_custom_call.1} parent=1 // pred_check_branch
      %106 = sbr.rel (0) target = $region37
    $region36: #{tpu_custom_call.1} parent=1 // pred_region
      _
    $region37: #{tpu_custom_call.1} parent=1 // pred_fallthru
      _
    // Predicated region
    $region38: #{tpu_custom_call.1} parent=1 // pred_check
      _
    $region39: #{tpu_custom_call.1} parent=1 // pred_check_branch
      %108 = sbr.rel (0) target = $region41
    $region40: #{tpu_custom_call.1} parent=1 // pred_region
      _
    $region41: #{tpu_custom_call.1} parent=1 // pred_fallthru
      _
    // Predicated region
    $region42: #{tpu_custom_call.1} parent=1 // pred_check
      _
    $region43: #{tpu_custom_call.1} parent=1 // pred_check_branch
      %110 = sbr.rel (0) target = $region45
    $region44: #{tpu_custom_call.1} parent=1 // pred_region
      _
    $region45: #{tpu_custom_call.1} parent=1 // pred_fallthru
      _
    // Predicated region
    $region46: #{tpu_custom_call.1} parent=1 // pred_check
      _
    $region47: #{tpu_custom_call.1} parent=1 // pred_check_branch
      %112 = sbr.rel (0) target = $region49
    $region48: #{tpu_custom_call.1} parent=1 // pred_region
      %113 = dma.done [#allocation5], 160
    $region49: #{tpu_custom_call.1} parent=1 // pred_fallthru
      _
    // Predicated region
    $region50: #{tpu_custom_call.1} parent=1 // pred_check
      _
    $region51: #{tpu_custom_call.1} parent=1 // pred_check_branch
      %115 = sbr.rel (0) target = $region53
    $region52: #{tpu_custom_call.1} parent=1 // pred_region
      %116 = dma.done [#allocation8], 256
    $region53: #{tpu_custom_call.1} parent=1 // pred_fallthru
      _
    // Predicated region
    $region54: #{tpu_custom_call.1} parent=1 // pred_check
      _
    $region55: #{tpu_custom_call.1} parent=1 // pred_check_branch
      %118 = sbr.rel (0) target = $region57
    $region56: #{tpu_custom_call.1} parent=1 // pred_region
      %119 = dma.done [#allocation8], 512
    $region57: #{tpu_custom_call.1} parent=1 // pred_fallthru
      _
    // Predicated region
    $region58: #{tpu_custom_call.1} parent=1 // pred_check
      _
    $region59: #{tpu_custom_call.1} parent=1 // pred_check_branch
      %121 = sbr.rel (0) target = $region61
    $region60: #{tpu_custom_call.1} parent=1 // pred_region
      %122 = dma.done [#allocation11], 512
    $region61: #{tpu_custom_call.1} parent=1 // pred_fallthru
      _
    // Predicated region
    $region62: #{tpu_custom_call.1} parent=1 // pred_check
      _
    $region63: #{tpu_custom_call.1} parent=1 // pred_check_branch
      %124 = sbr.rel (0) target = $region65
    $region64: #{tpu_custom_call.1} parent=1 // pred_region
      %125 = dma.done [#allocation11], 512
    $region65: #{tpu_custom_call.1} parent=1 // pred_fallthru
      _
    // Predicated region
    $region66: #{tpu_custom_call.1} parent=1 // pred_check
      _
    $region67: #{tpu_custom_call.1} parent=1 // pred_check_branch
      %127 = sbr.rel (0) target = $region69
    $region68: #{tpu_custom_call.1} parent=1 // pred_region
      %128 = dma.done [#allocation14], 512
    $region69: #{tpu_custom_call.1} parent=1 // pred_fallthru
      _
    %v129 = vld [vmem:[#allocation7] sm:$0xff]
    %v130 = vld [vmem:[#allocation7 + $0x8] sm:$0xff]
    %v131 = vld [vmem:[#allocation9] sm:$0xff]
    %v132 = vld [vmem:[#allocation9 + $0x8] sm:$0xff]
    %v133 = vld [vmem:[#allocation9 + $0x10] sm:$0xff]
    %v134 = vld [vmem:[#allocation9 + $0x18] sm:$0xff]
    %v135 = vld [vmem:[%s4] sm:$0x1]
    %v136 = vld [vmem:[#allocation10] sm:$0xff]
    %v137 = vld [vmem:[#allocation10 + $0x8] sm:$0xff]
    %v138 = vld [vmem:[#allocation10 + $0x10] sm:$0xff]
    %v139 = vld [vmem:[#allocation10 + $0x18] sm:$0xff]
    %v140 = vld [vmem:[#allocation12] sm:$0xff]
    %v141 = vld [vmem:[#allocation12 + $0x8] sm:$0xff]
    %v142 = vld [vmem:[#allocation12 + $0x10] sm:$0xff]
    %v143 = vld [vmem:[#allocation12 + $0x18] sm:$0xff]
    %v144 = vld [vmem:[%s7] sm:$0x1]
    %v145 = vld [vmem:[#allocation13] sm:$0xff]
    %v146 = vld [vmem:[#allocation13 + $0x8] sm:$0xff]
    %v147 = vld [vmem:[#allocation13 + $0x10] sm:$0xff]
    %v148 = vld [vmem:[#allocation13 + $0x18] sm:$0xff]
    %v149 = vld [vmem:[%s9] sm:$0x1]
    %v150 = vld [vmem:[%s10] sm:$0x1]
    %s151 = scalar_lea.vmem %s10, 1
    %v152 = vld [vmem:[%s151] sm:$0x1]
    %v153 = vld [vmem:[%s11] sm:$0x1]
    %s154 = scalar_lea.vmem %s11, 1
    %v155 = vld [vmem:[%s154] sm:$0x1]
    %s156 = sld [smem:[#allocation3]]
    %s157 = scalar_lea.vmem [#allocation4], %s156
    %v158 = vld [vmem:[%s157] sm:$0x1]
    %v159 = vmax.f32 %v158, 0.0
    %vm160 = vcmask 261120
    %v162 = vsel %vm160, %v150, 0
    %164 = vmatprep.subr.mxu0 0.0
    %165 = vmatpush1.msra.mxu0 %v131
    %166 = vmatprep.subr.mxu0 0.0
    %167 = vmatpush1.msra.mxu0 %v132
    %168 = vmatprep.subr.mxu0 0.0
    %169 = vmatpush1.msra.mxu0 %v133
    %170 = vmatprep.subr.mxu0 0.0
    %171 = vmatpush1.msra.mxu0 %v134
    %172 = vmatprep.subr.mxu0 0.0
    %173 = vmatpush1.msra.mxu0 0.0
    %174 = vmatprep.subr.mxu0 0.0
    %175 = vmatpush1.msra.mxu0 0.0
    %176 = vmatprep.subr.mxu0 0.0
    %177 = vmatpush1.msra.mxu0 0.0
    %178 = vmatprep.subr.mxu0 0.0
    %179 = vmatpush1.msra.mxu0 0.0
    %180 = vmatprep.subr.mxu0 0.0
    %181 = vmatpush1.msra.mxu0 0.0
    %182 = vmatprep.subr.mxu0 0.0
    %183 = vmatpush1.msra.mxu0 0.0
    %184 = vmatprep.subr.mxu0 0.0
    %185 = vmatpush1.msra.mxu0 0.0
    %186 = vmatprep.subr.mxu0 0.0
    %187 = vmatpush1.msra.mxu0 0.0
    %188 = vmatprep.subr.mxu0 0.0
    %189 = vmatpush1.msra.mxu0 0.0
    %190 = vmatprep.subr.mxu0 0.0
    %191 = vmatpush1.msra.mxu0 0.0
    %192 = vmatprep.subr.mxu0 0.0
    %193 = vmatpush1.msra.mxu0 0.0
    %194 = vmatprep.subr.mxu0 0.0
    %195 = vmatpush1.msra.mxu0 0.0
    %196 = vmatprep.subr.mxu0 0.0
    %197 = vmatpush1.msra.mxu0 0.0
    %198 = vmatprep.subr.mxu0 0.0
    %199 = vmatpush1.msra.mxu0 0.0
    %200 = vmatprep.subr.mxu0 0.0
    %201 = vmatpush1.msra.mxu0 0.0
    %202 = vmatprep.subr.mxu0 0.0
    %203 = vmatpush1.msra.mxu0 0.0
    %204 = vmatprep.subr.mxu0 0.0
    %205 = vmatpush1.msra.mxu0 0.0
    %206 = vmatprep.subr.mxu0 0.0
    %207 = vmatpush1.msra.mxu0 0.0
    %208 = vmatprep.subr.mxu0 0.0
    %209 = vmatpush1.msra.mxu0 0.0
    %210 = vmatprep.subr.mxu0 0.0
    %211 = vmatpush1.msra.mxu0 0.0
    %212 = vmatprep.subr.mxu0 0.0
    %213 = vmatpush1.msra.mxu0 0.0
    %214 = vmatprep.subr.mxu0 0.0
    %215 = vmatpush1.msra.mxu0 0.0
    %216 = vmatprep.subr.mxu0 0.0
    %217 = vmatpush1.msra.mxu0 0.0
    %218 = vmatprep.subr.mxu0 0.0
    %219 = vmatpush1.msra.mxu0 0.0
    %220 = vmatprep.subr.mxu0 0.0
    %221 = vmatpush1.msra.mxu0 0.0
    %222 = vmatprep.subr.mxu0 0.0
    %223 = vmatpush1.msra.mxu0 0.0
    %224 = vmatprep.subr.mxu0 0.0
    %225 = vmatpush1.msra.mxu0 0.0
    %226 = vmatprep.subr.mxu0 0.0
    %227 = vmatpush1.msra.mxu0 0.0
    %228 = vmatprep.mubr.f32.mxu0 0.0
    %229 = vmatmul.mubr.f32.gmra.mrb[0].mxu0 %v162
    %v230 = vpop.f32.mrb[0].mxu0
    %v231 = vadd.f32 0.0, %v230
    %v232 = vpop.f32.mrb[0].mxu0
    %233 = vdwg.mxu0
    %vm234 = vcmask 130048
    %v236 = vsel %vm234, %v159, 0
    %238 = vmatprep.subr.mxu0 0.0
    %239 = vmatpush1.msra.mxu0 %v129
    %240 = vmatprep.subr.mxu0 0.0
    %241 = vmatpush1.msra.mxu0 %v130
    %242 = vmatprep.subr.mxu0 0.0
    %243 = vmatpush1.msra.mxu0 0.0
    %244 = vmatprep.subr.mxu0 0.0
    %245 = vmatpush1.msra.mxu0 0.0
    %246 = vmatprep.subr.mxu0 0.0
    %247 = vmatpush1.msra.mxu0 0.0
    %248 = vmatprep.subr.mxu0 0.0
    %249 = vmatpush1.msra.mxu0 0.0
    %250 = vmatprep.subr.mxu0 0.0
    %251 = vmatpush1.msra.mxu0 0.0
    %252 = vmatprep.subr.mxu0 0.0
    %253 = vmatpush1.msra.mxu0 0.0
    %254 = vmatprep.subr.mxu0 0.0
    %255 = vmatpush1.msra.mxu0 0.0
    %256 = vmatprep.subr.mxu0 0.0
    %257 = vmatpush1.msra.mxu0 0.0
    %258 = vmatprep.subr.mxu0 0.0
    %259 = vmatpush1.msra.mxu0 0.0
    %260 = vmatprep.subr.mxu0 0.0
    %261 = vmatpush1.msra.mxu0 0.0
    %262 = vmatprep.subr.mxu0 0.0
    %263 = vmatpush1.msra.mxu0 0.0
    %264 = vmatprep.subr.mxu0 0.0
    %265 = vmatpush1.msra.mxu0 0.0
    %266 = vmatprep.subr.mxu0 0.0
    %267 = vmatpush1.msra.mxu0 0.0
    %268 = vmatprep.subr.mxu0 0.0
    %269 = vmatpush1.msra.mxu0 0.0
    %270 = vmatprep.subr.mxu0 0.0
    %271 = vmatpush1.msra.mxu0 0.0
    %272 = vmatprep.subr.mxu0 0.0
    %273 = vmatpush1.msra.mxu0 0.0
    %274 = vmatprep.subr.mxu0 0.0
    %275 = vmatpush1.msra.mxu0 0.0
    %276 = vmatprep.subr.mxu0 0.0
    %277 = vmatpush1.msra.mxu0 0.0
    %278 = vmatprep.subr.mxu0 0.0
    %279 = vmatpush1.msra.mxu0 0.0
    %280 = vmatprep.subr.mxu0 0.0
    %281 = vmatpush1.msra.mxu0 0.0
    %282 = vmatprep.subr.mxu0 0.0
    %283 = vmatpush1.msra.mxu0 0.0
    %284 = vmatprep.subr.mxu0 0.0
    %285 = vmatpush1.msra.mxu0 0.0
    %286 = vmatprep.subr.mxu0 0.0
    %287 = vmatpush1.msra.mxu0 0.0
    %288 = vmatprep.subr.mxu0 0.0
    %289 = vmatpush1.msra.mxu0 0.0
    %290 = vmatprep.subr.mxu0 0.0
    %291 = vmatpush1.msra.mxu0 0.0
    %292 = vmatprep.subr.mxu0 0.0
    %293 = vmatpush1.msra.mxu0 0.0
    %294 = vmatprep.subr.mxu0 0.0
    %295 = vmatpush1.msra.mxu0 0.0
    %296 = vmatprep.subr.mxu0 0.0
    %297 = vmatpush1.msra.mxu0 0.0
    %298 = vmatprep.subr.mxu0 0.0
    %299 = vmatpush1.msra.mxu0 0.0
    %300 = vmatprep.subr.mxu0 0.0
    %301 = vmatpush1.msra.mxu0 0.0
    %302 = vmatprep.mubr.f32.mxu0 0.0
    %303 = vmatmul.mubr.f32.gmra.mrb[0].mxu0 %v236
    %v304 = vpop.f32.mrb[0].mxu0
    %v305 = vadd.f32 %v231, %v304
    %v306 = vpop.f32.mrb[0].mxu0
    %307 = vdwg.mxu0
    %v308 = vadd.f32 %v305, %v135
    %v309 = vxor.u32 %v308, 2147483648
    %v310 = vmul.f32 %v309, 1.442695
    %v311 = vpow.pop %v310
    %v312 = vadd.f32 %v311, 1.0
    %v313 = vrcp.pop %v312
    %v314 = vmul.f32 1.0, %v313
    %v315 = vtanh.pop %v308
    %v317 = vlaneseq
    %v318 = vshrl.u32 %v317, 7
    %v319 = vsub.s32 0, %v318
    %v320 = vrot.slane %v153, %v319
    %321 = vrot.lane.b32.xlu0 %v320, 32
    %v322 = vpop.permute.xlu0 %321
    %v324 = vmul.f32 %v314, %v322
    %326 = vrot.lane.b32.xlu0 %v315, 64
    %v327 = vpop.permute.xlu0 %326
    %v329 = vmul.f32 %v314, %v327
    %331 = vrot.lane.b32.xlu0 %v329, 32
    %v332 = vpop.permute.xlu0 %331
    %v334 = vadd.f32 %v324, %v332
    %v335 = vtanh.pop %v334
    %337 = vrot.lane.b32.xlu0 %v335, 64
    %v338 = vpop.permute.xlu0 %337
    %v340 = vmul.f32 %v314, %v338
    %v342 = vsel %vm160, %v152, 0
    %344 = vmatprep.subr.mxu0 0.0
    %345 = vmatpush1.msra.mxu0 %v140
    %346 = vmatprep.subr.mxu0 0.0
    %347 = vmatpush1.msra.mxu0 %v141
    %348 = vmatprep.subr.mxu0 0.0
    %349 = vmatpush1.msra.mxu0 %v142
    %350 = vmatprep.subr.mxu0 0.0
    %351 = vmatpush1.msra.mxu0 %v143
    %352 = vmatprep.subr.mxu0 0.0
    %353 = vmatpush1.msra.mxu0 0.0
    %354 = vmatprep.subr.mxu0 0.0
    %355 = vmatpush1.msra.mxu0 0.0
    %356 = vmatprep.subr.mxu0 0.0
    %357 = vmatpush1.msra.mxu0 0.0
    %358 = vmatprep.subr.mxu0 0.0
    %359 = vmatpush1.msra.mxu0 0.0
    %360 = vmatprep.subr.mxu0 0.0
    %361 = vmatpush1.msra.mxu0 0.0
    %362 = vmatprep.subr.mxu0 0.0
    %363 = vmatpush1.msra.mxu0 0.0
    %364 = vmatprep.subr.mxu0 0.0
    %365 = vmatpush1.msra.mxu0 0.0
    %366 = vmatprep.subr.mxu0 0.0
    %367 = vmatpush1.msra.mxu0 0.0
    %368 = vmatprep.subr.mxu0 0.0
    %369 = vmatpush1.msra.mxu0 0.0
    %370 = vmatprep.subr.mxu0 0.0
    %371 = vmatpush1.msra.mxu0 0.0
    %372 = vmatprep.subr.mxu0 0.0
    %373 = vmatpush1.msra.mxu0 0.0
    %374 = vmatprep.subr.mxu0 0.0
    %375 = vmatpush1.msra.mxu0 0.0
    %376 = vmatprep.subr.mxu0 0.0
    %377 = vmatpush1.msra.mxu0 0.0
    %378 = vmatprep.subr.mxu0 0.0
    %379 = vmatpush1.msra.mxu0 0.0
    %380 = vmatprep.subr.mxu0 0.0
    %381 = vmatpush1.msra.mxu0 0.0
    %382 = vmatprep.subr.mxu0 0.0
    %383 = vmatpush1.msra.mxu0 0.0
    %384 = vmatprep.subr.mxu0 0.0
    %385 = vmatpush1.msra.mxu0 0.0
    %386 = vmatprep.subr.mxu0 0.0
    %387 = vmatpush1.msra.mxu0 0.0
    %388 = vmatprep.subr.mxu0 0.0
    %389 = vmatpush1.msra.mxu0 0.0
    %390 = vmatprep.subr.mxu0 0.0
    %391 = vmatpush1.msra.mxu0 0.0
    %392 = vmatprep.subr.mxu0 0.0
    %393 = vmatpush1.msra.mxu0 0.0
    %394 = vmatprep.subr.mxu0 0.0
    %395 = vmatpush1.msra.mxu0 0.0
    %396 = vmatprep.subr.mxu0 0.0
    %397 = vmatpush1.msra.mxu0 0.0
    %398 = vmatprep.subr.mxu0 0.0
    %399 = vmatpush1.msra.mxu0 0.0
    %400 = vmatprep.subr.mxu0 0.0
    %401 = vmatpush1.msra.mxu0 0.0
    %402 = vmatprep.subr.mxu0 0.0
    %403 = vmatpush1.msra.mxu0 0.0
    %404 = vmatprep.subr.mxu0 0.0
    %405 = vmatpush1.msra.mxu0 0.0
    %406 = vmatprep.subr.mxu0 0.0
    %407 = vmatpush1.msra.mxu0 0.0
    %408 = vmatprep.mubr.f32.mxu0 0.0
    %409 = vmatmul.mubr.f32.gmra.mrb[0].mxu0 %v342
    %v410 = vpop.f32.mrb[0].mxu0
    %v411 = vadd.f32 0.0, %v410
    %v412 = vpop.f32.mrb[0].mxu0
    %413 = vdwg.mxu0
    %415 = vrot.lane.b32.xlu0 %v340, 32
    %v416 = vpop.permute.xlu0 %415
    %v417 = vsel %vm160, %v416, 0
    %419 = vmatprep.subr.mxu0 0.0
    %420 = vmatpush1.msra.mxu0 %v136
    %421 = vmatprep.subr.mxu0 0.0
    %422 = vmatpush1.msra.mxu0 %v137
    %423 = vmatprep.subr.mxu0 0.0
    %424 = vmatpush1.msra.mxu0 %v138
    %425 = vmatprep.subr.mxu0 0.0
    %426 = vmatpush1.msra.mxu0 %v139
    %427 = vmatprep.subr.mxu0 0.0
    %428 = vmatpush1.msra.mxu0 0.0
    %429 = vmatprep.subr.mxu0 0.0
    %430 = vmatpush1.msra.mxu0 0.0
    %431 = vmatprep.subr.mxu0 0.0
    %432 = vmatpush1.msra.mxu0 0.0
    %433 = vmatprep.subr.mxu0 0.0
    %434 = vmatpush1.msra.mxu0 0.0
    %435 = vmatprep.subr.mxu0 0.0
    %436 = vmatpush1.msra.mxu0 0.0
    %437 = vmatprep.subr.mxu0 0.0
    %438 = vmatpush1.msra.mxu0 0.0
    %439 = vmatprep.subr.mxu0 0.0
    %440 = vmatpush1.msra.mxu0 0.0
    %441 = vmatprep.subr.mxu0 0.0
    %442 = vmatpush1.msra.mxu0 0.0
    %443 = vmatprep.subr.mxu0 0.0
    %444 = vmatpush1.msra.mxu0 0.0
    %445 = vmatprep.subr.mxu0 0.0
    %446 = vmatpush1.msra.mxu0 0.0
    %447 = vmatprep.subr.mxu0 0.0
    %448 = vmatpush1.msra.mxu0 0.0
    %449 = vmatprep.subr.mxu0 0.0
    %450 = vmatpush1.msra.mxu0 0.0
    %451 = vmatprep.subr.mxu0 0.0
    %452 = vmatpush1.msra.mxu0 0.0
    %453 = vmatprep.subr.mxu0 0.0
    %454 = vmatpush1.msra.mxu0 0.0
    %455 = vmatprep.subr.mxu0 0.0
    %456 = vmatpush1.msra.mxu0 0.0
    %457 = vmatprep.subr.mxu0 0.0
    %458 = vmatpush1.msra.mxu0 0.0
    %459 = vmatprep.subr.mxu0 0.0
    %460 = vmatpush1.msra.mxu0 0.0
    %461 = vmatprep.subr.mxu0 0.0
    %462 = vmatpush1.msra.mxu0 0.0
    %463 = vmatprep.subr.mxu0 0.0
    %464 = vmatpush1.msra.mxu0 0.0
    %465 = vmatprep.subr.mxu0 0.0
    %466 = vmatpush1.msra.mxu0 0.0
    %467 = vmatprep.subr.mxu0 0.0
    %468 = vmatpush1.msra.mxu0 0.0
    %469 = vmatprep.subr.mxu0 0.0
    %470 = vmatpush1.msra.mxu0 0.0
    %471 = vmatprep.subr.mxu0 0.0
    %472 = vmatpush1.msra.mxu0 0.0
    %473 = vmatprep.subr.mxu0 0.0
    %474 = vmatpush1.msra.mxu0 0.0
    %475 = vmatprep.subr.mxu0 0.0
    %476 = vmatpush1.msra.mxu0 0.0
    %477 = vmatprep.subr.mxu0 0.0
    %478 = vmatpush1.msra.mxu0 0.0
    %479 = vmatprep.subr.mxu0 0.0
    %480 = vmatpush1.msra.mxu0 0.0
    %481 = vmatprep.subr.mxu0 0.0
    %482 = vmatpush1.msra.mxu0 0.0
    %483 = vmatprep.mubr.f32.mxu0 0.0
    %484 = vmatmul.mubr.f32.gmra.mrb[0].mxu0 %v417
    %v485 = vpop.f32.mrb[0].mxu0
    %v486 = vadd.f32 %v411, %v485
    %v487 = vpop.f32.mrb[0].mxu0
    %488 = vdwg.mxu0
    %v489 = vadd.f32 %v486, %v144
    %v490 = vxor.u32 %v489, 2147483648
    %v491 = vmul.f32 %v490, 1.442695
    %v492 = vpow.pop %v491
    %v493 = vadd.f32 %v492, 1.0
    %v494 = vrcp.pop %v493
    %v495 = vmul.f32 1.0, %v494
    %v496 = vtanh.pop %v489
    %v498 = vlaneseq
    %v499 = vshrl.u32 %v498, 7
    %v500 = vsub.s32 0, %v499
    %v501 = vrot.slane %v155, %v500
    %502 = vrot.lane.b32.xlu0 %v501, 32
    %v503 = vpop.permute.xlu0 %502
    %v505 = vmul.f32 %v495, %v503
    %507 = vrot.lane.b32.xlu0 %v496, 64
    %v508 = vpop.permute.xlu0 %507
    %v510 = vmul.f32 %v495, %v508
    %512 = vrot.lane.b32.xlu0 %v510, 32
    %v513 = vpop.permute.xlu0 %512
    %v515 = vadd.f32 %v505, %v513
    %v516 = vtanh.pop %v515
    %518 = vrot.lane.b32.xlu0 %v516, 64
    %v519 = vpop.permute.xlu0 %518
    %v521 = vmul.f32 %v495, %v519
    %523 = vrot.lane.b32.xlu0 %v521, 32
    %v524 = vpop.permute.xlu0 %523
    %v525 = vsel %vm160, %v524, 0
    %527 = vmatprep.subr.mxu0 0.0
    %528 = vmatpush1.msra.mxu0 %v145
    %529 = vmatprep.subr.mxu0 0.0
    %530 = vmatpush1.msra.mxu0 %v146
    %531 = vmatprep.subr.mxu0 0.0
    %532 = vmatpush1.msra.mxu0 %v147
    %533 = vmatprep.subr.mxu0 0.0
    %534 = vmatpush1.msra.mxu0 %v148
    %535 = vmatprep.subr.mxu0 0.0
    %536 = vmatpush1.msra.mxu0 0.0
    %537 = vmatprep.subr.mxu0 0.0
    %538 = vmatpush1.msra.mxu0 0.0
    %539 = vmatprep.subr.mxu0 0.0
    %540 = vmatpush1.msra.mxu0 0.0
    %541 = vmatprep.subr.mxu0 0.0
    %542 = vmatpush1.msra.mxu0 0.0
    %543 = vmatprep.subr.mxu0 0.0
    %544 = vmatpush1.msra.mxu0 0.0
    %545 = vmatprep.subr.mxu0 0.0
    %546 = vmatpush1.msra.mxu0 0.0
    %547 = vmatprep.subr.mxu0 0.0
    %548 = vmatpush1.msra.mxu0 0.0
    %549 = vmatprep.subr.mxu0 0.0
    %550 = vmatpush1.msra.mxu0 0.0
    %551 = vmatprep.subr.mxu0 0.0
    %552 = vmatpush1.msra.mxu0 0.0
    %553 = vmatprep.subr.mxu0 0.0
    %554 = vmatpush1.msra.mxu0 0.0
    %555 = vmatprep.subr.mxu0 0.0
    %556 = vmatpush1.msra.mxu0 0.0
    %557 = vmatprep.subr.mxu0 0.0
    %558 = vmatpush1.msra.mxu0 0.0
    %559 = vmatprep.subr.mxu0 0.0
    %560 = vmatpush1.msra.mxu0 0.0
    %561 = vmatprep.subr.mxu0 0.0
    %562 = vmatpush1.msra.mxu0 0.0
    %563 = vmatprep.subr.mxu0 0.0
    %564 = vmatpush1.msra.mxu0 0.0
    %565 = vmatprep.subr.mxu0 0.0
    %566 = vmatpush1.msra.mxu0 0.0
    %567 = vmatprep.subr.mxu0 0.0
    %568 = vmatpush1.msra.mxu0 0.0
    %569 = vmatprep.subr.mxu0 0.0
    %570 = vmatpush1.msra.mxu0 0.0
    %571 = vmatprep.subr.mxu0 0.0
    %572 = vmatpush1.msra.mxu0 0.0
    %573 = vmatprep.subr.mxu0 0.0
    %574 = vmatpush1.msra.mxu0 0.0
    %575 = vmatprep.subr.mxu0 0.0
    %576 = vmatpush1.msra.mxu0 0.0
    %577 = vmatprep.subr.mxu0 0.0
    %578 = vmatpush1.msra.mxu0 0.0
    %579 = vmatprep.subr.mxu0 0.0
    %580 = vmatpush1.msra.mxu0 0.0
    %581 = vmatprep.subr.mxu0 0.0
    %582 = vmatpush1.msra.mxu0 0.0
    %583 = vmatprep.subr.mxu0 0.0
    %584 = vmatpush1.msra.mxu0 0.0
    %585 = vmatprep.subr.mxu0 0.0
    %586 = vmatpush1.msra.mxu0 0.0
    %587 = vmatprep.subr.mxu0 0.0
    %588 = vmatpush1.msra.mxu0 0.0
    %589 = vmatprep.subr.mxu0 0.0
    %590 = vmatpush1.msra.mxu0 0.0
    %591 = vmatprep.mubr.f32.mxu0 0.0
    %592 = vmatmul.mubr.f32.gmra.mrb[0].mxu0 %v525
    %v593 = vpop.f32.mrb[0].mxu0
    %v594 = vadd.f32 %v149, %v593
    %v595 = vpop.f32.mrb[0].mxu0
    %596 = vdwg.mxu0
    %vm597 = vcmask 1040384
    %v598 = vsel %vm597, %v594, -inf
    %599 = vmax.xlane.f32.xlu0 %v598
    %v600 = vpop.xlane.xlu0 %599
    %v601 = vsub.f32 %v594, %v600
    %v602 = vmul.f32 %v601, 1.442695
    %v603 = vpow.pop %v602
    %v604 = vsel %vm597, %v603, 0.0
    %605 = vadd.xlane.f32.xlu0 %v604
    %v606 = vpop.xlane.xlu0 %605
    %v607 = vlog2.pop %v606
    %v608 = vmul.f32 %v607, 0.6931472
    %v609 = vadd.f32 %v608, %v600
    %v610 = vsub.f32 %v594, %v609
    %s611 = sld [smem:[#allocation3 + $0x1]]
    %s612 = scalar_lea.vmem [#allocation4], %s611
    %v613 = vld [vmem:[%s612] sm:$0x1]
    %v614 = vmax.f32 %v613, 0.0
    %615 = vmatprep.subr.mxu0 0.0
    %616 = vmatpush1.msra.mxu0 %v131
    %617 = vmatprep.subr.mxu0 0.0
    %618 = vmatpush1.msra.mxu0 %v132
    %619 = vmatprep.subr.mxu0 0.0
    %620 = vmatpush1.msra.mxu0 %v133
    %621 = vmatprep.subr.mxu0 0.0
    %622 = vmatpush1.msra.mxu0 %v134
    %623 = vmatprep.subr.mxu0 0.0
    %624 = vmatpush1.msra.mxu0 0.0
    %625 = vmatprep.subr.mxu0 0.0
    %626 = vmatpush1.msra.mxu0 0.0
    %627 = vmatprep.subr.mxu0 0.0
    %628 = vmatpush1.msra.mxu0 0.0
    %629 = vmatprep.subr.mxu0 0.0
    %630 = vmatpush1.msra.mxu0 0.0
    %631 = vmatprep.subr.mxu0 0.0
    %632 = vmatpush1.msra.mxu0 0.0
    %633 = vmatprep.subr.mxu0 0.0
    %634 = vmatpush1.msra.mxu0 0.0
    %635 = vmatprep.subr.mxu0 0.0
    %636 = vmatpush1.msra.mxu0 0.0
    %637 = vmatprep.subr.mxu0 0.0
    %638 = vmatpush1.msra.mxu0 0.0
    %639 = vmatprep.subr.mxu0 0.0
    %640 = vmatpush1.msra.mxu0 0.0
    %641 = vmatprep.subr.mxu0 0.0
    %642 = vmatpush1.msra.mxu0 0.0
    %643 = vmatprep.subr.mxu0 0.0
    %644 = vmatpush1.msra.mxu0 0.0
    %645 = vmatprep.subr.mxu0 0.0
    %646 = vmatpush1.msra.mxu0 0.0
    %647 = vmatprep.subr.mxu0 0.0
    %648 = vmatpush1.msra.mxu0 0.0
    %649 = vmatprep.subr.mxu0 0.0
    %650 = vmatpush1.msra.mxu0 0.0
    %651 = vmatprep.subr.mxu0 0.0
    %652 = vmatpush1.msra.mxu0 0.0
    %653 = vmatprep.subr.mxu0 0.0
    %654 = vmatpush1.msra.mxu0 0.0
    %655 = vmatprep.subr.mxu0 0.0
    %656 = vmatpush1.msra.mxu0 0.0
    %657 = vmatprep.subr.mxu0 0.0
    %658 = vmatpush1.msra.mxu0 0.0
    %659 = vmatprep.subr.mxu0 0.0
    %660 = vmatpush1.msra.mxu0 0.0
    %661 = vmatprep.subr.mxu0 0.0
    %662 = vmatpush1.msra.mxu0 0.0
    %663 = vmatprep.subr.mxu0 0.0
    %664 = vmatpush1.msra.mxu0 0.0
    %665 = vmatprep.subr.mxu0 0.0
    %666 = vmatpush1.msra.mxu0 0.0
    %667 = vmatprep.subr.mxu0 0.0
    %668 = vmatpush1.msra.mxu0 0.0
    %669 = vmatprep.subr.mxu0 0.0
    %670 = vmatpush1.msra.mxu0 0.0
    %671 = vmatprep.subr.mxu0 0.0
    %672 = vmatpush1.msra.mxu0 0.0
    %673 = vmatprep.subr.mxu0 0.0
    %674 = vmatpush1.msra.mxu0 0.0
    %675 = vmatprep.subr.mxu0 0.0
    %676 = vmatpush1.msra.mxu0 0.0
    %677 = vmatprep.subr.mxu0 0.0
    %678 = vmatpush1.msra.mxu0 0.0
    %679 = vmatprep.mubr.f32.mxu0 0.0
    %680 = vmatmul.mubr.f32.gmra.mrb[0].mxu0 %v417
    %v681 = vpop.f32.mrb[0].mxu0
    %v682 = vadd.f32 0.0, %v681
    %v683 = vpop.f32.mrb[0].mxu0
    %684 = vdwg.mxu0
    %v686 = vsel %vm234, %v614, 0
    %688 = vmatprep.subr.mxu0 0.0
    %689 = vmatpush1.msra.mxu0 %v129
    %690 = vmatprep.subr.mxu0 0.0
    %691 = vmatpush1.msra.mxu0 %v130
    %692 = vmatprep.subr.mxu0 0.0
    %693 = vmatpush1.msra.mxu0 0.0
    %694 = vmatprep.subr.mxu0 0.0
    %695 = vmatpush1.msra.mxu0 0.0
    %696 = vmatprep.subr.mxu0 0.0
    %697 = vmatpush1.msra.mxu0 0.0
    %698 = vmatprep.subr.mxu0 0.0
    %699 = vmatpush1.msra.mxu0 0.0
    %700 = vmatprep.subr.mxu0 0.0
    %701 = vmatpush1.msra.mxu0 0.0
    %702 = vmatprep.subr.mxu0 0.0
    %703 = vmatpush1.msra.mxu0 0.0
    %704 = vmatprep.subr.mxu0 0.0
    %705 = vmatpush1.msra.mxu0 0.0
    %706 = vmatprep.subr.mxu0 0.0
    %707 = vmatpush1.msra.mxu0 0.0
    %708 = vmatprep.subr.mxu0 0.0
    %709 = vmatpush1.msra.mxu0 0.0
    %710 = vmatprep.subr.mxu0 0.0
    %711 = vmatpush1.msra.mxu0 0.0
    %712 = vmatprep.subr.mxu0 0.0
    %713 = vmatpush1.msra.mxu0 0.0
    %714 = vmatprep.subr.mxu0 0.0
    %715 = vmatpush1.msra.mxu0 0.0
    %716 = vmatprep.subr.mxu0 0.0
    %717 = vmatpush1.msra.mxu0 0.0
    %718 = vmatprep.subr.mxu0 0.0
    %719 = vmatpush1.msra.mxu0 0.0
    %720 = vmatprep.subr.mxu0 0.0
    %721 = vmatpush1.msra.mxu0 0.0
    %722 = vmatprep.subr.mxu0 0.0
    %723 = vmatpush1.msra.mxu0 0.0
    %724 = vmatprep.subr.mxu0 0.0
    %725 = vmatpush1.msra.mxu0 0.0
    %726 = vmatprep.subr.mxu0 0.0
    %727 = vmatpush1.msra.mxu0 0.0
    %728 = vmatprep.subr.mxu0 0.0
    %729 = vmatpush1.msra.mxu0 0.0
    %730 = vmatprep.subr.mxu0 0.0
    %731 = vmatpush1.msra.mxu0 0.0
    %732 = vmatprep.subr.mxu0 0.0
    %733 = vmatpush1.msra.mxu0 0.0
    %734 = vmatprep.subr.mxu0 0.0
    %735 = vmatpush1.msra.mxu0 0.0
    %736 = vmatprep.subr.mxu0 0.0
    %737 = vmatpush1.msra.mxu0 0.0
    %738 = vmatprep.subr.mxu0 0.0
    %739 = vmatpush1.msra.mxu0 0.0
    %740 = vmatprep.subr.mxu0 0.0
    %741 = vmatpush1.msra.mxu0 0.0
    %742 = vmatprep.subr.mxu0 0.0
    %743 = vmatpush1.msra.mxu0 0.0
    %744 = vmatprep.subr.mxu0 0.0
    %745 = vmatpush1.msra.mxu0 0.0
    %746 = vmatprep.subr.mxu0 0.0
    %747 = vmatpush1.msra.mxu0 0.0
    %748 = vmatprep.subr.mxu0 0.0
    %749 = vmatpush1.msra.mxu0 0.0
    %750 = vmatprep.subr.mxu0 0.0
    %751 = vmatpush1.msra.mxu0 0.0
    %752 = vmatprep.mubr.f32.mxu0 0.0
    %753 = vmatmul.mubr.f32.gmra.mrb[0].mxu0 %v686
    %v754 = vpop.f32.mrb[0].mxu0
    %v755 = vadd.f32 %v682, %v754
    %v756 = vpop.f32.mrb[0].mxu0
    %757 = vdwg.mxu0
    %v758 = vadd.f32 %v755, %v135
    %v759 = vxor.u32 %v758, 2147483648
    %v760 = vmul.f32 %v759, 1.442695
    %v761 = vpow.pop %v760
    %v762 = vadd.f32 %v761, 1.0
    %v763 = vrcp.pop %v762
    %v764 = vmul.f32 1.0, %v763
    %v765 = vtanh.pop %v758
    %v766 = vmul.f32 %v764, %v334
    %768 = vrot.lane.b32.xlu0 %v765, 64
    %v769 = vpop.permute.xlu0 %768
    %v771 = vmul.f32 %v764, %v769
    %773 = vrot.lane.b32.xlu0 %v771, 32
    %v774 = vpop.permute.xlu0 %773
    %v776 = vadd.f32 %v766, %v774
    %v777 = vtanh.pop %v776
    %779 = vrot.lane.b32.xlu0 %v777, 64
    %v780 = vpop.permute.xlu0 %779
    %v782 = vmul.f32 %v764, %v780
    %783 = vmatprep.subr.mxu0 0.0
    %784 = vmatpush1.msra.mxu0 %v140
    %785 = vmatprep.subr.mxu0 0.0
    %786 = vmatpush1.msra.mxu0 %v141
    %787 = vmatprep.subr.mxu0 0.0
    %788 = vmatpush1.msra.mxu0 %v142
    %789 = vmatprep.subr.mxu0 0.0
    %790 = vmatpush1.msra.mxu0 %v143
    %791 = vmatprep.subr.mxu0 0.0
    %792 = vmatpush1.msra.mxu0 0.0
    %793 = vmatprep.subr.mxu0 0.0
    %794 = vmatpush1.msra.mxu0 0.0
    %795 = vmatprep.subr.mxu0 0.0
    %796 = vmatpush1.msra.mxu0 0.0
    %797 = vmatprep.subr.mxu0 0.0
    %798 = vmatpush1.msra.mxu0 0.0
    %799 = vmatprep.subr.mxu0 0.0
    %800 = vmatpush1.msra.mxu0 0.0
    %801 = vmatprep.subr.mxu0 0.0
    %802 = vmatpush1.msra.mxu0 0.0
    %803 = vmatprep.subr.mxu0 0.0
    %804 = vmatpush1.msra.mxu0 0.0
    %805 = vmatprep.subr.mxu0 0.0
    %806 = vmatpush1.msra.mxu0 0.0
    %807 = vmatprep.subr.mxu0 0.0
    %808 = vmatpush1.msra.mxu0 0.0
    %809 = vmatprep.subr.mxu0 0.0
    %810 = vmatpush1.msra.mxu0 0.0
    %811 = vmatprep.subr.mxu0 0.0
    %812 = vmatpush1.msra.mxu0 0.0
    %813 = vmatprep.subr.mxu0 0.0
    %814 = vmatpush1.msra.mxu0 0.0
    %815 = vmatprep.subr.mxu0 0.0
    %816 = vmatpush1.msra.mxu0 0.0
    %817 = vmatprep.subr.mxu0 0.0
    %818 = vmatpush1.msra.mxu0 0.0
    %819 = vmatprep.subr.mxu0 0.0
    %820 = vmatpush1.msra.mxu0 0.0
    %821 = vmatprep.subr.mxu0 0.0
    %822 = vmatpush1.msra.mxu0 0.0
    %823 = vmatprep.subr.mxu0 0.0
    %824 = vmatpush1.msra.mxu0 0.0
    %825 = vmatprep.subr.mxu0 0.0
    %826 = vmatpush1.msra.mxu0 0.0
    %827 = vmatprep.subr.mxu0 0.0
    %828 = vmatpush1.msra.mxu0 0.0
    %829 = vmatprep.subr.mxu0 0.0
    %830 = vmatpush1.msra.mxu0 0.0
    %831 = vmatprep.subr.mxu0 0.0
    %832 = vmatpush1.msra.mxu0 0.0
    %833 = vmatprep.subr.mxu0 0.0
    %834 = vmatpush1.msra.mxu0 0.0
    %835 = vmatprep.subr.mxu0 0.0
    %836 = vmatpush1.msra.mxu0 0.0
    %837 = vmatprep.subr.mxu0 0.0
    %838 = vmatpush1.msra.mxu0 0.0
    %839 = vmatprep.subr.mxu0 0.0
    %840 = vmatpush1.msra.mxu0 0.0
    %841 = vmatprep.subr.mxu0 0.0
    %842 = vmatpush1.msra.mxu0 0.0
    %843 = vmatprep.subr.mxu0 0.0
    %844 = vmatpush1.msra.mxu0 0.0
    %845 = vmatprep.subr.mxu0 0.0
    %846 = vmatpush1.msra.mxu0 0.0
    %847 = vmatprep.mubr.f32.mxu0 0.0
    %848 = vmatmul.mubr.f32.gmra.mrb[0].mxu0 %v525
    %v849 = vpop.f32.mrb[0].mxu0
    %v850 = vadd.f32 0.0, %v849
    %v851 = vpop.f32.mrb[0].mxu0
    %852 = vdwg.mxu0
    %854 = vrot.lane.b32.xlu0 %v782, 32
    %v855 = vpop.permute.xlu0 %854
    %v856 = vsel %vm160, %v855, 0
    %858 = vmatprep.subr.mxu0 0.0
    %859 = vmatpush1.msra.mxu0 %v136
    %860 = vmatprep.subr.mxu0 0.0
    %861 = vmatpush1.msra.mxu0 %v137
    %862 = vmatprep.subr.mxu0 0.0
    %863 = vmatpush1.msra.mxu0 %v138
    %864 = vmatprep.subr.mxu0 0.0
    %865 = vmatpush1.msra.mxu0 %v139
    %866 = vmatprep.subr.mxu0 0.0
    %867 = vmatpush1.msra.mxu0 0.0
    %868 = vmatprep.subr.mxu0 0.0
    %869 = vmatpush1.msra.mxu0 0.0
    %870 = vmatprep.subr.mxu0 0.0
    %871 = vmatpush1.msra.mxu0 0.0
    %872 = vmatprep.subr.mxu0 0.0
    %873 = vmatpush1.msra.mxu0 0.0
    %874 = vmatprep.subr.mxu0 0.0
    %875 = vmatpush1.msra.mxu0 0.0
    %876 = vmatprep.subr.mxu0 0.0
    %877 = vmatpush1.msra.mxu0 0.0
    %878 = vmatprep.subr.mxu0 0.0
    %879 = vmatpush1.msra.mxu0 0.0
    %880 = vmatprep.subr.mxu0 0.0
    %881 = vmatpush1.msra.mxu0 0.0
    %882 = vmatprep.subr.mxu0 0.0
    %883 = vmatpush1.msra.mxu0 0.0
    %884 = vmatprep.subr.mxu0 0.0
    %885 = vmatpush1.msra.mxu0 0.0
    %886 = vmatprep.subr.mxu0 0.0
    %887 = vmatpush1.msra.mxu0 0.0
    %888 = vmatprep.subr.mxu0 0.0
    %889 = vmatpush1.msra.mxu0 0.0
    %890 = vmatprep.subr.mxu0 0.0
    %891 = vmatpush1.msra.mxu0 0.0
    %892 = vmatprep.subr.mxu0 0.0
    %893 = vmatpush1.msra.mxu0 0.0
    %894 = vmatprep.subr.mxu0 0.0
    %895 = vmatpush1.msra.mxu0 0.0
    %896 = vmatprep.subr.mxu0 0.0
    %897 = vmatpush1.msra.mxu0 0.0
    %898 = vmatprep.subr.mxu0 0.0
    %899 = vmatpush1.msra.mxu0 0.0
    %900 = vmatprep.subr.mxu0 0.0
    %901 = vmatpush1.msra.mxu0 0.0
    %902 = vmatprep.subr.mxu0 0.0
    %903 = vmatpush1.msra.mxu0 0.0
    %904 = vmatprep.subr.mxu0 0.0
    %905 = vmatpush1.msra.mxu0 0.0
    %906 = vmatprep.subr.mxu0 0.0
    %907 = vmatpush1.msra.mxu0 0.0
    %908 = vmatprep.subr.mxu0 0.0
    %909 = vmatpush1.msra.mxu0 0.0
    %910 = vmatprep.subr.mxu0 0.0
    %911 = vmatpush1.msra.mxu0 0.0
    %912 = vmatprep.subr.mxu0 0.0
    %913 = vmatpush1.msra.mxu0 0.0
    %914 = vmatprep.subr.mxu0 0.0
    %915 = vmatpush1.msra.mxu0 0.0
    %916 = vmatprep.subr.mxu0 0.0
    %917 = vmatpush1.msra.mxu0 0.0
    %918 = vmatprep.subr.mxu0 0.0
    %919 = vmatpush1.msra.mxu0 0.0
    %920 = vmatprep.subr.mxu0 0.0
    %921 = vmatpush1.msra.mxu0 0.0
    %922 = vmatprep.mubr.f32.mxu0 0.0
    %923 = vmatmul.mubr.f32.gmra.mrb[0].mxu0 %v856
    %v924 = vpop.f32.mrb[0].mxu0
    %v925 = vadd.f32 %v850, %v924
    %v926 = vpop.f32.mrb[0].mxu0
    %927 = vdwg.mxu0
    %v928 = vadd.f32 %v925, %v144
    %v929 = vxor.u32 %v928, 2147483648
    %v930 = vmul.f32 %v929, 1.442695
    %v931 = vpow.pop %v930
    %v932 = vadd.f32 %v931, 1.0
    %v933 = vrcp.pop %v932
    %v934 = vmul.f32 1.0, %v933
    %v935 = vtanh.pop %v928
    %v936 = vmul.f32 %v934, %v515
    %938 = vrot.lane.b32.xlu0 %v935, 64
    %v939 = vpop.permute.xlu0 %938
    %v941 = vmul.f32 %v934, %v939
    %943 = vrot.lane.b32.xlu0 %v941, 32
    %v944 = vpop.permute.xlu0 %943
    %v946 = vadd.f32 %v936, %v944
    %v947 = vtanh.pop %v946
    %949 = vrot.lane.b32.xlu0 %v947, 64
    %v950 = vpop.permute.xlu0 %949
    %v952 = vmul.f32 %v934, %v950
    %954 = vrot.lane.b32.xlu0 %v952, 32
    %v955 = vpop.permute.xlu0 %954
    %v956 = vsel %vm160, %v955, 0
    %958 = vmatprep.subr.mxu0 0.0
    %959 = vmatpush1.msra.mxu0 %v145
    %960 = vmatprep.subr.mxu0 0.0
    %961 = vmatpush1.msra.mxu0 %v146
    %962 = vmatprep.subr.mxu0 0.0
    %963 = vmatpush1.msra.mxu0 %v147
    %964 = vmatprep.subr.mxu0 0.0
    %965 = vmatpush1.msra.mxu0 %v148
    %966 = vmatprep.subr.mxu0 0.0
    %967 = vmatpush1.msra.mxu0 0.0
    %968 = vmatprep.subr.mxu0 0.0
    %969 = vmatpush1.msra.mxu0 0.0
    %970 = vmatprep.subr.mxu0 0.0
    %971 = vmatpush1.msra.mxu0 0.0
    %972 = vmatprep.subr.mxu0 0.0
    %973 = vmatpush1.msra.mxu0 0.0
    %974 = vmatprep.subr.mxu0 0.0
    %975 = vmatpush1.msra.mxu0 0.0
    %976 = vmatprep.subr.mxu0 0.0
    %977 = vmatpush1.msra.mxu0 0.0
    %978 = vmatprep.subr.mxu0 0.0
    %979 = vmatpush1.msra.mxu0 0.0
    %980 = vmatprep.subr.mxu0 0.0
    %981 = vmatpush1.msra.mxu0 0.0
    %982 = vmatprep.subr.mxu0 0.0
    %983 = vmatpush1.msra.mxu0 0.0
    %984 = vmatprep.subr.mxu0 0.0
    %985 = vmatpush1.msra.mxu0 0.0
    %986 = vmatprep.subr.mxu0 0.0
    %987 = vmatpush1.msra.mxu0 0.0
    %988 = vmatprep.subr.mxu0 0.0
    %989 = vmatpush1.msra.mxu0 0.0
    %990 = vmatprep.subr.mxu0 0.0
    %991 = vmatpush1.msra.mxu0 0.0
    %992 = vmatprep.subr.mxu0 0.0
    %993 = vmatpush1.msra.mxu0 0.0
    %994 = vmatprep.subr.mxu0 0.0
    %995 = vmatpush1.msra.mxu0 0.0
    %996 = vmatprep.subr.mxu0 0.0
    %997 = vmatpush1.msra.mxu0 0.0
    %998 = vmatprep.subr.mxu0 0.0
    %999 = vmatpush1.msra.mxu0 0.0
    %1000 = vmatprep.subr.mxu0 0.0
    %1001 = vmatpush1.msra.mxu0 0.0
    %1002 = vmatprep.subr.mxu0 0.0
    %1003 = vmatpush1.msra.mxu0 0.0
    %1004 = vmatprep.subr.mxu0 0.0
    %1005 = vmatpush1.msra.mxu0 0.0
    %1006 = vmatprep.subr.mxu0 0.0
    %1007 = vmatpush1.msra.mxu0 0.0
    %1008 = vmatprep.subr.mxu0 0.0
    %1009 = vmatpush1.msra.mxu0 0.0
    %1010 = vmatprep.subr.mxu0 0.0
    %1011 = vmatpush1.msra.mxu0 0.0
    %1012 = vmatprep.subr.mxu0 0.0
    %1013 = vmatpush1.msra.mxu0 0.0
    %1014 = vmatprep.subr.mxu0 0.0
    %1015 = vmatpush1.msra.mxu0 0.0
    %1016 = vmatprep.subr.mxu0 0.0
    %1017 = vmatpush1.msra.mxu0 0.0
    %1018 = vmatprep.subr.mxu0 0.0
    %1019 = vmatpush1.msra.mxu0 0.0
    %1020 = vmatprep.subr.mxu0 0.0
    %1021 = vmatpush1.msra.mxu0 0.0
    %1022 = vmatprep.mubr.f32.mxu0 0.0
    %1023 = vmatmul.mubr.f32.gmra.mrb[0].mxu0 %v956
    %v1024 = vpop.f32.mrb[0].mxu0
    %v1025 = vadd.f32 %v149, %v1024
    %v1026 = vpop.f32.mrb[0].mxu0
    %1027 = vdwg.mxu0
    %v1028 = vsel %vm597, %v1025, -inf
    %1029 = vmax.xlane.f32.xlu0 %v1028
    %v1030 = vpop.xlane.xlu0 %1029
    %v1031 = vsub.f32 %v1025, %v1030
    %v1032 = vmul.f32 %v1031, 1.442695
    %v1033 = vpow.pop %v1032
    %v1034 = vsel %vm597, %v1033, 0.0
    %1035 = vadd.xlane.f32.xlu0 %v1034
    %v1036 = vpop.xlane.xlu0 %1035
    %v1037 = vlog2.pop %v1036
    %v1038 = vmul.f32 %v1037, 0.6931472
    %v1039 = vadd.f32 %v1038, %v1030
    %v1040 = vsub.f32 %v1025, %v1039
    %s1041 = sld [smem:[#allocation3 + $0x2]]
    %s1042 = scalar_lea.vmem [#allocation4], %s1041
    %v1043 = vld [vmem:[%s1042] sm:$0x1]
    %v1044 = vmax.f32 %v1043, 0.0
    %1045 = vmatprep.subr.mxu0 0.0
    %1046 = vmatpush1.msra.mxu0 %v131
    %1047 = vmatprep.subr.mxu0 0.0
    %1048 = vmatpush1.msra.mxu0 %v132
    %1049 = vmatprep.subr.mxu0 0.0
    %1050 = vmatpush1.msra.mxu0 %v133
    %1051 = vmatprep.subr.mxu0 0.0
    %1052 = vmatpush1.msra.mxu0 %v134
    %1053 = vmatprep.subr.mxu0 0.0
    %1054 = vmatpush1.msra.mxu0 0.0
    %1055 = vmatprep.subr.mxu0 0.0
    %1056 = vmatpush1.msra.mxu0 0.0
    %1057 = vmatprep.subr.mxu0 0.0
    %1058 = vmatpush1.msra.mxu0 0.0
    %1059 = vmatprep.subr.mxu0 0.0
    %1060 = vmatpush1.msra.mxu0 0.0
    %1061 = vmatprep.subr.mxu0 0.0
    %1062 = vmatpush1.msra.mxu0 0.0
    %1063 = vmatprep.subr.mxu0 0.0
    %1064 = vmatpush1.msra.mxu0 0.0
    %1065 = vmatprep.subr.mxu0 0.0
    %1066 = vmatpush1.msra.mxu0 0.0
    %1067 = vmatprep.subr.mxu0 0.0
    %1068 = vmatpush1.msra.mxu0 0.0
    %1069 = vmatprep.subr.mxu0 0.0
    %1070 = vmatpush1.msra.mxu0 0.0
    %1071 = vmatprep.subr.mxu0 0.0
    %1072 = vmatpush1.msra.mxu0 0.0
    %1073 = vmatprep.subr.mxu0 0.0
    %1074 = vmatpush1.msra.mxu0 0.0
    %1075 = vmatprep.subr.mxu0 0.0
    %1076 = vmatpush1.msra.mxu0 0.0
    %1077 = vmatprep.subr.mxu0 0.0
    %1078 = vmatpush1.msra.mxu0 0.0
    %1079 = vmatprep.subr.mxu0 0.0
    %1080 = vmatpush1.msra.mxu0 0.0
    %1081 = vmatprep.subr.mxu0 0.0
    %1082 = vmatpush1.msra.mxu0 0.0
    %1083 = vmatprep.subr.mxu0 0.0
    %1084 = vmatpush1.msra.mxu0 0.0
    %1085 = vmatprep.subr.mxu0 0.0
    %1086 = vmatpush1.msra.mxu0 0.0
    %1087 = vmatprep.subr.mxu0 0.0
    %1088 = vmatpush1.msra.mxu0 0.0
    %1089 = vmatprep.subr.mxu0 0.0
    %1090 = vmatpush1.msra.mxu0 0.0
    %1091 = vmatprep.subr.mxu0 0.0
    %1092 = vmatpush1.msra.mxu0 0.0
    %1093 = vmatprep.subr.mxu0 0.0
    %1094 = vmatpush1.msra.mxu0 0.0
    %1095 = vmatprep.subr.mxu0 0.0
    %1096 = vmatpush1.msra.mxu0 0.0
    %1097 = vmatprep.subr.mxu0 0.0
    %1098 = vmatpush1.msra.mxu0 0.0
    %1099 = vmatprep.subr.mxu0 0.0
    %1100 = vmatpush1.msra.mxu0 0.0
    %1101 = vmatprep.subr.mxu0 0.0
    %1102 = vmatpush1.msra.mxu0 0.0
    %1103 = vmatprep.subr.mxu0 0.0
    %1104 = vmatpush1.msra.mxu0 0.0
    %1105 = vmatprep.subr.mxu0 0.0
    %1106 = vmatpush1.msra.mxu0 0.0
    %1107 = vmatprep.subr.mxu0 0.0
    %1108 = vmatpush1.msra.mxu0 0.0
    %1109 = vmatprep.mubr.f32.mxu0 0.0
    %1110 = vmatmul.mubr.f32.gmra.mrb[0].mxu0 %v856
    %v1111 = vpop.f32.mrb[0].mxu0
    %v1112 = vadd.f32 0.0, %v1111
    %v1113 = vpop.f32.mrb[0].mxu0
    %1114 = vdwg.mxu0
    %v1116 = vsel %vm234, %v1044, 0
    %1118 = vmatprep.subr.mxu0 0.0
    %1119 = vmatpush1.msra.mxu0 %v129
    %1120 = vmatprep.subr.mxu0 0.0
    %1121 = vmatpush1.msra.mxu0 %v130
    %1122 = vmatprep.subr.mxu0 0.0
    %1123 = vmatpush1.msra.mxu0 0.0
    %1124 = vmatprep.subr.mxu0 0.0
    %1125 = vmatpush1.msra.mxu0 0.0
    %1126 = vmatprep.subr.mxu0 0.0
    %1127 = vmatpush1.msra.mxu0 0.0
    %1128 = vmatprep.subr.mxu0 0.0
    %1129 = vmatpush1.msra.mxu0 0.0
    %1130 = vmatprep.subr.mxu0 0.0
    %1131 = vmatpush1.msra.mxu0 0.0
    %1132 = vmatprep.subr.mxu0 0.0
    %1133 = vmatpush1.msra.mxu0 0.0
    %1134 = vmatprep.subr.mxu0 0.0
    %1135 = vmatpush1.msra.mxu0 0.0
    %1136 = vmatprep.subr.mxu0 0.0
    %1137 = vmatpush1.msra.mxu0 0.0
    %1138 = vmatprep.subr.mxu0 0.0
    %1139 = vmatpush1.msra.mxu0 0.0
    %1140 = vmatprep.subr.mxu0 0.0
    %1141 = vmatpush1.msra.mxu0 0.0
    %1142 = vmatprep.subr.mxu0 0.0
    %1143 = vmatpush1.msra.mxu0 0.0
    %1144 = vmatprep.subr.mxu0 0.0
    %1145 = vmatpush1.msra.mxu0 0.0
    %1146 = vmatprep.subr.mxu0 0.0
    %1147 = vmatpush1.msra.mxu0 0.0
    %1148 = vmatprep.subr.mxu0 0.0
    %1149 = vmatpush1.msra.mxu0 0.0
    %1150 = vmatprep.subr.mxu0 0.0
    %1151 = vmatpush1.msra.mxu0 0.0
    %1152 = vmatprep.subr.mxu0 0.0
    %1153 = vmatpush1.msra.mxu0 0.0
    %1154 = vmatprep.subr.mxu0 0.0
    %1155 = vmatpush1.msra.mxu0 0.0
    %1156 = vmatprep.subr.mxu0 0.0
    %1157 = vmatpush1.msra.mxu0 0.0
    %1158 = vmatprep.subr.mxu0 0.0
    %1159 = vmatpush1.msra.mxu0 0.0
    %1160 = vmatprep.subr.mxu0 0.0
    %1161 = vmatpush1.msra.mxu0 0.0
    %1162 = vmatprep.subr.mxu0 0.0
    %1163 = vmatpush1.msra.mxu0 0.0
    %1164 = vmatprep.subr.mxu0 0.0
    %1165 = vmatpush1.msra.mxu0 0.0
    %1166 = vmatprep.subr.mxu0 0.0
    %1167 = vmatpush1.msra.mxu0 0.0
    %1168 = vmatprep.subr.mxu0 0.0
    %1169 = vmatpush1.msra.mxu0 0.0
    %1170 = vmatprep.subr.mxu0 0.0
    %1171 = vmatpush1.msra.mxu0 0.0
    %1172 = vmatprep.subr.mxu0 0.0
    %1173 = vmatpush1.msra.mxu0 0.0
    %1174 = vmatprep.subr.mxu0 0.0
    %1175 = vmatpush1.msra.mxu0 0.0
    %1176 = vmatprep.subr.mxu0 0.0
    %1177 = vmatpush1.msra.mxu0 0.0
    %1178 = vmatprep.subr.mxu0 0.0
    %1179 = vmatpush1.msra.mxu0 0.0
    %1180 = vmatprep.subr.mxu0 0.0
    %1181 = vmatpush1.msra.mxu0 0.0
    %1182 = vmatprep.mubr.f32.mxu0 0.0
    %1183 = vmatmul.mubr.f32.gmra.mrb[0].mxu0 %v1116
    %v1184 = vpop.f32.mrb[0].mxu0
    %v1185 = vadd.f32 %v1112, %v1184
    %v1186 = vpop.f32.mrb[0].mxu0
    %1187 = vdwg.mxu0
    %v1188 = vadd.f32 %v1185, %v135
    %v1189 = vxor.u32 %v1188, 2147483648
    %v1190 = vmul.f32 %v1189, 1.442695
    %v1191 = vpow.pop %v1190
    %v1192 = vadd.f32 %v1191, 1.0
    %v1193 = vrcp.pop %v1192
    %v1194 = vmul.f32 1.0, %v1193
    %v1195 = vtanh.pop %v1188
    %v1196 = vmul.f32 %v1194, %v776
    %1198 = vrot.lane.b32.xlu0 %v1195, 64
    %v1199 = vpop.permute.xlu0 %1198
    %v1201 = vmul.f32 %v1194, %v1199
    %1203 = vrot.lane.b32.xlu0 %v1201, 32
    %v1204 = vpop.permute.xlu0 %1203
    %v1206 = vadd.f32 %v1196, %v1204
    %v1207 = vtanh.pop %v1206
    %1209 = vrot.lane.b32.xlu0 %v1207, 64
    %v1210 = vpop.permute.xlu0 %1209
    %v1212 = vmul.f32 %v1194, %v1210
    %1213 = vmatprep.subr.mxu0 0.0
    %1214 = vmatpush1.msra.mxu0 %v140
    %1215 = vmatprep.subr.mxu0 0.0
    %1216 = vmatpush1.msra.mxu0 %v141
    %1217 = vmatprep.subr.mxu0 0.0
    %1218 = vmatpush1.msra.mxu0 %v142
    %1219 = vmatprep.subr.mxu0 0.0
    %1220 = vmatpush1.msra.mxu0 %v143
    %1221 = vmatprep.subr.mxu0 0.0
    %1222 = vmatpush1.msra.mxu0 0.0
    %1223 = vmatprep.subr.mxu0 0.0
    %1224 = vmatpush1.msra.mxu0 0.0
    %1225 = vmatprep.subr.mxu0 0.0
    %1226 = vmatpush1.msra.mxu0 0.0
    %1227 = vmatprep.subr.mxu0 0.0
    %1228 = vmatpush1.msra.mxu0 0.0
    %1229 = vmatprep.subr.mxu0 0.0
    %1230 = vmatpush1.msra.mxu0 0.0
    %1231 = vmatprep.subr.mxu0 0.0
    %1232 = vmatpush1.msra.mxu0 0.0
    %1233 = vmatprep.subr.mxu0 0.0
    %1234 = vmatpush1.msra.mxu0 0.0
    %1235 = vmatprep.subr.mxu0 0.0
    %1236 = vmatpush1.msra.mxu0 0.0
    %1237 = vmatprep.subr.mxu0 0.0
    %1238 = vmatpush1.msra.mxu0 0.0
    %1239 = vmatprep.subr.mxu0 0.0
    %1240 = vmatpush1.msra.mxu0 0.0
    %1241 = vmatprep.subr.mxu0 0.0
    %1242 = vmatpush1.msra.mxu0 0.0
    %1243 = vmatprep.subr.mxu0 0.0
    %1244 = vmatpush1.msra.mxu0 0.0
    %1245 = vmatprep.subr.mxu0 0.0
    %1246 = vmatpush1.msra.mxu0 0.0
    %1247 = vmatprep.subr.mxu0 0.0
    %1248 = vmatpush1.msra.mxu0 0.0
    %1249 = vmatprep.subr.mxu0 0.0
    %1250 = vmatpush1.msra.mxu0 0.0
    %1251 = vmatprep.subr.mxu0 0.0
    %1252 = vmatpush1.msra.mxu0 0.0
    %1253 = vmatprep.subr.mxu0 0.0
    %1254 = vmatpush1.msra.mxu0 0.0
    %1255 = vmatprep.subr.mxu0 0.0
    %1256 = vmatpush1.msra.mxu0 0.0
    %1257 = vmatprep.subr.mxu0 0.0
    %1258 = vmatpush1.msra.mxu0 0.0
    %1259 = vmatprep.subr.mxu0 0.0
    %1260 = vmatpush1.msra.mxu0 0.0
    %1261 = vmatprep.subr.mxu0 0.0
    %1262 = vmatpush1.msra.mxu0 0.0
    %1263 = vmatprep.subr.mxu0 0.0
    %1264 = vmatpush1.msra.mxu0 0.0
    %1265 = vmatprep.subr.mxu0 0.0
    %1266 = vmatpush1.msra.mxu0 0.0
    %1267 = vmatprep.subr.mxu0 0.0
    %1268 = vmatpush1.msra.mxu0 0.0
    %1269 = vmatprep.subr.mxu0 0.0
    %1270 = vmatpush1.msra.mxu0 0.0
    %1271 = vmatprep.subr.mxu0 0.0
    %1272 = vmatpush1.msra.mxu0 0.0
    %1273 = vmatprep.subr.mxu0 0.0
    %1274 = vmatpush1.msra.mxu0 0.0
    %1275 = vmatprep.subr.mxu0 0.0
    %1276 = vmatpush1.msra.mxu0 0.0
    %1277 = vmatprep.mubr.f32.mxu0 0.0
    %1278 = vmatmul.mubr.f32.gmra.mrb[0].mxu0 %v956
    %v1279 = vpop.f32.mrb[0].mxu0
    %v1280 = vadd.f32 0.0, %v1279
    %v1281 = vpop.f32.mrb[0].mxu0
    %1282 = vdwg.mxu0
    %1284 = vrot.lane.b32.xlu0 %v1212, 32
    %v1285 = vpop.permute.xlu0 %1284
    %v1286 = vsel %vm160, %v1285, 0
    %1288 = vmatprep.subr.mxu0 0.0
    %1289 = vmatpush1.msra.mxu0 %v136
    %1290 = vmatprep.subr.mxu0 0.0
    %1291 = vmatpush1.msra.mxu0 %v137
    %1292 = vmatprep.subr.mxu0 0.0
    %1293 = vmatpush1.msra.mxu0 %v138
    %1294 = vmatprep.subr.mxu0 0.0
    %1295 = vmatpush1.msra.mxu0 %v139
    %1296 = vmatprep.subr.mxu0 0.0
    %1297 = vmatpush1.msra.mxu0 0.0
    %1298 = vmatprep.subr.mxu0 0.0
    %1299 = vmatpush1.msra.mxu0 0.0
    %1300 = vmatprep.subr.mxu0 0.0
    %1301 = vmatpush1.msra.mxu0 0.0
    %1302 = vmatprep.subr.mxu0 0.0
    %1303 = vmatpush1.msra.mxu0 0.0
    %1304 = vmatprep.subr.mxu0 0.0
    %1305 = vmatpush1.msra.mxu0 0.0
    %1306 = vmatprep.subr.mxu0 0.0
    %1307 = vmatpush1.msra.mxu0 0.0
    %1308 = vmatprep.subr.mxu0 0.0
    %1309 = vmatpush1.msra.mxu0 0.0
    %1310 = vmatprep.subr.mxu0 0.0
    %1311 = vmatpush1.msra.mxu0 0.0
    %1312 = vmatprep.subr.mxu0 0.0
    %1313 = vmatpush1.msra.mxu0 0.0
    %1314 = vmatprep.subr.mxu0 0.0
    %1315 = vmatpush1.msra.mxu0 0.0
    %1316 = vmatprep.subr.mxu0 0.0
    %1317 = vmatpush1.msra.mxu0 0.0
    %1318 = vmatprep.subr.mxu0 0.0
    %1319 = vmatpush1.msra.mxu0 0.0
    %1320 = vmatprep.subr.mxu0 0.0
    %1321 = vmatpush1.msra.mxu0 0.0
    %1322 = vmatprep.subr.mxu0 0.0
    %1323 = vmatpush1.msra.mxu0 0.0
    %1324 = vmatprep.subr.mxu0 0.0
    %1325 = vmatpush1.msra.mxu0 0.0
    %1326 = vmatprep.subr.mxu0 0.0
    %1327 = vmatpush1.msra.mxu0 0.0
    %1328 = vmatprep.subr.mxu0 0.0
    %1329 = vmatpush1.msra.mxu0 0.0
    %1330 = vmatprep.subr.mxu0 0.0
    %1331 = vmatpush1.msra.mxu0 0.0
    %1332 = vmatprep.subr.mxu0 0.0
    %1333 = vmatpush1.msra.mxu0 0.0
    %1334 = vmatprep.subr.mxu0 0.0
    %1335 = vmatpush1.msra.mxu0 0.0
    %1336 = vmatprep.subr.mxu0 0.0
    %1337 = vmatpush1.msra.mxu0 0.0
    %1338 = vmatprep.subr.mxu0 0.0
    %1339 = vmatpush1.msra.mxu0 0.0
    %1340 = vmatprep.subr.mxu0 0.0
    %1341 = vmatpush1.msra.mxu0 0.0
    %1342 = vmatprep.subr.mxu0 0.0
    %1343 = vmatpush1.msra.mxu0 0.0
    %1344 = vmatprep.subr.mxu0 0.0
    %1345 = vmatpush1.msra.mxu0 0.0
    %1346 = vmatprep.subr.mxu0 0.0
    %1347 = vmatpush1.msra.mxu0 0.0
    %1348 = vmatprep.subr.mxu0 0.0
    %1349 = vmatpush1.msra.mxu0 0.0
    %1350 = vmatprep.subr.mxu0 0.0
    %1351 = vmatpush1.msra.mxu0 0.0
    %1352 = vmatprep.mubr.f32.mxu0 0.0
    %1353 = vmatmul.mubr.f32.gmra.mrb[0].mxu0 %v1286
    %v1354 = vpop.f32.mrb[0].mxu0
    %v1355 = vadd.f32 %v1280, %v1354
    %v1356 = vpop.f32.mrb[0].mxu0
    %1357 = vdwg.mxu0
    %v1358 = vadd.f32 %v1355, %v144
    %v1359 = vxor.u32 %v1358, 2147483648
    %v1360 = vmul.f32 %v1359, 1.442695
    %v1361 = vpow.pop %v1360
    %v1362 = vadd.f32 %v1361, 1.0
    %v1363 = vrcp.pop %v1362
    %v1364 = vmul.f32 1.0, %v1363
    %v1365 = vtanh.pop %v1358
    %v1366 = vmul.f32 %v1364, %v946
    %1368 = vrot.lane.b32.xlu0 %v1365, 64
    %v1369 = vpop.permute.xlu0 %1368
    %v1371 = vmul.f32 %v1364, %v1369
    %1373 = vrot.lane.b32.xlu0 %v1371, 32
    %v1374 = vpop.permute.xlu0 %1373
    %v1376 = vadd.f32 %v1366, %v1374
    %v1377 = vtanh.pop %v1376
    %1379 = vrot.lane.b32.xlu0 %v1377, 64
    %v1380 = vpop.permute.xlu0 %1379
    %v1382 = vmul.f32 %v1364, %v1380
    %1384 = vrot.lane.b32.xlu0 %v1382, 32
    %v1385 = vpop.permute.xlu0 %1384
    %v1386 = vsel %vm160, %v1385, 0
    %1388 = vmatprep.subr.mxu0 0.0
    %1389 = vmatpush1.msra.mxu0 %v145
    %1390 = vmatprep.subr.mxu0 0.0
    %1391 = vmatpush1.msra.mxu0 %v146
    %1392 = vmatprep.subr.mxu0 0.0
    %1393 = vmatpush1.msra.mxu0 %v147
    %1394 = vmatprep.subr.mxu0 0.0
    %1395 = vmatpush1.msra.mxu0 %v148
    %1396 = vmatprep.subr.mxu0 0.0
    %1397 = vmatpush1.msra.mxu0 0.0
    %1398 = vmatprep.subr.mxu0 0.0
    %1399 = vmatpush1.msra.mxu0 0.0
    %1400 = vmatprep.subr.mxu0 0.0
    %1401 = vmatpush1.msra.mxu0 0.0
    %1402 = vmatprep.subr.mxu0 0.0
    %1403 = vmatpush1.msra.mxu0 0.0
    %1404 = vmatprep.subr.mxu0 0.0
    %1405 = vmatpush1.msra.mxu0 0.0
    %1406 = vmatprep.subr.mxu0 0.0
    %1407 = vmatpush1.msra.mxu0 0.0
    %1408 = vmatprep.subr.mxu0 0.0
    %1409 = vmatpush1.msra.mxu0 0.0
    %1410 = vmatprep.subr.mxu0 0.0
    %1411 = vmatpush1.msra.mxu0 0.0
    %1412 = vmatprep.subr.mxu0 0.0
    %1413 = vmatpush1.msra.mxu0 0.0
    %1414 = vmatprep.subr.mxu0 0.0
    %1415 = vmatpush1.msra.mxu0 0.0
    %1416 = vmatprep.subr.mxu0 0.0
    %1417 = vmatpush1.msra.mxu0 0.0
    %1418 = vmatprep.subr.mxu0 0.0
    %1419 = vmatpush1.msra.mxu0 0.0
    %1420 = vmatprep.subr.mxu0 0.0
    %1421 = vmatpush1.msra.mxu0 0.0
    %1422 = vmatprep.subr.mxu0 0.0
    %1423 = vmatpush1.msra.mxu0 0.0
    %1424 = vmatprep.subr.mxu0 0.0
    %1425 = vmatpush1.msra.mxu0 0.0
    %1426 = vmatprep.subr.mxu0 0.0
    %1427 = vmatpush1.msra.mxu0 0.0
    %1428 = vmatprep.subr.mxu0 0.0
    %1429 = vmatpush1.msra.mxu0 0.0
    %1430 = vmatprep.subr.mxu0 0.0
    %1431 = vmatpush1.msra.mxu0 0.0
    %1432 = vmatprep.subr.mxu0 0.0
    %1433 = vmatpush1.msra.mxu0 0.0
    %1434 = vmatprep.subr.mxu0 0.0
    %1435 = vmatpush1.msra.mxu0 0.0
    %1436 = vmatprep.subr.mxu0 0.0
    %1437 = vmatpush1.msra.mxu0 0.0
    %1438 = vmatprep.subr.mxu0 0.0
    %1439 = vmatpush1.msra.mxu0 0.0
    %1440 = vmatprep.subr.mxu0 0.0
    %1441 = vmatpush1.msra.mxu0 0.0
    %1442 = vmatprep.subr.mxu0 0.0
    %1443 = vmatpush1.msra.mxu0 0.0
    %1444 = vmatprep.subr.mxu0 0.0
    %1445 = vmatpush1.msra.mxu0 0.0
    %1446 = vmatprep.subr.mxu0 0.0
    %1447 = vmatpush1.msra.mxu0 0.0
    %1448 = vmatprep.subr.mxu0 0.0
    %1449 = vmatpush1.msra.mxu0 0.0
    %1450 = vmatprep.subr.mxu0 0.0
    %1451 = vmatpush1.msra.mxu0 0.0
    %1452 = vmatprep.mubr.f32.mxu0 0.0
    %1453 = vmatmul.mubr.f32.gmra.mrb[0].mxu0 %v1386
    %v1454 = vpop.f32.mrb[0].mxu0
    %v1455 = vadd.f32 %v149, %v1454
    %v1456 = vpop.f32.mrb[0].mxu0
    %1457 = vdwg.mxu0
    %v1458 = vsel %vm597, %v1455, -inf
    %1459 = vmax.xlane.f32.xlu0 %v1458
    %v1460 = vpop.xlane.xlu0 %1459
    %v1461 = vsub.f32 %v1455, %v1460
    %v1462 = vmul.f32 %v1461, 1.442695
    %v1463 = vpow.pop %v1462
    %v1464 = vsel %vm597, %v1463, 0.0
    %1465 = vadd.xlane.f32.xlu0 %v1464
    %v1466 = vpop.xlane.xlu0 %1465
    %v1467 = vlog2.pop %v1466
    %v1468 = vmul.f32 %v1467, 0.6931472
    %v1469 = vadd.f32 %v1468, %v1460
    %v1470 = vsub.f32 %v1455, %v1469
    %s1471 = sld [smem:[#allocation3 + $0x3]]
    %s1472 = scalar_lea.vmem [#allocation4], %s1471
    %v1473 = vld [vmem:[%s1472] sm:$0x1]
    %v1474 = vmax.f32 %v1473, 0.0
    %1475 = vmatprep.subr.mxu0 0.0
    %1476 = vmatpush1.msra.mxu0 %v131
    %1477 = vmatprep.subr.mxu0 0.0
    %1478 = vmatpush1.msra.mxu0 %v132
    %1479 = vmatprep.subr.mxu0 0.0
    %1480 = vmatpush1.msra.mxu0 %v133
    %1481 = vmatprep.subr.mxu0 0.0
    %1482 = vmatpush1.msra.mxu0 %v134
    %1483 = vmatprep.subr.mxu0 0.0
    %1484 = vmatpush1.msra.mxu0 0.0
    %1485 = vmatprep.subr.mxu0 0.0
    %1486 = vmatpush1.msra.mxu0 0.0
    %1487 = vmatprep.subr.mxu0 0.0
    %1488 = vmatpush1.msra.mxu0 0.0
    %1489 = vmatprep.subr.mxu0 0.0
    %1490 = vmatpush1.msra.mxu0 0.0
    %1491 = vmatprep.subr.mxu0 0.0
    %1492 = vmatpush1.msra.mxu0 0.0
    %1493 = vmatprep.subr.mxu0 0.0
    %1494 = vmatpush1.msra.mxu0 0.0
    %1495 = vmatprep.subr.mxu0 0.0
    %1496 = vmatpush1.msra.mxu0 0.0
    %1497 = vmatprep.subr.mxu0 0.0
    %1498 = vmatpush1.msra.mxu0 0.0
    %1499 = vmatprep.subr.mxu0 0.0
    %1500 = vmatpush1.msra.mxu0 0.0
    %1501 = vmatprep.subr.mxu0 0.0
    %1502 = vmatpush1.msra.mxu0 0.0
    %1503 = vmatprep.subr.mxu0 0.0
    %1504 = vmatpush1.msra.mxu0 0.0
    %1505 = vmatprep.subr.mxu0 0.0
    %1506 = vmatpush1.msra.mxu0 0.0
    %1507 = vmatprep.subr.mxu0 0.0
    %1508 = vmatpush1.msra.mxu0 0.0
    %1509 = vmatprep.subr.mxu0 0.0
    %1510 = vmatpush1.msra.mxu0 0.0
    %1511 = vmatprep.subr.mxu0 0.0
    %1512 = vmatpush1.msra.mxu0 0.0
    %1513 = vmatprep.subr.mxu0 0.0
    %1514 = vmatpush1.msra.mxu0 0.0
    %1515 = vmatprep.subr.mxu0 0.0
    %1516 = vmatpush1.msra.mxu0 0.0
    %1517 = vmatprep.subr.mxu0 0.0
    %1518 = vmatpush1.msra.mxu0 0.0
    %1519 = vmatprep.subr.mxu0 0.0
    %1520 = vmatpush1.msra.mxu0 0.0
    %1521 = vmatprep.subr.mxu0 0.0
    %1522 = vmatpush1.msra.mxu0 0.0
    %1523 = vmatprep.subr.mxu0 0.0
    %1524 = vmatpush1.msra.mxu0 0.0
    %1525 = vmatprep.subr.mxu0 0.0
    %1526 = vmatpush1.msra.mxu0 0.0
    %1527 = vmatprep.subr.mxu0 0.0
    %1528 = vmatpush1.msra.mxu0 0.0
    %1529 = vmatprep.subr.mxu0 0.0
    %1530 = vmatpush1.msra.mxu0 0.0
    %1531 = vmatprep.subr.mxu0 0.0
    %1532 = vmatpush1.msra.mxu0 0.0
    %1533 = vmatprep.subr.mxu0 0.0
    %1534 = vmatpush1.msra.mxu0 0.0
    %1535 = vmatprep.subr.mxu0 0.0
    %1536 = vmatpush1.msra.mxu0 0.0
    %1537 = vmatprep.subr.mxu0 0.0
    %1538 = vmatpush1.msra.mxu0 0.0
    %1539 = vmatprep.mubr.f32.mxu0 0.0
    %1540 = vmatmul.mubr.f32.gmra.mrb[0].mxu0 %v1286
    %v1541 = vpop.f32.mrb[0].mxu0
    %v1542 = vadd.f32 0.0, %v1541
    %v1543 = vpop.f32.mrb[0].mxu0
    %1544 = vdwg.mxu0
    %v1546 = vsel %vm234, %v1474, 0
    %1548 = vmatprep.subr.mxu0 0.0
    %1549 = vmatpush1.msra.mxu0 %v129
    %1550 = vmatprep.subr.mxu0 0.0
    %1551 = vmatpush1.msra.mxu0 %v130
    %1552 = vmatprep.subr.mxu0 0.0
    %1553 = vmatpush1.msra.mxu0 0.0
    %1554 = vmatprep.subr.mxu0 0.0
    %1555 = vmatpush1.msra.mxu0 0.0
    %1556 = vmatprep.subr.mxu0 0.0
    %1557 = vmatpush1.msra.mxu0 0.0
    %1558 = vmatprep.subr.mxu0 0.0
    %1559 = vmatpush1.msra.mxu0 0.0
    %1560 = vmatprep.subr.mxu0 0.0
    %1561 = vmatpush1.msra.mxu0 0.0
    %1562 = vmatprep.subr.mxu0 0.0
    %1563 = vmatpush1.msra.mxu0 0.0
    %1564 = vmatprep.subr.mxu0 0.0
    %1565 = vmatpush1.msra.mxu0 0.0
    %1566 = vmatprep.subr.mxu0 0.0
    %1567 = vmatpush1.msra.mxu0 0.0
    %1568 = vmatprep.subr.mxu0 0.0
    %1569 = vmatpush1.msra.mxu0 0.0
    %1570 = vmatprep.subr.mxu0 0.0
    %1571 = vmatpush1.msra.mxu0 0.0
    %1572 = vmatprep.subr.mxu0 0.0
    %1573 = vmatpush1.msra.mxu0 0.0
    %1574 = vmatprep.subr.mxu0 0.0
    %1575 = vmatpush1.msra.mxu0 0.0
    %1576 = vmatprep.subr.mxu0 0.0
    %1577 = vmatpush1.msra.mxu0 0.0
    %1578 = vmatprep.subr.mxu0 0.0
    %1579 = vmatpush1.msra.mxu0 0.0
    %1580 = vmatprep.subr.mxu0 0.0
    %1581 = vmatpush1.msra.mxu0 0.0
    %1582 = vmatprep.subr.mxu0 0.0
    %1583 = vmatpush1.msra.mxu0 0.0
    %1584 = vmatprep.subr.mxu0 0.0
    %1585 = vmatpush1.msra.mxu0 0.0
    %1586 = vmatprep.subr.mxu0 0.0
    %1587 = vmatpush1.msra.mxu0 0.0
    %1588 = vmatprep.subr.mxu0 0.0
    %1589 = vmatpush1.msra.mxu0 0.0
    %1590 = vmatprep.subr.mxu0 0.0
    %1591 = vmatpush1.msra.mxu0 0.0
    %1592 = vmatprep.subr.mxu0 0.0
    %1593 = vmatpush1.msra.mxu0 0.0
    %1594 = vmatprep.subr.mxu0 0.0
    %1595 = vmatpush1.msra.mxu0 0.0
    %1596 = vmatprep.subr.mxu0 0.0
    %1597 = vmatpush1.msra.mxu0 0.0
    %1598 = vmatprep.subr.mxu0 0.0
    %1599 = vmatpush1.msra.mxu0 0.0
    %1600 = vmatprep.subr.mxu0 0.0
    %1601 = vmatpush1.msra.mxu0 0.0
    %1602 = vmatprep.subr.mxu0 0.0
    %1603 = vmatpush1.msra.mxu0 0.0
    %1604 = vmatprep.subr.mxu0 0.0
    %1605 = vmatpush1.msra.mxu0 0.0
    %1606 = vmatprep.subr.mxu0 0.0
    %1607 = vmatpush1.msra.mxu0 0.0
    %1608 = vmatprep.subr.mxu0 0.0
    %1609 = vmatpush1.msra.mxu0 0.0
    %1610 = vmatprep.subr.mxu0 0.0
    %1611 = vmatpush1.msra.mxu0 0.0
    %1612 = vmatprep.mubr.f32.mxu0 0.0
    %1613 = vmatmul.mubr.f32.gmra.mrb[0].mxu0 %v1546
    %v1614 = vpop.f32.mrb[0].mxu0
    %v1615 = vadd.f32 %v1542, %v1614
    %v1616 = vpop.f32.mrb[0].mxu0
    %1617 = vdwg.mxu0
    %v1618 = vadd.f32 %v1615, %v135
    %v1619 = vxor.u32 %v1618, 2147483648
    %v1620 = vmul.f32 %v1619, 1.442695
    %v1621 = vpow.pop %v1620
    %v1622 = vadd.f32 %v1621, 1.0
    %v1623 = vrcp.pop %v1622
    %v1624 = vmul.f32 1.0, %v1623
    %v1625 = vtanh.pop %v1618
    %v1626 = vmul.f32 %v1624, %v1206
    %1628 = vrot.lane.b32.xlu0 %v1625, 64
    %v1629 = vpop.permute.xlu0 %1628
    %v1631 = vmul.f32 %v1624, %v1629
    %1633 = vrot.lane.b32.xlu0 %v1631, 32
    %v1634 = vpop.permute.xlu0 %1633
    %v1636 = vadd.f32 %v1626, %v1634
    %v1637 = vtanh.pop %v1636
    %1639 = vrot.lane.b32.xlu0 %v1637, 64
    %v1640 = vpop.permute.xlu0 %1639
    %v1642 = vmul.f32 %v1624, %v1640
    %1643 = vmatprep.subr.mxu0 0.0
    %1644 = vmatpush1.msra.mxu0 %v140
    %1645 = vmatprep.subr.mxu0 0.0
    %1646 = vmatpush1.msra.mxu0 %v141
    %1647 = vmatprep.subr.mxu0 0.0
    %1648 = vmatpush1.msra.mxu0 %v142
    %1649 = vmatprep.subr.mxu0 0.0
    %1650 = vmatpush1.msra.mxu0 %v143
    %1651 = vmatprep.subr.mxu0 0.0
    %1652 = vmatpush1.msra.mxu0 0.0
    %1653 = vmatprep.subr.mxu0 0.0
    %1654 = vmatpush1.msra.mxu0 0.0
    %1655 = vmatprep.subr.mxu0 0.0
    %1656 = vmatpush1.msra.mxu0 0.0
    %1657 = vmatprep.subr.mxu0 0.0
    %1658 = vmatpush1.msra.mxu0 0.0
    %1659 = vmatprep.subr.mxu0 0.0
    %1660 = vmatpush1.msra.mxu0 0.0
    %1661 = vmatprep.subr.mxu0 0.0
    %1662 = vmatpush1.msra.mxu0 0.0
    %1663 = vmatprep.subr.mxu0 0.0
    %1664 = vmatpush1.msra.mxu0 0.0
    %1665 = vmatprep.subr.mxu0 0.0
    %1666 = vmatpush1.msra.mxu0 0.0
    %1667 = vmatprep.subr.mxu0 0.0
    %1668 = vmatpush1.msra.mxu0 0.0
    %1669 = vmatprep.subr.mxu0 0.0
    %1670 = vmatpush1.msra.mxu0 0.0
    %1671 = vmatprep.subr.mxu0 0.0
    %1672 = vmatpush1.msra.mxu0 0.0
    %1673 = vmatprep.subr.mxu0 0.0
    %1674 = vmatpush1.msra.mxu0 0.0
    %1675 = vmatprep.subr.mxu0 0.0
    %1676 = vmatpush1.msra.mxu0 0.0
    %1677 = vmatprep.subr.mxu0 0.0
    %1678 = vmatpush1.msra.mxu0 0.0
    %1679 = vmatprep.subr.mxu0 0.0
    %1680 = vmatpush1.msra.mxu0 0.0
    %1681 = vmatprep.subr.mxu0 0.0
    %1682 = vmatpush1.msra.mxu0 0.0
    %1683 = vmatprep.subr.mxu0 0.0
    %1684 = vmatpush1.msra.mxu0 0.0
    %1685 = vmatprep.subr.mxu0 0.0
    %1686 = vmatpush1.msra.mxu0 0.0
    %1687 = vmatprep.subr.mxu0 0.0
    %1688 = vmatpush1.msra.mxu0 0.0
    %1689 = vmatprep.subr.mxu0 0.0
    %1690 = vmatpush1.msra.mxu0 0.0
    %1691 = vmatprep.subr.mxu0 0.0
    %1692 = vmatpush1.msra.mxu0 0.0
    %1693 = vmatprep.subr.mxu0 0.0
    %1694 = vmatpush1.msra.mxu0 0.0
    %1695 = vmatprep.subr.mxu0 0.0
    %1696 = vmatpush1.msra.mxu0 0.0
    %1697 = vmatprep.subr.mxu0 0.0
    %1698 = vmatpush1.msra.mxu0 0.0
    %1699 = vmatprep.subr.mxu0 0.0
    %1700 = vmatpush1.msra.mxu0 0.0
    %1701 = vmatprep.subr.mxu0 0.0
    %1702 = vmatpush1.msra.mxu0 0.0
    %1703 = vmatprep.subr.mxu0 0.0
    %1704 = vmatpush1.msra.mxu0 0.0
    %1705 = vmatprep.subr.mxu0 0.0
    %1706 = vmatpush1.msra.mxu0 0.0
    %1707 = vmatprep.mubr.f32.mxu0 0.0
    %1708 = vmatmul.mubr.f32.gmra.mrb[0].mxu0 %v1386
    %v1709 = vpop.f32.mrb[0].mxu0
    %v1710 = vadd.f32 0.0, %v1709
    %v1711 = vpop.f32.mrb[0].mxu0
    %1712 = vdwg.mxu0
    %1714 = vrot.lane.b32.xlu0 %v1642, 32
    %v1715 = vpop.permute.xlu0 %1714
    %v1716 = vsel %vm160, %v1715, 0
    %1718 = vmatprep.subr.mxu0 0.0
    %1719 = vmatpush1.msra.mxu0 %v136
    %1720 = vmatprep.subr.mxu0 0.0
    %1721 = vmatpush1.msra.mxu0 %v137
    %1722 = vmatprep.subr.mxu0 0.0
    %1723 = vmatpush1.msra.mxu0 %v138
    %1724 = vmatprep.subr.mxu0 0.0
    %1725 = vmatpush1.msra.mxu0 %v139
    %1726 = vmatprep.subr.mxu0 0.0
    %1727 = vmatpush1.msra.mxu0 0.0
    %1728 = vmatprep.subr.mxu0 0.0
    %1729 = vmatpush1.msra.mxu0 0.0
    %1730 = vmatprep.subr.mxu0 0.0
    %1731 = vmatpush1.msra.mxu0 0.0
    %1732 = vmatprep.subr.mxu0 0.0
    %1733 = vmatpush1.msra.mxu0 0.0
    %1734 = vmatprep.subr.mxu0 0.0
    %1735 = vmatpush1.msra.mxu0 0.0
    %1736 = vmatprep.subr.mxu0 0.0
    %1737 = vmatpush1.msra.mxu0 0.0
    %1738 = vmatprep.subr.mxu0 0.0
    %1739 = vmatpush1.msra.mxu0 0.0
    %1740 = vmatprep.subr.mxu0 0.0
    %1741 = vmatpush1.msra.mxu0 0.0
    %1742 = vmatprep.subr.mxu0 0.0
    %1743 = vmatpush1.msra.mxu0 0.0
    %1744 = vmatprep.subr.mxu0 0.0
    %1745 = vmatpush1.msra.mxu0 0.0
    %1746 = vmatprep.subr.mxu0 0.0
    %1747 = vmatpush1.msra.mxu0 0.0
    %1748 = vmatprep.subr.mxu0 0.0
    %1749 = vmatpush1.msra.mxu0 0.0
    %1750 = vmatprep.subr.mxu0 0.0
    %1751 = vmatpush1.msra.mxu0 0.0
    %1752 = vmatprep.subr.mxu0 0.0
    %1753 = vmatpush1.msra.mxu0 0.0
    %1754 = vmatprep.subr.mxu0 0.0
    %1755 = vmatpush1.msra.mxu0 0.0
    %1756 = vmatprep.subr.mxu0 0.0
    %1757 = vmatpush1.msra.mxu0 0.0
    %1758 = vmatprep.subr.mxu0 0.0
    %1759 = vmatpush1.msra.mxu0 0.0
    %1760 = vmatprep.subr.mxu0 0.0
    %1761 = vmatpush1.msra.mxu0 0.0
    %1762 = vmatprep.subr.mxu0 0.0
    %1763 = vmatpush1.msra.mxu0 0.0
    %1764 = vmatprep.subr.mxu0 0.0
    %1765 = vmatpush1.msra.mxu0 0.0
    %1766 = vmatprep.subr.mxu0 0.0
    %1767 = vmatpush1.msra.mxu0 0.0
    %1768 = vmatprep.subr.mxu0 0.0
    %1769 = vmatpush1.msra.mxu0 0.0
    %1770 = vmatprep.subr.mxu0 0.0
    %1771 = vmatpush1.msra.mxu0 0.0
    %1772 = vmatprep.subr.mxu0 0.0
    %1773 = vmatpush1.msra.mxu0 0.0
    %1774 = vmatprep.subr.mxu0 0.0
    %1775 = vmatpush1.msra.mxu0 0.0
    %1776 = vmatprep.subr.mxu0 0.0
    %1777 = vmatpush1.msra.mxu0 0.0
    %1778 = vmatprep.subr.mxu0 0.0
    %1779 = vmatpush1.msra.mxu0 0.0
    %1780 = vmatprep.subr.mxu0 0.0
    %1781 = vmatpush1.msra.mxu0 0.0
    %1782 = vmatprep.mubr.f32.mxu0 0.0
    %1783 = vmatmul.mubr.f32.gmra.mrb[0].mxu0 %v1716
    %v1784 = vpop.f32.mrb[0].mxu0
    %v1785 = vadd.f32 %v1710, %v1784
    %v1786 = vpop.f32.mrb[0].mxu0
    %1787 = vdwg.mxu0
    %v1788 = vadd.f32 %v1785, %v144
    %v1789 = vxor.u32 %v1788, 2147483648
    %v1790 = vmul.f32 %v1789, 1.442695
    %v1791 = vpow.pop %v1790
    %v1792 = vadd.f32 %v1791, 1.0
    %v1793 = vrcp.pop %v1792
    %v1794 = vmul.f32 1.0, %v1793
    %v1795 = vtanh.pop %v1788
    %v1796 = vmul.f32 %v1794, %v1376
    %1798 = vrot.lane.b32.xlu0 %v1795, 64
    %v1799 = vpop.permute.xlu0 %1798
    %v1801 = vmul.f32 %v1794, %v1799
    %1803 = vrot.lane.b32.xlu0 %v1801, 32
    %v1804 = vpop.permute.xlu0 %1803
    %v1806 = vadd.f32 %v1796, %v1804
    %v1807 = vtanh.pop %v1806
    %1809 = vrot.lane.b32.xlu0 %v1807, 64
    %v1810 = vpop.permute.xlu0 %1809
    %v1812 = vmul.f32 %v1794, %v1810
    %1814 = vrot.lane.b32.xlu0 %v1812, 32
    %v1815 = vpop.permute.xlu0 %1814
    %v1816 = vsel %vm160, %v1815, 0
    %1818 = vmatprep.subr.mxu0 0.0
    %1819 = vmatpush1.msra.mxu0 %v145
    %1820 = vmatprep.subr.mxu0 0.0
    %1821 = vmatpush1.msra.mxu0 %v146
    %1822 = vmatprep.subr.mxu0 0.0
    %1823 = vmatpush1.msra.mxu0 %v147
    %1824 = vmatprep.subr.mxu0 0.0
    %1825 = vmatpush1.msra.mxu0 %v148
    %1826 = vmatprep.subr.mxu0 0.0
    %1827 = vmatpush1.msra.mxu0 0.0
    %1828 = vmatprep.subr.mxu0 0.0
    %1829 = vmatpush1.msra.mxu0 0.0
    %1830 = vmatprep.subr.mxu0 0.0
    %1831 = vmatpush1.msra.mxu0 0.0
    %1832 = vmatprep.subr.mxu0 0.0
    %1833 = vmatpush1.msra.mxu0 0.0
    %1834 = vmatprep.subr.mxu0 0.0
    %1835 = vmatpush1.msra.mxu0 0.0
    %1836 = vmatprep.subr.mxu0 0.0
    %1837 = vmatpush1.msra.mxu0 0.0
    %1838 = vmatprep.subr.mxu0 0.0
    %1839 = vmatpush1.msra.mxu0 0.0
    %1840 = vmatprep.subr.mxu0 0.0
    %1841 = vmatpush1.msra.mxu0 0.0
    %1842 = vmatprep.subr.mxu0 0.0
    %1843 = vmatpush1.msra.mxu0 0.0
    %1844 = vmatprep.subr.mxu0 0.0
    %1845 = vmatpush1.msra.mxu0 0.0
    %1846 = vmatprep.subr.mxu0 0.0
    %1847 = vmatpush1.msra.mxu0 0.0
    %1848 = vmatprep.subr.mxu0 0.0
    %1849 = vmatpush1.msra.mxu0 0.0
    %1850 = vmatprep.subr.mxu0 0.0
    %1851 = vmatpush1.msra.mxu0 0.0
    %1852 = vmatprep.subr.mxu0 0.0
    %1853 = vmatpush1.msra.mxu0 0.0
    %1854 = vmatprep.subr.mxu0 0.0
    %1855 = vmatpush1.msra.mxu0 0.0
    %1856 = vmatprep.subr.mxu0 0.0
    %1857 = vmatpush1.msra.mxu0 0.0
    %1858 = vmatprep.subr.mxu0 0.0
    %1859 = vmatpush1.msra.mxu0 0.0
    %1860 = vmatprep.subr.mxu0 0.0
    %1861 = vmatpush1.msra.mxu0 0.0
    %1862 = vmatprep.subr.mxu0 0.0
    %1863 = vmatpush1.msra.mxu0 0.0
    %1864 = vmatprep.subr.mxu0 0.0
    %1865 = vmatpush1.msra.mxu0 0.0
    %1866 = vmatprep.subr.mxu0 0.0
    %1867 = vmatpush1.msra.mxu0 0.0
    %1868 = vmatprep.subr.mxu0 0.0
    %1869 = vmatpush1.msra.mxu0 0.0
    %1870 = vmatprep.subr.mxu0 0.0
    %1871 = vmatpush1.msra.mxu0 0.0
    %1872 = vmatprep.subr.mxu0 0.0
    %1873 = vmatpush1.msra.mxu0 0.0
    %1874 = vmatprep.subr.mxu0 0.0
    %1875 = vmatpush1.msra.mxu0 0.0
    %1876 = vmatprep.subr.mxu0 0.0
    %1877 = vmatpush1.msra.mxu0 0.0
    %1878 = vmatprep.subr.mxu0 0.0
    %1879 = vmatpush1.msra.mxu0 0.0
    %1880 = vmatprep.subr.mxu0 0.0
    %1881 = vmatpush1.msra.mxu0 0.0
    %1882 = vmatprep.mubr.f32.mxu0 0.0
    %1883 = vmatmul.mubr.f32.gmra.mrb[0].mxu0 %v1816
    %v1884 = vpop.f32.mrb[0].mxu0
    %v1885 = vadd.f32 %v149, %v1884
    %v1886 = vpop.f32.mrb[0].mxu0
    %1887 = vdwg.mxu0
    %v1888 = vsel %vm597, %v1885, -inf
    %1889 = vmax.xlane.f32.xlu0 %v1888
    %v1890 = vpop.xlane.xlu0 %1889
    %v1891 = vsub.f32 %v1885, %v1890
    %v1892 = vmul.f32 %v1891, 1.442695
    %v1893 = vpow.pop %v1892
    %v1894 = vsel %vm597, %v1893, 0.0
    %1895 = vadd.xlane.f32.xlu0 %v1894
    %v1896 = vpop.xlane.xlu0 %1895
    %v1897 = vlog2.pop %v1896
    %v1898 = vmul.f32 %v1897, 0.6931472
    %v1899 = vadd.f32 %v1898, %v1890
    %v1900 = vsub.f32 %v1885, %v1899
    %s1901 = sld [smem:[#allocation3 + $0x4]]
    %s1902 = scalar_lea.vmem [#allocation4], %s1901
    %v1903 = vld [vmem:[%s1902] sm:$0x1]
    %v1904 = vmax.f32 %v1903, 0.0
    %1905 = vmatprep.subr.mxu0 0.0
    %1906 = vmatpush1.msra.mxu0 %v131
    %1907 = vmatprep.subr.mxu0 0.0
    %1908 = vmatpush1.msra.mxu0 %v132
    %1909 = vmatprep.subr.mxu0 0.0
    %1910 = vmatpush1.msra.mxu0 %v133
    %1911 = vmatprep.subr.mxu0 0.0
    %1912 = vmatpush1.msra.mxu0 %v134
    %1913 = vmatprep.subr.mxu0 0.0
    %1914 = vmatpush1.msra.mxu0 0.0
    %1915 = vmatprep.subr.mxu0 0.0
    %1916 = vmatpush1.msra.mxu0 0.0
    %1917 = vmatprep.subr.mxu0 0.0
    %1918 = vmatpush1.msra.mxu0 0.0
    %1919 = vmatprep.subr.mxu0 0.0
    %1920 = vmatpush1.msra.mxu0 0.0
    %1921 = vmatprep.subr.mxu0 0.0
    %1922 = vmatpush1.msra.mxu0 0.0
    %1923 = vmatprep.subr.mxu0 0.0
    %1924 = vmatpush1.msra.mxu0 0.0
    %1925 = vmatprep.subr.mxu0 0.0
    %1926 = vmatpush1.msra.mxu0 0.0
    %1927 = vmatprep.subr.mxu0 0.0
    %1928 = vmatpush1.msra.mxu0 0.0
    %1929 = vmatprep.subr.mxu0 0.0
    %1930 = vmatpush1.msra.mxu0 0.0
    %1931 = vmatprep.subr.mxu0 0.0
    %1932 = vmatpush1.msra.mxu0 0.0
    %1933 = vmatprep.subr.mxu0 0.0
    %1934 = vmatpush1.msra.mxu0 0.0
    %1935 = vmatprep.subr.mxu0 0.0
    %1936 = vmatpush1.msra.mxu0 0.0
    %1937 = vmatprep.subr.mxu0 0.0
    %1938 = vmatpush1.msra.mxu0 0.0
    %1939 = vmatprep.subr.mxu0 0.0
    %1940 = vmatpush1.msra.mxu0 0.0
    %1941 = vmatprep.subr.mxu0 0.0
    %1942 = vmatpush1.msra.mxu0 0.0
    %1943 = vmatprep.subr.mxu0 0.0
    %1944 = vmatpush1.msra.mxu0 0.0
    %1945 = vmatprep.subr.mxu0 0.0
    %1946 = vmatpush1.msra.mxu0 0.0
    %1947 = vmatprep.subr.mxu0 0.0
    %1948 = vmatpush1.msra.mxu0 0.0
    %1949 = vmatprep.subr.mxu0 0.0
    %1950 = vmatpush1.msra.mxu0 0.0
    %1951 = vmatprep.subr.mxu0 0.0
    %1952 = vmatpush1.msra.mxu0 0.0
    %1953 = vmatprep.subr.mxu0 0.0
    %1954 = vmatpush1.msra.mxu0 0.0
    %1955 = vmatprep.subr.mxu0 0.0
    %1956 = vmatpush1.msra.mxu0 0.0
    %1957 = vmatprep.subr.mxu0 0.0
    %1958 = vmatpush1.msra.mxu0 0.0
    %1959 = vmatprep.subr.mxu0 0.0
    %1960 = vmatpush1.msra.mxu0 0.0
    %1961 = vmatprep.subr.mxu0 0.0
    %1962 = vmatpush1.msra.mxu0 0.0
    %1963 = vmatprep.subr.mxu0 0.0
    %1964 = vmatpush1.msra.mxu0 0.0
    %1965 = vmatprep.subr.mxu0 0.0
    %1966 = vmatpush1.msra.mxu0 0.0
    %1967 = vmatprep.subr.mxu0 0.0
    %1968 = vmatpush1.msra.mxu0 0.0
    %1969 = vmatprep.mubr.f32.mxu0 0.0
    %1970 = vmatmul.mubr.f32.gmra.mrb[0].mxu0 %v1716
    %v1971 = vpop.f32.mrb[0].mxu0
    %v1972 = vadd.f32 0.0, %v1971
    %v1973 = vpop.f32.mrb[0].mxu0
    %1974 = vdwg.mxu0
    %v1976 = vsel %vm234, %v1904, 0
    %1978 = vmatprep.subr.mxu0 0.0
    %1979 = vmatpush1.msra.mxu0 %v129
    %1980 = vmatprep.subr.mxu0 0.0
    %1981 = vmatpush1.msra.mxu0 %v130
    %1982 = vmatprep.subr.mxu0 0.0
    %1983 = vmatpush1.msra.mxu0 0.0
    %1984 = vmatprep.subr.mxu0 0.0
    %1985 = vmatpush1.msra.mxu0 0.0
    %1986 = vmatprep.subr.mxu0 0.0
    %1987 = vmatpush1.msra.mxu0 0.0
    %1988 = vmatprep.subr.mxu0 0.0
    %1989 = vmatpush1.msra.mxu0 0.0
    %1990 = vmatprep.subr.mxu0 0.0
    %1991 = vmatpush1.msra.mxu0 0.0
    %1992 = vmatprep.subr.mxu0 0.0
    %1993 = vmatpush1.msra.mxu0 0.0
    %1994 = vmatprep.subr.mxu0 0.0
    %1995 = vmatpush1.msra.mxu0 0.0
    %1996 = vmatprep.subr.mxu0 0.0
    %1997 = vmatpush1.msra.mxu0 0.0
    %1998 = vmatprep.subr.mxu0 0.0
    %1999 = vmatpush1.msra.mxu0 0.0
    %2000 = vmatprep.subr.mxu0 0.0
    %2001 = vmatpush1.msra.mxu0 0.0
    %2002 = vmatprep.subr.mxu0 0.0
    %2003 = vmatpush1.msra.mxu0 0.0
    %2004 = vmatprep.subr.mxu0 0.0
    %2005 = vmatpush1.msra.mxu0 0.0
    %2006 = vmatprep.subr.mxu0 0.0
    %2007 = vmatpush1.msra.mxu0 0.0
    %2008 = vmatprep.subr.mxu0 0.0
    %2009 = vmatpush1.msra.mxu0 0.0
    %2010 = vmatprep.subr.mxu0 0.0
    %2011 = vmatpush1.msra.mxu0 0.0
    %2012 = vmatprep.subr.mxu0 0.0
    %2013 = vmatpush1.msra.mxu0 0.0
    %2014 = vmatprep.subr.mxu0 0.0
    %2015 = vmatpush1.msra.mxu0 0.0
    %2016 = vmatprep.subr.mxu0 0.0
    %2017 = vmatpush1.msra.mxu0 0.0
    %2018 = vmatprep.subr.mxu0 0.0
    %2019 = vmatpush1.msra.mxu0 0.0
    %2020 = vmatprep.subr.mxu0 0.0
    %2021 = vmatpush1.msra.mxu0 0.0
    %2022 = vmatprep.subr.mxu0 0.0
    %2023 = vmatpush1.msra.mxu0 0.0
    %2024 = vmatprep.subr.mxu0 0.0
    %2025 = vmatpush1.msra.mxu0 0.0
    %2026 = vmatprep.subr.mxu0 0.0
    %2027 = vmatpush1.msra.mxu0 0.0
    %2028 = vmatprep.subr.mxu0 0.0
    %2029 = vmatpush1.msra.mxu0 0.0
    %2030 = vmatprep.subr.mxu0 0.0
    %2031 = vmatpush1.msra.mxu0 0.0
    %2032 = vmatprep.subr.mxu0 0.0
    %2033 = vmatpush1.msra.mxu0 0.0
    %2034 = vmatprep.subr.mxu0 0.0
    %2035 = vmatpush1.msra.mxu0 0.0
    %2036 = vmatprep.subr.mxu0 0.0
    %2037 = vmatpush1.msra.mxu0 0.0
    %2038 = vmatprep.subr.mxu0 0.0
    %2039 = vmatpush1.msra.mxu0 0.0
    %2040 = vmatprep.subr.mxu0 0.0
    %2041 = vmatpush1.msra.mxu0 0.0
    %2042 = vmatprep.mubr.f32.mxu0 0.0
    %2043 = vmatmul.mubr.f32.gmra.mrb[0].mxu0 %v1976
    %v2044 = vpop.f32.mrb[0].mxu0
    %v2045 = vadd.f32 %v1972, %v2044
    %v2046 = vpop.f32.mrb[0].mxu0
    %2047 = vdwg.mxu0
    %v2048 = vadd.f32 %v2045, %v135
    %v2049 = vxor.u32 %v2048, 2147483648
    %v2050 = vmul.f32 %v2049, 1.442695
    %v2051 = vpow.pop %v2050
    %v2052 = vadd.f32 %v2051, 1.0
    %v2053 = vrcp.pop %v2052
    %v2054 = vmul.f32 1.0, %v2053
    %v2055 = vtanh.pop %v2048
    %v2056 = vmul.f32 %v2054, %v1636
    %2058 = vrot.lane.b32.xlu0 %v2055, 64
    %v2059 = vpop.permute.xlu0 %2058
    %v2061 = vmul.f32 %v2054, %v2059
    %2063 = vrot.lane.b32.xlu0 %v2061, 32
    %v2064 = vpop.permute.xlu0 %2063
    %v2066 = vadd.f32 %v2056, %v2064
    %v2067 = vtanh.pop %v2066
    %2069 = vrot.lane.b32.xlu0 %v2067, 64
    %v2070 = vpop.permute.xlu0 %2069
    %v2072 = vmul.f32 %v2054, %v2070
    %2073 = vmatprep.subr.mxu0 0.0
    %2074 = vmatpush1.msra.mxu0 %v140
    %2075 = vmatprep.subr.mxu0 0.0
    %2076 = vmatpush1.msra.mxu0 %v141
    %2077 = vmatprep.subr.mxu0 0.0
    %2078 = vmatpush1.msra.mxu0 %v142
    %2079 = vmatprep.subr.mxu0 0.0
    %2080 = vmatpush1.msra.mxu0 %v143
    %2081 = vmatprep.subr.mxu0 0.0
    %2082 = vmatpush1.msra.mxu0 0.0
    %2083 = vmatprep.subr.mxu0 0.0
    %2084 = vmatpush1.msra.mxu0 0.0
    %2085 = vmatprep.subr.mxu0 0.0
    %2086 = vmatpush1.msra.mxu0 0.0
    %2087 = vmatprep.subr.mxu0 0.0
    %2088 = vmatpush1.msra.mxu0 0.0
    %2089 = vmatprep.subr.mxu0 0.0
    %2090 = vmatpush1.msra.mxu0 0.0
    %2091 = vmatprep.subr.mxu0 0.0
    %2092 = vmatpush1.msra.mxu0 0.0
    %2093 = vmatprep.subr.mxu0 0.0
    %2094 = vmatpush1.msra.mxu0 0.0
    %2095 = vmatprep.subr.mxu0 0.0
    %2096 = vmatpush1.msra.mxu0 0.0
    %2097 = vmatprep.subr.mxu0 0.0
    %2098 = vmatpush1.msra.mxu0 0.0
    %2099 = vmatprep.subr.mxu0 0.0
    %2100 = vmatpush1.msra.mxu0 0.0
    %2101 = vmatprep.subr.mxu0 0.0
    %2102 = vmatpush1.msra.mxu0 0.0
    %2103 = vmatprep.subr.mxu0 0.0
    %2104 = vmatpush1.msra.mxu0 0.0
    %2105 = vmatprep.subr.mxu0 0.0
    %2106 = vmatpush1.msra.mxu0 0.0
    %2107 = vmatprep.subr.mxu0 0.0
    %2108 = vmatpush1.msra.mxu0 0.0
    %2109 = vmatprep.subr.mxu0 0.0
    %2110 = vmatpush1.msra.mxu0 0.0
    %2111 = vmatprep.subr.mxu0 0.0
    %2112 = vmatpush1.msra.mxu0 0.0
    %2113 = vmatprep.subr.mxu0 0.0
    %2114 = vmatpush1.msra.mxu0 0.0
    %2115 = vmatprep.subr.mxu0 0.0
    %2116 = vmatpush1.msra.mxu0 0.0
    %2117 = vmatprep.subr.mxu0 0.0
    %2118 = vmatpush1.msra.mxu0 0.0
    %2119 = vmatprep.subr.mxu0 0.0
    %2120 = vmatpush1.msra.mxu0 0.0
    %2121 = vmatprep.subr.mxu0 0.0
    %2122 = vmatpush1.msra.mxu0 0.0
    %2123 = vmatprep.subr.mxu0 0.0
    %2124 = vmatpush1.msra.mxu0 0.0
    %2125 = vmatprep.subr.mxu0 0.0
    %2126 = vmatpush1.msra.mxu0 0.0
    %2127 = vmatprep.subr.mxu0 0.0
    %2128 = vmatpush1.msra.mxu0 0.0
    %2129 = vmatprep.subr.mxu0 0.0
    %2130 = vmatpush1.msra.mxu0 0.0
    %2131 = vmatprep.subr.mxu0 0.0
    %2132 = vmatpush1.msra.mxu0 0.0
    %2133 = vmatprep.subr.mxu0 0.0
    %2134 = vmatpush1.msra.mxu0 0.0
    %2135 = vmatprep.subr.mxu0 0.0
    %2136 = vmatpush1.msra.mxu0 0.0
    %2137 = vmatprep.mubr.f32.mxu0 0.0
    %2138 = vmatmul.mubr.f32.gmra.mrb[0].mxu0 %v1816
    %v2139 = vpop.f32.mrb[0].mxu0
    %v2140 = vadd.f32 0.0, %v2139
    %v2141 = vpop.f32.mrb[0].mxu0
    %2142 = vdwg.mxu0
    %2144 = vrot.lane.b32.xlu0 %v2072, 32
    %v2145 = vpop.permute.xlu0 %2144
    %v2146 = vsel %vm160, %v2145, 0
    %2148 = vmatprep.subr.mxu0 0.0
    %2149 = vmatpush1.msra.mxu0 %v136
    %2150 = vmatprep.subr.mxu0 0.0
    %2151 = vmatpush1.msra.mxu0 %v137
    %2152 = vmatprep.subr.mxu0 0.0
    %2153 = vmatpush1.msra.mxu0 %v138
    %2154 = vmatprep.subr.mxu0 0.0
    %2155 = vmatpush1.msra.mxu0 %v139
    %2156 = vmatprep.subr.mxu0 0.0
    %2157 = vmatpush1.msra.mxu0 0.0
    %2158 = vmatprep.subr.mxu0 0.0
    %2159 = vmatpush1.msra.mxu0 0.0
    %2160 = vmatprep.subr.mxu0 0.0
    %2161 = vmatpush1.msra.mxu0 0.0
    %2162 = vmatprep.subr.mxu0 0.0
    %2163 = vmatpush1.msra.mxu0 0.0
    %2164 = vmatprep.subr.mxu0 0.0
    %2165 = vmatpush1.msra.mxu0 0.0
    %2166 = vmatprep.subr.mxu0 0.0
    %2167 = vmatpush1.msra.mxu0 0.0
    %2168 = vmatprep.subr.mxu0 0.0
    %2169 = vmatpush1.msra.mxu0 0.0
    %2170 = vmatprep.subr.mxu0 0.0
    %2171 = vmatpush1.msra.mxu0 0.0
    %2172 = vmatprep.subr.mxu0 0.0
    %2173 = vmatpush1.msra.mxu0 0.0
    %2174 = vmatprep.subr.mxu0 0.0
    %2175 = vmatpush1.msra.mxu0 0.0
    %2176 = vmatprep.subr.mxu0 0.0
    %2177 = vmatpush1.msra.mxu0 0.0
    %2178 = vmatprep.subr.mxu0 0.0
    %2179 = vmatpush1.msra.mxu0 0.0
    %2180 = vmatprep.subr.mxu0 0.0
    %2181 = vmatpush1.msra.mxu0 0.0
    %2182 = vmatprep.subr.mxu0 0.0
    %2183 = vmatpush1.msra.mxu0 0.0
    %2184 = vmatprep.subr.mxu0 0.0
    %2185 = vmatpush1.msra.mxu0 0.0
    %2186 = vmatprep.subr.mxu0 0.0
    %2187 = vmatpush1.msra.mxu0 0.0
    %2188 = vmatprep.subr.mxu0 0.0
    %2189 = vmatpush1.msra.mxu0 0.0
    %2190 = vmatprep.subr.mxu0 0.0
    %2191 = vmatpush1.msra.mxu0 0.0
    %2192 = vmatprep.subr.mxu0 0.0
    %2193 = vmatpush1.msra.mxu0 0.0
    %2194 = vmatprep.subr.mxu0 0.0
    %2195 = vmatpush1.msra.mxu0 0.0
    %2196 = vmatprep.subr.mxu0 0.0
    %2197 = vmatpush1.msra.mxu0 0.0
    %2198 = vmatprep.subr.mxu0 0.0
    %2199 = vmatpush1.msra.mxu0 0.0
    %2200 = vmatprep.subr.mxu0 0.0
    %2201 = vmatpush1.msra.mxu0 0.0
    %2202 = vmatprep.subr.mxu0 0.0
    %2203 = vmatpush1.msra.mxu0 0.0
    %2204 = vmatprep.subr.mxu0 0.0
    %2205 = vmatpush1.msra.mxu0 0.0
    %2206 = vmatprep.subr.mxu0 0.0
    %2207 = vmatpush1.msra.mxu0 0.0
    %2208 = vmatprep.subr.mxu0 0.0
    %2209 = vmatpush1.msra.mxu0 0.0
    %2210 = vmatprep.subr.mxu0 0.0
    %2211 = vmatpush1.msra.mxu0 0.0
    %2212 = vmatprep.mubr.f32.mxu0 0.0
    %2213 = vmatmul.mubr.f32.gmra.mrb[0].mxu0 %v2146
    %v2214 = vpop.f32.mrb[0].mxu0
    %v2215 = vadd.f32 %v2140, %v2214
    %v2216 = vpop.f32.mrb[0].mxu0
    %2217 = vdwg.mxu0
    %v2218 = vadd.f32 %v2215, %v144
    %v2219 = vxor.u32 %v2218, 2147483648
    %v2220 = vmul.f32 %v2219, 1.442695
    %v2221 = vpow.pop %v2220
    %v2222 = vadd.f32 %v2221, 1.0
    %v2223 = vrcp.pop %v2222
    %v2224 = vmul.f32 1.0, %v2223
    %v2225 = vtanh.pop %v2218
    %v2226 = vmul.f32 %v2224, %v1806
    %2228 = vrot.lane.b32.xlu0 %v2225, 64
    %v2229 = vpop.permute.xlu0 %2228
    %v2231 = vmul.f32 %v2224, %v2229
    %2233 = vrot.lane.b32.xlu0 %v2231, 32
    %v2234 = vpop.permute.xlu0 %2233
    %v2236 = vadd.f32 %v2226, %v2234
    %v2237 = vtanh.pop %v2236
    %2239 = vrot.lane.b32.xlu0 %v2237, 64
    %v2240 = vpop.permute.xlu0 %2239
    %v2242 = vmul.f32 %v2224, %v2240
    %2244 = vrot.lane.b32.xlu0 %v2242, 32
    %v2245 = vpop.permute.xlu0 %2244
    %v2246 = vsel %vm160, %v2245, 0
    %2248 = vmatprep.subr.mxu0 0.0
    %2249 = vmatpush1.msra.mxu0 %v145
    %2250 = vmatprep.subr.mxu0 0.0
    %2251 = vmatpush1.msra.mxu0 %v146
    %2252 = vmatprep.subr.mxu0 0.0
    %2253 = vmatpush1.msra.mxu0 %v147
    %2254 = vmatprep.subr.mxu0 0.0
    %2255 = vmatpush1.msra.mxu0 %v148
    %2256 = vmatprep.subr.mxu0 0.0
    %2257 = vmatpush1.msra.mxu0 0.0
    %2258 = vmatprep.subr.mxu0 0.0
    %2259 = vmatpush1.msra.mxu0 0.0
    %2260 = vmatprep.subr.mxu0 0.0
    %2261 = vmatpush1.msra.mxu0 0.0
    %2262 = vmatprep.subr.mxu0 0.0
    %2263 = vmatpush1.msra.mxu0 0.0
    %2264 = vmatprep.subr.mxu0 0.0
    %2265 = vmatpush1.msra.mxu0 0.0
    %2266 = vmatprep.subr.mxu0 0.0
    %2267 = vmatpush1.msra.mxu0 0.0
    %2268 = vmatprep.subr.mxu0 0.0
    %2269 = vmatpush1.msra.mxu0 0.0
    %2270 = vmatprep.subr.mxu0 0.0
    %2271 = vmatpush1.msra.mxu0 0.0
    %2272 = vmatprep.subr.mxu0 0.0
    %2273 = vmatpush1.msra.mxu0 0.0
    %2274 = vmatprep.subr.mxu0 0.0
    %2275 = vmatpush1.msra.mxu0 0.0
    %2276 = vmatprep.subr.mxu0 0.0
    %2277 = vmatpush1.msra.mxu0 0.0
    %2278 = vmatprep.subr.mxu0 0.0
    %2279 = vmatpush1.msra.mxu0 0.0
    %2280 = vmatprep.subr.mxu0 0.0
    %2281 = vmatpush1.msra.mxu0 0.0
    %2282 = vmatprep.subr.mxu0 0.0
    %2283 = vmatpush1.msra.mxu0 0.0
    %2284 = vmatprep.subr.mxu0 0.0
    %2285 = vmatpush1.msra.mxu0 0.0
    %2286 = vmatprep.subr.mxu0 0.0
    %2287 = vmatpush1.msra.mxu0 0.0
    %2288 = vmatprep.subr.mxu0 0.0
    %2289 = vmatpush1.msra.mxu0 0.0
    %2290 = vmatprep.subr.mxu0 0.0
    %2291 = vmatpush1.msra.mxu0 0.0
    %2292 = vmatprep.subr.mxu0 0.0
    %2293 = vmatpush1.msra.mxu0 0.0
    %2294 = vmatprep.subr.mxu0 0.0
    %2295 = vmatpush1.msra.mxu0 0.0
    %2296 = vmatprep.subr.mxu0 0.0
    %2297 = vmatpush1.msra.mxu0 0.0
    %2298 = vmatprep.subr.mxu0 0.0
    %2299 = vmatpush1.msra.mxu0 0.0
    %2300 = vmatprep.subr.mxu0 0.0
    %2301 = vmatpush1.msra.mxu0 0.0
    %2302 = vmatprep.subr.mxu0 0.0
    %2303 = vmatpush1.msra.mxu0 0.0
    %2304 = vmatprep.subr.mxu0 0.0
    %2305 = vmatpush1.msra.mxu0 0.0
    %2306 = vmatprep.subr.mxu0 0.0
    %2307 = vmatpush1.msra.mxu0 0.0
    %2308 = vmatprep.subr.mxu0 0.0
    %2309 = vmatpush1.msra.mxu0 0.0
    %2310 = vmatprep.subr.mxu0 0.0
    %2311 = vmatpush1.msra.mxu0 0.0
    %2312 = vmatprep.mubr.f32.mxu0 0.0
    %2313 = vmatmul.mubr.f32.gmra.mrb[0].mxu0 %v2246
    %v2314 = vpop.f32.mrb[0].mxu0
    %v2315 = vadd.f32 %v149, %v2314
    %v2316 = vpop.f32.mrb[0].mxu0
    %2317 = vdwg.mxu0
    %v2318 = vsel %vm597, %v2315, -inf
    %2319 = vmax.xlane.f32.xlu0 %v2318
    %v2320 = vpop.xlane.xlu0 %2319
    %v2321 = vsub.f32 %v2315, %v2320
    %v2322 = vmul.f32 %v2321, 1.442695
    %v2323 = vpow.pop %v2322
    %v2324 = vsel %vm597, %v2323, 0.0
    %2325 = vadd.xlane.f32.xlu0 %v2324
    %v2326 = vpop.xlane.xlu0 %2325
    %v2327 = vlog2.pop %v2326
    %v2328 = vmul.f32 %v2327, 0.6931472
    %v2329 = vadd.f32 %v2328, %v2320
    %v2330 = vsub.f32 %v2315, %v2329
    %s2331 = sld [smem:[#allocation3 + $0x5]]
    %s2332 = scalar_lea.vmem [#allocation4], %s2331
    %v2333 = vld [vmem:[%s2332] sm:$0x1]
    %v2334 = vmax.f32 %v2333, 0.0
    %2335 = vmatprep.subr.mxu0 0.0
    %2336 = vmatpush1.msra.mxu0 %v131
    %2337 = vmatprep.subr.mxu0 0.0
    %2338 = vmatpush1.msra.mxu0 %v132
    %2339 = vmatprep.subr.mxu0 0.0
    %2340 = vmatpush1.msra.mxu0 %v133
    %2341 = vmatprep.subr.mxu0 0.0
    %2342 = vmatpush1.msra.mxu0 %v134
    %2343 = vmatprep.subr.mxu0 0.0
    %2344 = vmatpush1.msra.mxu0 0.0
    %2345 = vmatprep.subr.mxu0 0.0
    %2346 = vmatpush1.msra.mxu0 0.0
    %2347 = vmatprep.subr.mxu0 0.0
    %2348 = vmatpush1.msra.mxu0 0.0
    %2349 = vmatprep.subr.mxu0 0.0
    %2350 = vmatpush1.msra.mxu0 0.0
    %2351 = vmatprep.subr.mxu0 0.0
    %2352 = vmatpush1.msra.mxu0 0.0
    %2353 = vmatprep.subr.mxu0 0.0
    %2354 = vmatpush1.msra.mxu0 0.0
    %2355 = vmatprep.subr.mxu0 0.0
    %2356 = vmatpush1.msra.mxu0 0.0
    %2357 = vmatprep.subr.mxu0 0.0
    %2358 = vmatpush1.msra.mxu0 0.0
    %2359 = vmatprep.subr.mxu0 0.0
    %2360 = vmatpush1.msra.mxu0 0.0
    %2361 = vmatprep.subr.mxu0 0.0
    %2362 = vmatpush1.msra.mxu0 0.0
    %2363 = vmatprep.subr.mxu0 0.0
    %2364 = vmatpush1.msra.mxu0 0.0
    %2365 = vmatprep.subr.mxu0 0.0
    %2366 = vmatpush1.msra.mxu0 0.0
    %2367 = vmatprep.subr.mxu0 0.0
    %2368 = vmatpush1.msra.mxu0 0.0
    %2369 = vmatprep.subr.mxu0 0.0
    %2370 = vmatpush1.msra.mxu0 0.0
    %2371 = vmatprep.subr.mxu0 0.0
    %2372 = vmatpush1.msra.mxu0 0.0
    %2373 = vmatprep.subr.mxu0 0.0
    %2374 = vmatpush1.msra.mxu0 0.0
    %2375 = vmatprep.subr.mxu0 0.0
    %2376 = vmatpush1.msra.mxu0 0.0
    %2377 = vmatprep.subr.mxu0 0.0
    %2378 = vmatpush1.msra.mxu0 0.0
    %2379 = vmatprep.subr.mxu0 0.0
    %2380 = vmatpush1.msra.mxu0 0.0
    %2381 = vmatprep.subr.mxu0 0.0
    %2382 = vmatpush1.msra.mxu0 0.0
    %2383 = vmatprep.subr.mxu0 0.0
    %2384 = vmatpush1.msra.mxu0 0.0
    %2385 = vmatprep.subr.mxu0 0.0
    %2386 = vmatpush1.msra.mxu0 0.0
    %2387 = vmatprep.subr.mxu0 0.0
    %2388 = vmatpush1.msra.mxu0 0.0
    %2389 = vmatprep.subr.mxu0 0.0
    %2390 = vmatpush1.msra.mxu0 0.0
    %2391 = vmatprep.subr.mxu0 0.0
    %2392 = vmatpush1.msra.mxu0 0.0
    %2393 = vmatprep.subr.mxu0 0.0
    %2394 = vmatpush1.msra.mxu0 0.0
    %2395 = vmatprep.subr.mxu0 0.0
    %2396 = vmatpush1.msra.mxu0 0.0
    %2397 = vmatprep.subr.mxu0 0.0
    %2398 = vmatpush1.msra.mxu0 0.0
    %2399 = vmatprep.mubr.f32.mxu0 0.0
    %2400 = vmatmul.mubr.f32.gmra.mrb[0].mxu0 %v2146
    %v2401 = vpop.f32.mrb[0].mxu0
    %v2402 = vadd.f32 0.0, %v2401
    %v2403 = vpop.f32.mrb[0].mxu0
    %2404 = vdwg.mxu0
    %v2406 = vsel %vm234, %v2334, 0
    %2408 = vmatprep.subr.mxu0 0.0
    %2409 = vmatpush1.msra.mxu0 %v129
    %2410 = vmatprep.subr.mxu0 0.0
    %2411 = vmatpush1.msra.mxu0 %v130
    %2412 = vmatprep.subr.mxu0 0.0
    %2413 = vmatpush1.msra.mxu0 0.0
    %2414 = vmatprep.subr.mxu0 0.0
    %2415 = vmatpush1.msra.mxu0 0.0
    %2416 = vmatprep.subr.mxu0 0.0
    %2417 = vmatpush1.msra.mxu0 0.0
    %2418 = vmatprep.subr.mxu0 0.0
    %2419 = vmatpush1.msra.mxu0 0.0
    %2420 = vmatprep.subr.mxu0 0.0
    %2421 = vmatpush1.msra.mxu0 0.0
    %2422 = vmatprep.subr.mxu0 0.0
    %2423 = vmatpush1.msra.mxu0 0.0
    %2424 = vmatprep.subr.mxu0 0.0
    %2425 = vmatpush1.msra.mxu0 0.0
    %2426 = vmatprep.subr.mxu0 0.0
    %2427 = vmatpush1.msra.mxu0 0.0
    %2428 = vmatprep.subr.mxu0 0.0
    %2429 = vmatpush1.msra.mxu0 0.0
    %2430 = vmatprep.subr.mxu0 0.0
    %2431 = vmatpush1.msra.mxu0 0.0
    %2432 = vmatprep.subr.mxu0 0.0
    %2433 = vmatpush1.msra.mxu0 0.0
    %2434 = vmatprep.subr.mxu0 0.0
    %2435 = vmatpush1.msra.mxu0 0.0
    %2436 = vmatprep.subr.mxu0 0.0
    %2437 = vmatpush1.msra.mxu0 0.0
    %2438 = vmatprep.subr.mxu0 0.0
    %2439 = vmatpush1.msra.mxu0 0.0
    %2440 = vmatprep.subr.mxu0 0.0
    %2441 = vmatpush1.msra.mxu0 0.0
    %2442 = vmatprep.subr.mxu0 0.0
    %2443 = vmatpush1.msra.mxu0 0.0
    %2444 = vmatprep.subr.mxu0 0.0
    %2445 = vmatpush1.msra.mxu0 0.0
    %2446 = vmatprep.subr.mxu0 0.0
    %2447 = vmatpush1.msra.mxu0 0.0
    %2448 = vmatprep.subr.mxu0 0.0
    %2449 = vmatpush1.msra.mxu0 0.0
    %2450 = vmatprep.subr.mxu0 0.0
    %2451 = vmatpush1.msra.mxu0 0.0
    %2452 = vmatprep.subr.mxu0 0.0
    %2453 = vmatpush1.msra.mxu0 0.0
    %2454 = vmatprep.subr.mxu0 0.0
    %2455 = vmatpush1.msra.mxu0 0.0
    %2456 = vmatprep.subr.mxu0 0.0
    %2457 = vmatpush1.msra.mxu0 0.0
    %2458 = vmatprep.subr.mxu0 0.0
    %2459 = vmatpush1.msra.mxu0 0.0
    %2460 = vmatprep.subr.mxu0 0.0
    %2461 = vmatpush1.msra.mxu0 0.0
    %2462 = vmatprep.subr.mxu0 0.0
    %2463 = vmatpush1.msra.mxu0 0.0
    %2464 = vmatprep.subr.mxu0 0.0
    %2465 = vmatpush1.msra.mxu0 0.0
    %2466 = vmatprep.subr.mxu0 0.0
    %2467 = vmatpush1.msra.mxu0 0.0
    %2468 = vmatprep.subr.mxu0 0.0
    %2469 = vmatpush1.msra.mxu0 0.0
    %2470 = vmatprep.subr.mxu0 0.0
    %2471 = vmatpush1.msra.mxu0 0.0
    %2472 = vmatprep.mubr.f32.mxu0 0.0
    %2473 = vmatmul.mubr.f32.gmra.mrb[0].mxu0 %v2406
    %v2474 = vpop.f32.mrb[0].mxu0
    %v2475 = vadd.f32 %v2402, %v2474
    %v2476 = vpop.f32.mrb[0].mxu0
    %2477 = vdwg.mxu0
    %v2478 = vadd.f32 %v2475, %v135
    %v2479 = vxor.u32 %v2478, 2147483648
    %v2480 = vmul.f32 %v2479, 1.442695
    %v2481 = vpow.pop %v2480
    %v2482 = vadd.f32 %v2481, 1.0
    %v2483 = vrcp.pop %v2482
    %v2484 = vmul.f32 1.0, %v2483
    %v2485 = vtanh.pop %v2478
    %v2486 = vmul.f32 %v2484, %v2066
    %2488 = vrot.lane.b32.xlu0 %v2485, 64
    %v2489 = vpop.permute.xlu0 %2488
    %v2491 = vmul.f32 %v2484, %v2489
    %2493 = vrot.lane.b32.xlu0 %v2491, 32
    %v2494 = vpop.permute.xlu0 %2493
    %v2496 = vadd.f32 %v2486, %v2494
    %v2497 = vtanh.pop %v2496
    %2499 = vrot.lane.b32.xlu0 %v2497, 64
    %v2500 = vpop.permute.xlu0 %2499
    %v2502 = vmul.f32 %v2484, %v2500
    %2503 = vmatprep.subr.mxu0 0.0
    %2504 = vmatpush1.msra.mxu0 %v140
    %2505 = vmatprep.subr.mxu0 0.0
    %2506 = vmatpush1.msra.mxu0 %v141
    %2507 = vmatprep.subr.mxu0 0.0
    %2508 = vmatpush1.msra.mxu0 %v142
    %2509 = vmatprep.subr.mxu0 0.0
    %2510 = vmatpush1.msra.mxu0 %v143
    %2511 = vmatprep.subr.mxu0 0.0
    %2512 = vmatpush1.msra.mxu0 0.0
    %2513 = vmatprep.subr.mxu0 0.0
    %2514 = vmatpush1.msra.mxu0 0.0
    %2515 = vmatprep.subr.mxu0 0.0
    %2516 = vmatpush1.msra.mxu0 0.0
    %2517 = vmatprep.subr.mxu0 0.0
    %2518 = vmatpush1.msra.mxu0 0.0
    %2519 = vmatprep.subr.mxu0 0.0
    %2520 = vmatpush1.msra.mxu0 0.0
    %2521 = vmatprep.subr.mxu0 0.0
    %2522 = vmatpush1.msra.mxu0 0.0
    %2523 = vmatprep.subr.mxu0 0.0
    %2524 = vmatpush1.msra.mxu0 0.0
    %2525 = vmatprep.subr.mxu0 0.0
    %2526 = vmatpush1.msra.mxu0 0.0
    %2527 = vmatprep.subr.mxu0 0.0
    %2528 = vmatpush1.msra.mxu0 0.0
    %2529 = vmatprep.subr.mxu0 0.0
    %2530 = vmatpush1.msra.mxu0 0.0
    %2531 = vmatprep.subr.mxu0 0.0
    %2532 = vmatpush1.msra.mxu0 0.0
    %2533 = vmatprep.subr.mxu0 0.0
    %2534 = vmatpush1.msra.mxu0 0.0
    %2535 = vmatprep.subr.mxu0 0.0
    %2536 = vmatpush1.msra.mxu0 0.0
    %2537 = vmatprep.subr.mxu0 0.0
    %2538 = vmatpush1.msra.mxu0 0.0
    %2539 = vmatprep.subr.mxu0 0.0
    %2540 = vmatpush1.msra.mxu0 0.0
    %2541 = vmatprep.subr.mxu0 0.0
    %2542 = vmatpush1.msra.mxu0 0.0
    %2543 = vmatprep.subr.mxu0 0.0
    %2544 = vmatpush1.msra.mxu0 0.0
    %2545 = vmatprep.subr.mxu0 0.0
    %2546 = vmatpush1.msra.mxu0 0.0
    %2547 = vmatprep.subr.mxu0 0.0
    %2548 = vmatpush1.msra.mxu0 0.0
    %2549 = vmatprep.subr.mxu0 0.0
    %2550 = vmatpush1.msra.mxu0 0.0
    %2551 = vmatprep.subr.mxu0 0.0
    %2552 = vmatpush1.msra.mxu0 0.0
    %2553 = vmatprep.subr.mxu0 0.0
    %2554 = vmatpush1.msra.mxu0 0.0
    %2555 = vmatprep.subr.mxu0 0.0
    %2556 = vmatpush1.msra.mxu0 0.0
    %2557 = vmatprep.subr.mxu0 0.0
    %2558 = vmatpush1.msra.mxu0 0.0
    %2559 = vmatprep.subr.mxu0 0.0
    %2560 = vmatpush1.msra.mxu0 0.0
    %2561 = vmatprep.subr.mxu0 0.0
    %2562 = vmatpush1.msra.mxu0 0.0
    %2563 = vmatprep.subr.mxu0 0.0
    %2564 = vmatpush1.msra.mxu0 0.0
    %2565 = vmatprep.subr.mxu0 0.0
    %2566 = vmatpush1.msra.mxu0 0.0
    %2567 = vmatprep.mubr.f32.mxu0 0.0
    %2568 = vmatmul.mubr.f32.gmra.mrb[0].mxu0 %v2246
    %v2569 = vpop.f32.mrb[0].mxu0
    %v2570 = vadd.f32 0.0, %v2569
    %v2571 = vpop.f32.mrb[0].mxu0
    %2572 = vdwg.mxu0
    %2574 = vrot.lane.b32.xlu0 %v2502, 32
    %v2575 = vpop.permute.xlu0 %2574
    %v2576 = vsel %vm160, %v2575, 0
    %2578 = vmatprep.subr.mxu0 0.0
    %2579 = vmatpush1.msra.mxu0 %v136
    %2580 = vmatprep.subr.mxu0 0.0
    %2581 = vmatpush1.msra.mxu0 %v137
    %2582 = vmatprep.subr.mxu0 0.0
    %2583 = vmatpush1.msra.mxu0 %v138
    %2584 = vmatprep.subr.mxu0 0.0
    %2585 = vmatpush1.msra.mxu0 %v139
    %2586 = vmatprep.subr.mxu0 0.0
    %2587 = vmatpush1.msra.mxu0 0.0
    %2588 = vmatprep.subr.mxu0 0.0
    %2589 = vmatpush1.msra.mxu0 0.0
    %2590 = vmatprep.subr.mxu0 0.0
    %2591 = vmatpush1.msra.mxu0 0.0
    %2592 = vmatprep.subr.mxu0 0.0
    %2593 = vmatpush1.msra.mxu0 0.0
    %2594 = vmatprep.subr.mxu0 0.0
    %2595 = vmatpush1.msra.mxu0 0.0
    %2596 = vmatprep.subr.mxu0 0.0
    %2597 = vmatpush1.msra.mxu0 0.0
    %2598 = vmatprep.subr.mxu0 0.0
    %2599 = vmatpush1.msra.mxu0 0.0
    %2600 = vmatprep.subr.mxu0 0.0
    %2601 = vmatpush1.msra.mxu0 0.0
    %2602 = vmatprep.subr.mxu0 0.0
    %2603 = vmatpush1.msra.mxu0 0.0
    %2604 = vmatprep.subr.mxu0 0.0
    %2605 = vmatpush1.msra.mxu0 0.0
    %2606 = vmatprep.subr.mxu0 0.0
    %2607 = vmatpush1.msra.mxu0 0.0
    %2608 = vmatprep.subr.mxu0 0.0
    %2609 = vmatpush1.msra.mxu0 0.0
    %2610 = vmatprep.subr.mxu0 0.0
    %2611 = vmatpush1.msra.mxu0 0.0
    %2612 = vmatprep.subr.mxu0 0.0
    %2613 = vmatpush1.msra.mxu0 0.0
    %2614 = vmatprep.subr.mxu0 0.0
    %2615 = vmatpush1.msra.mxu0 0.0
    %2616 = vmatprep.subr.mxu0 0.0
    %2617 = vmatpush1.msra.mxu0 0.0
    %2618 = vmatprep.subr.mxu0 0.0
    %2619 = vmatpush1.msra.mxu0 0.0
    %2620 = vmatprep.subr.mxu0 0.0
    %2621 = vmatpush1.msra.mxu0 0.0
    %2622 = vmatprep.subr.mxu0 0.0
    %2623 = vmatpush1.msra.mxu0 0.0
    %2624 = vmatprep.subr.mxu0 0.0
    %2625 = vmatpush1.msra.mxu0 0.0
    %2626 = vmatprep.subr.mxu0 0.0
    %2627 = vmatpush1.msra.mxu0 0.0
    %2628 = vmatprep.subr.mxu0 0.0
    %2629 = vmatpush1.msra.mxu0 0.0
    %2630 = vmatprep.subr.mxu0 0.0
    %2631 = vmatpush1.msra.mxu0 0.0
    %2632 = vmatprep.subr.mxu0 0.0
    %2633 = vmatpush1.msra.mxu0 0.0
    %2634 = vmatprep.subr.mxu0 0.0
    %2635 = vmatpush1.msra.mxu0 0.0
    %2636 = vmatprep.subr.mxu0 0.0
    %2637 = vmatpush1.msra.mxu0 0.0
    %2638 = vmatprep.subr.mxu0 0.0
    %2639 = vmatpush1.msra.mxu0 0.0
    %2640 = vmatprep.subr.mxu0 0.0
    %2641 = vmatpush1.msra.mxu0 0.0
    %2642 = vmatprep.mubr.f32.mxu0 0.0
    %2643 = vmatmul.mubr.f32.gmra.mrb[0].mxu0 %v2576
    %v2644 = vpop.f32.mrb[0].mxu0
    %v2645 = vadd.f32 %v2570, %v2644
    %v2646 = vpop.f32.mrb[0].mxu0
    %2647 = vdwg.mxu0
    %v2648 = vadd.f32 %v2645, %v144
    %v2649 = vxor.u32 %v2648, 2147483648
    %v2650 = vmul.f32 %v2649, 1.442695
    %v2651 = vpow.pop %v2650
    %v2652 = vadd.f32 %v2651, 1.0
    %v2653 = vrcp.pop %v2652
    %v2654 = vmul.f32 1.0, %v2653
    %v2655 = vtanh.pop %v2648
    %v2656 = vmul.f32 %v2654, %v2236
    %2658 = vrot.lane.b32.xlu0 %v2655, 64
    %v2659 = vpop.permute.xlu0 %2658
    %v2661 = vmul.f32 %v2654, %v2659
    %2663 = vrot.lane.b32.xlu0 %v2661, 32
    %v2664 = vpop.permute.xlu0 %2663
    %v2666 = vadd.f32 %v2656, %v2664
    %v2667 = vtanh.pop %v2666
    %2669 = vrot.lane.b32.xlu0 %v2667, 64
    %v2670 = vpop.permute.xlu0 %2669
    %v2672 = vmul.f32 %v2654, %v2670
    %2674 = vrot.lane.b32.xlu0 %v2672, 32
    %v2675 = vpop.permute.xlu0 %2674
    %v2676 = vsel %vm160, %v2675, 0
    %2678 = vmatprep.subr.mxu0 0.0
    %2679 = vmatpush1.msra.mxu0 %v145
    %2680 = vmatprep.subr.mxu0 0.0
    %2681 = vmatpush1.msra.mxu0 %v146
    %2682 = vmatprep.subr.mxu0 0.0
    %2683 = vmatpush1.msra.mxu0 %v147
    %2684 = vmatprep.subr.mxu0 0.0
    %2685 = vmatpush1.msra.mxu0 %v148
    %2686 = vmatprep.subr.mxu0 0.0
    %2687 = vmatpush1.msra.mxu0 0.0
    %2688 = vmatprep.subr.mxu0 0.0
    %2689 = vmatpush1.msra.mxu0 0.0
    %2690 = vmatprep.subr.mxu0 0.0
    %2691 = vmatpush1.msra.mxu0 0.0
    %2692 = vmatprep.subr.mxu0 0.0
    %2693 = vmatpush1.msra.mxu0 0.0
    %2694 = vmatprep.subr.mxu0 0.0
    %2695 = vmatpush1.msra.mxu0 0.0
    %2696 = vmatprep.subr.mxu0 0.0
    %2697 = vmatpush1.msra.mxu0 0.0
    %2698 = vmatprep.subr.mxu0 0.0
    %2699 = vmatpush1.msra.mxu0 0.0
    %2700 = vmatprep.subr.mxu0 0.0
    %2701 = vmatpush1.msra.mxu0 0.0
    %2702 = vmatprep.subr.mxu0 0.0
    %2703 = vmatpush1.msra.mxu0 0.0
    %2704 = vmatprep.subr.mxu0 0.0
    %2705 = vmatpush1.msra.mxu0 0.0
    %2706 = vmatprep.subr.mxu0 0.0
    %2707 = vmatpush1.msra.mxu0 0.0
    %2708 = vmatprep.subr.mxu0 0.0
    %2709 = vmatpush1.msra.mxu0 0.0
    %2710 = vmatprep.subr.mxu0 0.0
    %2711 = vmatpush1.msra.mxu0 0.0
    %2712 = vmatprep.subr.mxu0 0.0
    %2713 = vmatpush1.msra.mxu0 0.0
    %2714 = vmatprep.subr.mxu0 0.0
    %2715 = vmatpush1.msra.mxu0 0.0
    %2716 = vmatprep.subr.mxu0 0.0
    %2717 = vmatpush1.msra.mxu0 0.0
    %2718 = vmatprep.subr.mxu0 0.0
    %2719 = vmatpush1.msra.mxu0 0.0
    %2720 = vmatprep.subr.mxu0 0.0
    %2721 = vmatpush1.msra.mxu0 0.0
    %2722 = vmatprep.subr.mxu0 0.0
    %2723 = vmatpush1.msra.mxu0 0.0
    %2724 = vmatprep.subr.mxu0 0.0
    %2725 = vmatpush1.msra.mxu0 0.0
    %2726 = vmatprep.subr.mxu0 0.0
    %2727 = vmatpush1.msra.mxu0 0.0
    %2728 = vmatprep.subr.mxu0 0.0
    %2729 = vmatpush1.msra.mxu0 0.0
    %2730 = vmatprep.subr.mxu0 0.0
    %2731 = vmatpush1.msra.mxu0 0.0
    %2732 = vmatprep.subr.mxu0 0.0
    %2733 = vmatpush1.msra.mxu0 0.0
    %2734 = vmatprep.subr.mxu0 0.0
    %2735 = vmatpush1.msra.mxu0 0.0
    %2736 = vmatprep.subr.mxu0 0.0
    %2737 = vmatpush1.msra.mxu0 0.0
    %2738 = vmatprep.subr.mxu0 0.0
    %2739 = vmatpush1.msra.mxu0 0.0
    %2740 = vmatprep.subr.mxu0 0.0
    %2741 = vmatpush1.msra.mxu0 0.0
    %2742 = vmatprep.mubr.f32.mxu0 0.0
    %2743 = vmatmul.mubr.f32.gmra.mrb[0].mxu0 %v2676
    %v2744 = vpop.f32.mrb[0].mxu0
    %v2745 = vadd.f32 %v149, %v2744
    %v2746 = vpop.f32.mrb[0].mxu0
    %2747 = vdwg.mxu0
    %v2748 = vsel %vm597, %v2745, -inf
    %2749 = vmax.xlane.f32.xlu0 %v2748
    %v2750 = vpop.xlane.xlu0 %2749
    %v2751 = vsub.f32 %v2745, %v2750
    %v2752 = vmul.f32 %v2751, 1.442695
    %v2753 = vpow.pop %v2752
    %v2754 = vsel %vm597, %v2753, 0.0
    %2755 = vadd.xlane.f32.xlu0 %v2754
    %v2756 = vpop.xlane.xlu0 %2755
    %v2757 = vlog2.pop %v2756
    %v2758 = vmul.f32 %v2757, 0.6931472
    %v2759 = vadd.f32 %v2758, %v2750
    %v2760 = vsub.f32 %v2745, %v2759
    %s2761 = sld [smem:[#allocation3 + $0x6]]
    %s2762 = scalar_lea.vmem [#allocation4], %s2761
    %v2763 = vld [vmem:[%s2762] sm:$0x1]
    %v2764 = vmax.f32 %v2763, 0.0
    %2765 = vmatprep.subr.mxu0 0.0
    %2766 = vmatpush1.msra.mxu0 %v131
    %2767 = vmatprep.subr.mxu0 0.0
    %2768 = vmatpush1.msra.mxu0 %v132
    %2769 = vmatprep.subr.mxu0 0.0
    %2770 = vmatpush1.msra.mxu0 %v133
    %2771 = vmatprep.subr.mxu0 0.0
    %2772 = vmatpush1.msra.mxu0 %v134
    %2773 = vmatprep.subr.mxu0 0.0
    %2774 = vmatpush1.msra.mxu0 0.0
    %2775 = vmatprep.subr.mxu0 0.0
    %2776 = vmatpush1.msra.mxu0 0.0
    %2777 = vmatprep.subr.mxu0 0.0
    %2778 = vmatpush1.msra.mxu0 0.0
    %2779 = vmatprep.subr.mxu0 0.0
    %2780 = vmatpush1.msra.mxu0 0.0
    %2781 = vmatprep.subr.mxu0 0.0
    %2782 = vmatpush1.msra.mxu0 0.0
    %2783 = vmatprep.subr.mxu0 0.0
    %2784 = vmatpush1.msra.mxu0 0.0
    %2785 = vmatprep.subr.mxu0 0.0
    %2786 = vmatpush1.msra.mxu0 0.0
    %2787 = vmatprep.subr.mxu0 0.0
    %2788 = vmatpush1.msra.mxu0 0.0
    %2789 = vmatprep.subr.mxu0 0.0
    %2790 = vmatpush1.msra.mxu0 0.0
    %2791 = vmatprep.subr.mxu0 0.0
    %2792 = vmatpush1.msra.mxu0 0.0
    %2793 = vmatprep.subr.mxu0 0.0
    %2794 = vmatpush1.msra.mxu0 0.0
    %2795 = vmatprep.subr.mxu0 0.0
    %2796 = vmatpush1.msra.mxu0 0.0
    %2797 = vmatprep.subr.mxu0 0.0
    %2798 = vmatpush1.msra.mxu0 0.0
    %2799 = vmatprep.subr.mxu0 0.0
    %2800 = vmatpush1.msra.mxu0 0.0
    %2801 = vmatprep.subr.mxu0 0.0
    %2802 = vmatpush1.msra.mxu0 0.0
    %2803 = vmatprep.subr.mxu0 0.0
    %2804 = vmatpush1.msra.mxu0 0.0
    %2805 = vmatprep.subr.mxu0 0.0
    %2806 = vmatpush1.msra.mxu0 0.0
    %2807 = vmatprep.subr.mxu0 0.0
    %2808 = vmatpush1.msra.mxu0 0.0
    %2809 = vmatprep.subr.mxu0 0.0
    %2810 = vmatpush1.msra.mxu0 0.0
    %2811 = vmatprep.subr.mxu0 0.0
    %2812 = vmatpush1.msra.mxu0 0.0
    %2813 = vmatprep.subr.mxu0 0.0
    %2814 = vmatpush1.msra.mxu0 0.0
    %2815 = vmatprep.subr.mxu0 0.0
    %2816 = vmatpush1.msra.mxu0 0.0
    %2817 = vmatprep.subr.mxu0 0.0
    %2818 = vmatpush1.msra.mxu0 0.0
    %2819 = vmatprep.subr.mxu0 0.0
    %2820 = vmatpush1.msra.mxu0 0.0
    %2821 = vmatprep.subr.mxu0 0.0
    %2822 = vmatpush1.msra.mxu0 0.0
    %2823 = vmatprep.subr.mxu0 0.0
    %2824 = vmatpush1.msra.mxu0 0.0
    %2825 = vmatprep.subr.mxu0 0.0
    %2826 = vmatpush1.msra.mxu0 0.0
    %2827 = vmatprep.subr.mxu0 0.0
    %2828 = vmatpush1.msra.mxu0 0.0
    %2829 = vmatprep.mubr.f32.mxu0 0.0
    %2830 = vmatmul.mubr.f32.gmra.mrb[0].mxu0 %v2576
    %v2831 = vpop.f32.mrb[0].mxu0
    %v2832 = vadd.f32 0.0, %v2831
    %v2833 = vpop.f32.mrb[0].mxu0
    %2834 = vdwg.mxu0
    %v2836 = vsel %vm234, %v2764, 0
    %2838 = vmatprep.subr.mxu0 0.0
    %2839 = vmatpush1.msra.mxu0 %v129
    %2840 = vmatprep.subr.mxu0 0.0
    %2841 = vmatpush1.msra.mxu0 %v130
    %2842 = vmatprep.subr.mxu0 0.0
    %2843 = vmatpush1.msra.mxu0 0.0
    %2844 = vmatprep.subr.mxu0 0.0
    %2845 = vmatpush1.msra.mxu0 0.0
    %2846 = vmatprep.subr.mxu0 0.0
    %2847 = vmatpush1.msra.mxu0 0.0
    %2848 = vmatprep.subr.mxu0 0.0
    %2849 = vmatpush1.msra.mxu0 0.0
    %2850 = vmatprep.subr.mxu0 0.0
    %2851 = vmatpush1.msra.mxu0 0.0
    %2852 = vmatprep.subr.mxu0 0.0
    %2853 = vmatpush1.msra.mxu0 0.0
    %2854 = vmatprep.subr.mxu0 0.0
    %2855 = vmatpush1.msra.mxu0 0.0
    %2856 = vmatprep.subr.mxu0 0.0
    %2857 = vmatpush1.msra.mxu0 0.0
    %2858 = vmatprep.subr.mxu0 0.0
    %2859 = vmatpush1.msra.mxu0 0.0
    %2860 = vmatprep.subr.mxu0 0.0
    %2861 = vmatpush1.msra.mxu0 0.0
    %2862 = vmatprep.subr.mxu0 0.0
    %2863 = vmatpush1.msra.mxu0 0.0
    %2864 = vmatprep.subr.mxu0 0.0
    %2865 = vmatpush1.msra.mxu0 0.0
    %2866 = vmatprep.subr.mxu0 0.0
    %2867 = vmatpush1.msra.mxu0 0.0
    %2868 = vmatprep.subr.mxu0 0.0
    %2869 = vmatpush1.msra.mxu0 0.0
    %2870 = vmatprep.subr.mxu0 0.0
    %2871 = vmatpush1.msra.mxu0 0.0
    %2872 = vmatprep.subr.mxu0 0.0
    %2873 = vmatpush1.msra.mxu0 0.0
    %2874 = vmatprep.subr.mxu0 0.0
    %2875 = vmatpush1.msra.mxu0 0.0
    %2876 = vmatprep.subr.mxu0 0.0
    %2877 = vmatpush1.msra.mxu0 0.0
    %2878 = vmatprep.subr.mxu0 0.0
    %2879 = vmatpush1.msra.mxu0 0.0
    %2880 = vmatprep.subr.mxu0 0.0
    %2881 = vmatpush1.msra.mxu0 0.0
    %2882 = vmatprep.subr.mxu0 0.0
    %2883 = vmatpush1.msra.mxu0 0.0
    %2884 = vmatprep.subr.mxu0 0.0
    %2885 = vmatpush1.msra.mxu0 0.0
    %2886 = vmatprep.subr.mxu0 0.0
    %2887 = vmatpush1.msra.mxu0 0.0
    %2888 = vmatprep.subr.mxu0 0.0
    %2889 = vmatpush1.msra.mxu0 0.0
    %2890 = vmatprep.subr.mxu0 0.0
    %2891 = vmatpush1.msra.mxu0 0.0
    %2892 = vmatprep.subr.mxu0 0.0
    %2893 = vmatpush1.msra.mxu0 0.0
    %2894 = vmatprep.subr.mxu0 0.0
    %2895 = vmatpush1.msra.mxu0 0.0
    %2896 = vmatprep.subr.mxu0 0.0
    %2897 = vmatpush1.msra.mxu0 0.0
    %2898 = vmatprep.subr.mxu0 0.0
    %2899 = vmatpush1.msra.mxu0 0.0
    %2900 = vmatprep.subr.mxu0 0.0
    %2901 = vmatpush1.msra.mxu0 0.0
    %2902 = vmatprep.mubr.f32.mxu0 0.0
    %2903 = vmatmul.mubr.f32.gmra.mrb[0].mxu0 %v2836
    %v2904 = vpop.f32.mrb[0].mxu0
    %v2905 = vadd.f32 %v2832, %v2904
    %v2906 = vpop.f32.mrb[0].mxu0
    %2907 = vdwg.mxu0
    %v2908 = vadd.f32 %v2905, %v135
    %v2909 = vxor.u32 %v2908, 2147483648
    %v2910 = vmul.f32 %v2909, 1.442695
    %v2911 = vpow.pop %v2910
    %v2912 = vadd.f32 %v2911, 1.0
    %v2913 = vrcp.pop %v2912
    %v2914 = vmul.f32 1.0, %v2913
    %v2915 = vtanh.pop %v2908
    %v2916 = vmul.f32 %v2914, %v2496
    %2918 = vrot.lane.b32.xlu0 %v2915, 64
    %v2919 = vpop.permute.xlu0 %2918
    %v2921 = vmul.f32 %v2914, %v2919
    %2923 = vrot.lane.b32.xlu0 %v2921, 32
    %v2924 = vpop.permute.xlu0 %2923
    %v2926 = vadd.f32 %v2916, %v2924
    %v2927 = vtanh.pop %v2926
    %2929 = vrot.lane.b32.xlu0 %v2927, 64
    %v2930 = vpop.permute.xlu0 %2929
    %v2932 = vmul.f32 %v2914, %v2930
    %2933 = vmatprep.subr.mxu0 0.0
    %2934 = vmatpush1.msra.mxu0 %v140
    %2935 = vmatprep.subr.mxu0 0.0
    %2936 = vmatpush1.msra.mxu0 %v141
    %2937 = vmatprep.subr.mxu0 0.0
    %2938 = vmatpush1.msra.mxu0 %v142
    %2939 = vmatprep.subr.mxu0 0.0
    %2940 = vmatpush1.msra.mxu0 %v143
    %2941 = vmatprep.subr.mxu0 0.0
    %2942 = vmatpush1.msra.mxu0 0.0
    %2943 = vmatprep.subr.mxu0 0.0
    %2944 = vmatpush1.msra.mxu0 0.0
    %2945 = vmatprep.subr.mxu0 0.0
    %2946 = vmatpush1.msra.mxu0 0.0
    %2947 = vmatprep.subr.mxu0 0.0
    %2948 = vmatpush1.msra.mxu0 0.0
    %2949 = vmatprep.subr.mxu0 0.0
    %2950 = vmatpush1.msra.mxu0 0.0
    %2951 = vmatprep.subr.mxu0 0.0
    %2952 = vmatpush1.msra.mxu0 0.0
    %2953 = vmatprep.subr.mxu0 0.0
    %2954 = vmatpush1.msra.mxu0 0.0
    %2955 = vmatprep.subr.mxu0 0.0
    %2956 = vmatpush1.msra.mxu0 0.0
    %2957 = vmatprep.subr.mxu0 0.0
    %2958 = vmatpush1.msra.mxu0 0.0
    %2959 = vmatprep.subr.mxu0 0.0
    %2960 = vmatpush1.msra.mxu0 0.0
    %2961 = vmatprep.subr.mxu0 0.0
    %2962 = vmatpush1.msra.mxu0 0.0
    %2963 = vmatprep.subr.mxu0 0.0
    %2964 = vmatpush1.msra.mxu0 0.0
    %2965 = vmatprep.subr.mxu0 0.0
    %2966 = vmatpush1.msra.mxu0 0.0
    %2967 = vmatprep.subr.mxu0 0.0
    %2968 = vmatpush1.msra.mxu0 0.0
    %2969 = vmatprep.subr.mxu0 0.0
    %2970 = vmatpush1.msra.mxu0 0.0
    %2971 = vmatprep.subr.mxu0 0.0
    %2972 = vmatpush1.msra.mxu0 0.0
    %2973 = vmatprep.subr.mxu0 0.0
    %2974 = vmatpush1.msra.mxu0 0.0
    %2975 = vmatprep.subr.mxu0 0.0
    %2976 = vmatpush1.msra.mxu0 0.0
    %2977 = vmatprep.subr.mxu0 0.0
    %2978 = vmatpush1.msra.mxu0 0.0
    %2979 = vmatprep.subr.mxu0 0.0
    %2980 = vmatpush1.msra.mxu0 0.0
    %2981 = vmatprep.subr.mxu0 0.0
    %2982 = vmatpush1.msra.mxu0 0.0
    %2983 = vmatprep.subr.mxu0 0.0
    %2984 = vmatpush1.msra.mxu0 0.0
    %2985 = vmatprep.subr.mxu0 0.0
    %2986 = vmatpush1.msra.mxu0 0.0
    %2987 = vmatprep.subr.mxu0 0.0
    %2988 = vmatpush1.msra.mxu0 0.0
    %2989 = vmatprep.subr.mxu0 0.0
    %2990 = vmatpush1.msra.mxu0 0.0
    %2991 = vmatprep.subr.mxu0 0.0
    %2992 = vmatpush1.msra.mxu0 0.0
    %2993 = vmatprep.subr.mxu0 0.0
    %2994 = vmatpush1.msra.mxu0 0.0
    %2995 = vmatprep.subr.mxu0 0.0
    %2996 = vmatpush1.msra.mxu0 0.0
    %2997 = vmatprep.mubr.f32.mxu0 0.0
    %2998 = vmatmul.mubr.f32.gmra.mrb[0].mxu0 %v2676
    %v2999 = vpop.f32.mrb[0].mxu0
    %v3000 = vadd.f32 0.0, %v2999
    %v3001 = vpop.f32.mrb[0].mxu0
    %3002 = vdwg.mxu0
    %3004 = vrot.lane.b32.xlu0 %v2932, 32
    %v3005 = vpop.permute.xlu0 %3004
    %v3006 = vsel %vm160, %v3005, 0
    %3008 = vmatprep.subr.mxu0 0.0
    %3009 = vmatpush1.msra.mxu0 %v136
    %3010 = vmatprep.subr.mxu0 0.0
    %3011 = vmatpush1.msra.mxu0 %v137
    %3012 = vmatprep.subr.mxu0 0.0
    %3013 = vmatpush1.msra.mxu0 %v138
    %3014 = vmatprep.subr.mxu0 0.0
    %3015 = vmatpush1.msra.mxu0 %v139
    %3016 = vmatprep.subr.mxu0 0.0
    %3017 = vmatpush1.msra.mxu0 0.0
    %3018 = vmatprep.subr.mxu0 0.0
    %3019 = vmatpush1.msra.mxu0 0.0
    %3020 = vmatprep.subr.mxu0 0.0
    %3021 = vmatpush1.msra.mxu0 0.0
    %3022 = vmatprep.subr.mxu0 0.0
    %3023 = vmatpush1.msra.mxu0 0.0
    %3024 = vmatprep.subr.mxu0 0.0
    %3025 = vmatpush1.msra.mxu0 0.0
    %3026 = vmatprep.subr.mxu0 0.0
    %3027 = vmatpush1.msra.mxu0 0.0
    %3028 = vmatprep.subr.mxu0 0.0
    %3029 = vmatpush1.msra.mxu0 0.0
    %3030 = vmatprep.subr.mxu0 0.0
    %3031 = vmatpush1.msra.mxu0 0.0
    %3032 = vmatprep.subr.mxu0 0.0
    %3033 = vmatpush1.msra.mxu0 0.0
    %3034 = vmatprep.subr.mxu0 0.0
    %3035 = vmatpush1.msra.mxu0 0.0
    %3036 = vmatprep.subr.mxu0 0.0
    %3037 = vmatpush1.msra.mxu0 0.0
    %3038 = vmatprep.subr.mxu0 0.0
    %3039 = vmatpush1.msra.mxu0 0.0
    %3040 = vmatprep.subr.mxu0 0.0
    %3041 = vmatpush1.msra.mxu0 0.0
    %3042 = vmatprep.subr.mxu0 0.0
    %3043 = vmatpush1.msra.mxu0 0.0
    %3044 = vmatprep.subr.mxu0 0.0
    %3045 = vmatpush1.msra.mxu0 0.0
    %3046 = vmatprep.subr.mxu0 0.0
    %3047 = vmatpush1.msra.mxu0 0.0
    %3048 = vmatprep.subr.mxu0 0.0
    %3049 = vmatpush1.msra.mxu0 0.0
    %3050 = vmatprep.subr.mxu0 0.0
    %3051 = vmatpush1.msra.mxu0 0.0
    %3052 = vmatprep.subr.mxu0 0.0
    %3053 = vmatpush1.msra.mxu0 0.0
    %3054 = vmatprep.subr.mxu0 0.0
    %3055 = vmatpush1.msra.mxu0 0.0
    %3056 = vmatprep.subr.mxu0 0.0
    %3057 = vmatpush1.msra.mxu0 0.0
    %3058 = vmatprep.subr.mxu0 0.0
    %3059 = vmatpush1.msra.mxu0 0.0
    %3060 = vmatprep.subr.mxu0 0.0
    %3061 = vmatpush1.msra.mxu0 0.0
    %3062 = vmatprep.subr.mxu0 0.0
    %3063 = vmatpush1.msra.mxu0 0.0
    %3064 = vmatprep.subr.mxu0 0.0
    %3065 = vmatpush1.msra.mxu0 0.0
    %3066 = vmatprep.subr.mxu0 0.0
    %3067 = vmatpush1.msra.mxu0 0.0
    %3068 = vmatprep.subr.mxu0 0.0
    %3069 = vmatpush1.msra.mxu0 0.0
    %3070 = vmatprep.subr.mxu0 0.0
    %3071 = vmatpush1.msra.mxu0 0.0
    %3072 = vmatprep.mubr.f32.mxu0 0.0
    %3073 = vmatmul.mubr.f32.gmra.mrb[0].mxu0 %v3006
    %v3074 = vpop.f32.mrb[0].mxu0
    %v3075 = vadd.f32 %v3000, %v3074
    %v3076 = vpop.f32.mrb[0].mxu0
    %3077 = vdwg.mxu0
    %v3078 = vadd.f32 %v3075, %v144
    %v3079 = vxor.u32 %v3078, 2147483648
    %v3080 = vmul.f32 %v3079, 1.442695
    %v3081 = vpow.pop %v3080
    %v3082 = vadd.f32 %v3081, 1.0
    %v3083 = vrcp.pop %v3082
    %v3084 = vmul.f32 1.0, %v3083
    %v3085 = vtanh.pop %v3078
    %v3086 = vmul.f32 %v3084, %v2666
    %3088 = vrot.lane.b32.xlu0 %v3085, 64
    %v3089 = vpop.permute.xlu0 %3088
    %v3091 = vmul.f32 %v3084, %v3089
    %3093 = vrot.lane.b32.xlu0 %v3091, 32
    %v3094 = vpop.permute.xlu0 %3093
    %v3096 = vadd.f32 %v3086, %v3094
    %v3097 = vtanh.pop %v3096
    %3099 = vrot.lane.b32.xlu0 %v3097, 64
    %v3100 = vpop.permute.xlu0 %3099
    %v3102 = vmul.f32 %v3084, %v3100
    %3104 = vrot.lane.b32.xlu0 %v3102, 32
    %v3105 = vpop.permute.xlu0 %3104
    %v3106 = vsel %vm160, %v3105, 0
    %3108 = vmatprep.subr.mxu0 0.0
    %3109 = vmatpush1.msra.mxu0 %v145
    %3110 = vmatprep.subr.mxu0 0.0
    %3111 = vmatpush1.msra.mxu0 %v146
    %3112 = vmatprep.subr.mxu0 0.0
    %3113 = vmatpush1.msra.mxu0 %v147
    %3114 = vmatprep.subr.mxu0 0.0
    %3115 = vmatpush1.msra.mxu0 %v148
    %3116 = vmatprep.subr.mxu0 0.0
    %3117 = vmatpush1.msra.mxu0 0.0
    %3118 = vmatprep.subr.mxu0 0.0
    %3119 = vmatpush1.msra.mxu0 0.0
    %3120 = vmatprep.subr.mxu0 0.0
    %3121 = vmatpush1.msra.mxu0 0.0
    %3122 = vmatprep.subr.mxu0 0.0
    %3123 = vmatpush1.msra.mxu0 0.0
    %3124 = vmatprep.subr.mxu0 0.0
    %3125 = vmatpush1.msra.mxu0 0.0
    %3126 = vmatprep.subr.mxu0 0.0
    %3127 = vmatpush1.msra.mxu0 0.0
    %3128 = vmatprep.subr.mxu0 0.0
    %3129 = vmatpush1.msra.mxu0 0.0
    %3130 = vmatprep.subr.mxu0 0.0
    %3131 = vmatpush1.msra.mxu0 0.0
    %3132 = vmatprep.subr.mxu0 0.0
    %3133 = vmatpush1.msra.mxu0 0.0
    %3134 = vmatprep.subr.mxu0 0.0
    %3135 = vmatpush1.msra.mxu0 0.0
    %3136 = vmatprep.subr.mxu0 0.0
    %3137 = vmatpush1.msra.mxu0 0.0
    %3138 = vmatprep.subr.mxu0 0.0
    %3139 = vmatpush1.msra.mxu0 0.0
    %3140 = vmatprep.subr.mxu0 0.0
    %3141 = vmatpush1.msra.mxu0 0.0
    %3142 = vmatprep.subr.mxu0 0.0
    %3143 = vmatpush1.msra.mxu0 0.0
    %3144 = vmatprep.subr.mxu0 0.0
    %3145 = vmatpush1.msra.mxu0 0.0
    %3146 = vmatprep.subr.mxu0 0.0
    %3147 = vmatpush1.msra.mxu0 0.0
    %3148 = vmatprep.subr.mxu0 0.0
    %3149 = vmatpush1.msra.mxu0 0.0
    %3150 = vmatprep.subr.mxu0 0.0
    %3151 = vmatpush1.msra.mxu0 0.0
    %3152 = vmatprep.subr.mxu0 0.0
    %3153 = vmatpush1.msra.mxu0 0.0
    %3154 = vmatprep.subr.mxu0 0.0
    %3155 = vmatpush1.msra.mxu0 0.0
    %3156 = vmatprep.subr.mxu0 0.0
    %3157 = vmatpush1.msra.mxu0 0.0
    %3158 = vmatprep.subr.mxu0 0.0
    %3159 = vmatpush1.msra.mxu0 0.0
    %3160 = vmatprep.subr.mxu0 0.0
    %3161 = vmatpush1.msra.mxu0 0.0
    %3162 = vmatprep.subr.mxu0 0.0
    %3163 = vmatpush1.msra.mxu0 0.0
    %3164 = vmatprep.subr.mxu0 0.0
    %3165 = vmatpush1.msra.mxu0 0.0
    %3166 = vmatprep.subr.mxu0 0.0
    %3167 = vmatpush1.msra.mxu0 0.0
    %3168 = vmatprep.subr.mxu0 0.0
    %3169 = vmatpush1.msra.mxu0 0.0
    %3170 = vmatprep.subr.mxu0 0.0
    %3171 = vmatpush1.msra.mxu0 0.0
    %3172 = vmatprep.mubr.f32.mxu0 0.0
    %3173 = vmatmul.mubr.f32.gmra.mrb[0].mxu0 %v3106
    %v3174 = vpop.f32.mrb[0].mxu0
    %v3175 = vadd.f32 %v149, %v3174
    %v3176 = vpop.f32.mrb[0].mxu0
    %3177 = vdwg.mxu0
    %v3178 = vsel %vm597, %v3175, -inf
    %3179 = vmax.xlane.f32.xlu0 %v3178
    %v3180 = vpop.xlane.xlu0 %3179
    %v3181 = vsub.f32 %v3175, %v3180
    %v3182 = vmul.f32 %v3181, 1.442695
    %v3183 = vpow.pop %v3182
    %v3184 = vsel %vm597, %v3183, 0.0
    %3185 = vadd.xlane.f32.xlu0 %v3184
    %v3186 = vpop.xlane.xlu0 %3185
    %v3187 = vlog2.pop %v3186
    %v3188 = vmul.f32 %v3187, 0.6931472
    %v3189 = vadd.f32 %v3188, %v3180
    %v3190 = vsub.f32 %v3175, %v3189
    %s3191 = sld [smem:[#allocation3 + $0x7]]
    %s3192 = scalar_lea.vmem [#allocation4], %s3191
    %v3193 = vld [vmem:[%s3192] sm:$0x1]
    %v3194 = vmax.f32 %v3193, 0.0
    %3195 = vmatprep.subr.mxu0 0.0
    %3196 = vmatpush1.msra.mxu0 %v131
    %3197 = vmatprep.subr.mxu0 0.0
    %3198 = vmatpush1.msra.mxu0 %v132
    %3199 = vmatprep.subr.mxu0 0.0
    %3200 = vmatpush1.msra.mxu0 %v133
    %3201 = vmatprep.subr.mxu0 0.0
    %3202 = vmatpush1.msra.mxu0 %v134
    %3203 = vmatprep.subr.mxu0 0.0
    %3204 = vmatpush1.msra.mxu0 0.0
    %3205 = vmatprep.subr.mxu0 0.0
    %3206 = vmatpush1.msra.mxu0 0.0
    %3207 = vmatprep.subr.mxu0 0.0
    %3208 = vmatpush1.msra.mxu0 0.0
    %3209 = vmatprep.subr.mxu0 0.0
    %3210 = vmatpush1.msra.mxu0 0.0
    %3211 = vmatprep.subr.mxu0 0.0
    %3212 = vmatpush1.msra.mxu0 0.0
    %3213 = vmatprep.subr.mxu0 0.0
    %3214 = vmatpush1.msra.mxu0 0.0
    %3215 = vmatprep.subr.mxu0 0.0
    %3216 = vmatpush1.msra.mxu0 0.0
    %3217 = vmatprep.subr.mxu0 0.0
    %3218 = vmatpush1.msra.mxu0 0.0
    %3219 = vmatprep.subr.mxu0 0.0
    %3220 = vmatpush1.msra.mxu0 0.0
    %3221 = vmatprep.subr.mxu0 0.0
    %3222 = vmatpush1.msra.mxu0 0.0
    %3223 = vmatprep.subr.mxu0 0.0
    %3224 = vmatpush1.msra.mxu0 0.0
    %3225 = vmatprep.subr.mxu0 0.0
    %3226 = vmatpush1.msra.mxu0 0.0
    %3227 = vmatprep.subr.mxu0 0.0
    %3228 = vmatpush1.msra.mxu0 0.0
    %3229 = vmatprep.subr.mxu0 0.0
    %3230 = vmatpush1.msra.mxu0 0.0
    %3231 = vmatprep.subr.mxu0 0.0
    %3232 = vmatpush1.msra.mxu0 0.0
    %3233 = vmatprep.subr.mxu0 0.0
    %3234 = vmatpush1.msra.mxu0 0.0
    %3235 = vmatprep.subr.mxu0 0.0
    %3236 = vmatpush1.msra.mxu0 0.0
    %3237 = vmatprep.subr.mxu0 0.0
    %3238 = vmatpush1.msra.mxu0 0.0
    %3239 = vmatprep.subr.mxu0 0.0
    %3240 = vmatpush1.msra.mxu0 0.0
    %3241 = vmatprep.subr.mxu0 0.0
    %3242 = vmatpush1.msra.mxu0 0.0
    %3243 = vmatprep.subr.mxu0 0.0
    %3244 = vmatpush1.msra.mxu0 0.0
    %3245 = vmatprep.subr.mxu0 0.0
    %3246 = vmatpush1.msra.mxu0 0.0
    %3247 = vmatprep.subr.mxu0 0.0
    %3248 = vmatpush1.msra.mxu0 0.0
    %3249 = vmatprep.subr.mxu0 0.0
    %3250 = vmatpush1.msra.mxu0 0.0
    %3251 = vmatprep.subr.mxu0 0.0
    %3252 = vmatpush1.msra.mxu0 0.0
    %3253 = vmatprep.subr.mxu0 0.0
    %3254 = vmatpush1.msra.mxu0 0.0
    %3255 = vmatprep.subr.mxu0 0.0
    %3256 = vmatpush1.msra.mxu0 0.0
    %3257 = vmatprep.subr.mxu0 0.0
    %3258 = vmatpush1.msra.mxu0 0.0
    %3259 = vmatprep.mubr.f32.mxu0 0.0
    %3260 = vmatmul.mubr.f32.gmra.mrb[0].mxu0 %v3006
    %v3261 = vpop.f32.mrb[0].mxu0
    %v3262 = vadd.f32 0.0, %v3261
    %v3263 = vpop.f32.mrb[0].mxu0
    %3264 = vdwg.mxu0
    %v3266 = vsel %vm234, %v3194, 0
    %3268 = vmatprep.subr.mxu0 0.0
    %3269 = vmatpush1.msra.mxu0 %v129
    %3270 = vmatprep.subr.mxu0 0.0
    %3271 = vmatpush1.msra.mxu0 %v130
    %3272 = vmatprep.subr.mxu0 0.0
    %3273 = vmatpush1.msra.mxu0 0.0
    %3274 = vmatprep.subr.mxu0 0.0
    %3275 = vmatpush1.msra.mxu0 0.0
    %3276 = vmatprep.subr.mxu0 0.0
    %3277 = vmatpush1.msra.mxu0 0.0
    %3278 = vmatprep.subr.mxu0 0.0
    %3279 = vmatpush1.msra.mxu0 0.0
    %3280 = vmatprep.subr.mxu0 0.0
    %3281 = vmatpush1.msra.mxu0 0.0
    %3282 = vmatprep.subr.mxu0 0.0
    %3283 = vmatpush1.msra.mxu0 0.0
    %3284 = vmatprep.subr.mxu0 0.0
    %3285 = vmatpush1.msra.mxu0 0.0
    %3286 = vmatprep.subr.mxu0 0.0
    %3287 = vmatpush1.msra.mxu0 0.0
    %3288 = vmatprep.subr.mxu0 0.0
    %3289 = vmatpush1.msra.mxu0 0.0
    %3290 = vmatprep.subr.mxu0 0.0
    %3291 = vmatpush1.msra.mxu0 0.0
    %3292 = vmatprep.subr.mxu0 0.0
    %3293 = vmatpush1.msra.mxu0 0.0
    %3294 = vmatprep.subr.mxu0 0.0
    %3295 = vmatpush1.msra.mxu0 0.0
    %3296 = vmatprep.subr.mxu0 0.0
    %3297 = vmatpush1.msra.mxu0 0.0
    %3298 = vmatprep.subr.mxu0 0.0
    %3299 = vmatpush1.msra.mxu0 0.0
    %3300 = vmatprep.subr.mxu0 0.0
    %3301 = vmatpush1.msra.mxu0 0.0
    %3302 = vmatprep.subr.mxu0 0.0
    %3303 = vmatpush1.msra.mxu0 0.0
    %3304 = vmatprep.subr.mxu0 0.0
    %3305 = vmatpush1.msra.mxu0 0.0
    %3306 = vmatprep.subr.mxu0 0.0
    %3307 = vmatpush1.msra.mxu0 0.0
    %3308 = vmatprep.subr.mxu0 0.0
    %3309 = vmatpush1.msra.mxu0 0.0
    %3310 = vmatprep.subr.mxu0 0.0
    %3311 = vmatpush1.msra.mxu0 0.0
    %3312 = vmatprep.subr.mxu0 0.0
    %3313 = vmatpush1.msra.mxu0 0.0
    %3314 = vmatprep.subr.mxu0 0.0
    %3315 = vmatpush1.msra.mxu0 0.0
    %3316 = vmatprep.subr.mxu0 0.0
    %3317 = vmatpush1.msra.mxu0 0.0
    %3318 = vmatprep.subr.mxu0 0.0
    %3319 = vmatpush1.msra.mxu0 0.0
    %3320 = vmatprep.subr.mxu0 0.0
    %3321 = vmatpush1.msra.mxu0 0.0
    %3322 = vmatprep.subr.mxu0 0.0
    %3323 = vmatpush1.msra.mxu0 0.0
    %3324 = vmatprep.subr.mxu0 0.0
    %3325 = vmatpush1.msra.mxu0 0.0
    %3326 = vmatprep.subr.mxu0 0.0
    %3327 = vmatpush1.msra.mxu0 0.0
    %3328 = vmatprep.subr.mxu0 0.0
    %3329 = vmatpush1.msra.mxu0 0.0
    %3330 = vmatprep.subr.mxu0 0.0
    %3331 = vmatpush1.msra.mxu0 0.0
    %3332 = vmatprep.mubr.f32.mxu0 0.0
    %3333 = vmatmul.mubr.f32.gmra.mrb[0].mxu0 %v3266
    %v3334 = vpop.f32.mrb[0].mxu0
    %v3335 = vadd.f32 %v3262, %v3334
    %v3336 = vpop.f32.mrb[0].mxu0
    %3337 = vdwg.mxu0
    %v3338 = vadd.f32 %v3335, %v135
    %v3339 = vxor.u32 %v3338, 2147483648
    %v3340 = vmul.f32 %v3339, 1.442695
    %v3341 = vpow.pop %v3340
    %v3342 = vadd.f32 %v3341, 1.0
    %v3343 = vrcp.pop %v3342
    %v3344 = vmul.f32 1.0, %v3343
    %v3345 = vtanh.pop %v3338
    %v3346 = vmul.f32 %v3344, %v2926
    %3348 = vrot.lane.b32.xlu0 %v3345, 64
    %v3349 = vpop.permute.xlu0 %3348
    %v3351 = vmul.f32 %v3344, %v3349
    %3353 = vrot.lane.b32.xlu0 %v3351, 32
    %v3354 = vpop.permute.xlu0 %3353
    %v3356 = vadd.f32 %v3346, %v3354
    %v3357 = vtanh.pop %v3356
    %3359 = vrot.lane.b32.xlu0 %v3357, 64
    %v3360 = vpop.permute.xlu0 %3359
    %v3362 = vmul.f32 %v3344, %v3360
    %3363 = vmatprep.subr.mxu0 0.0
    %3364 = vmatpush1.msra.mxu0 %v140
    %3365 = vmatprep.subr.mxu0 0.0
    %3366 = vmatpush1.msra.mxu0 %v141
    %3367 = vmatprep.subr.mxu0 0.0
    %3368 = vmatpush1.msra.mxu0 %v142
    %3369 = vmatprep.subr.mxu0 0.0
    %3370 = vmatpush1.msra.mxu0 %v143
    %3371 = vmatprep.subr.mxu0 0.0
    %3372 = vmatpush1.msra.mxu0 0.0
    %3373 = vmatprep.subr.mxu0 0.0
    %3374 = vmatpush1.msra.mxu0 0.0
    %3375 = vmatprep.subr.mxu0 0.0
    %3376 = vmatpush1.msra.mxu0 0.0
    %3377 = vmatprep.subr.mxu0 0.0
    %3378 = vmatpush1.msra.mxu0 0.0
    %3379 = vmatprep.subr.mxu0 0.0
    %3380 = vmatpush1.msra.mxu0 0.0
    %3381 = vmatprep.subr.mxu0 0.0
    %3382 = vmatpush1.msra.mxu0 0.0
    %3383 = vmatprep.subr.mxu0 0.0
    %3384 = vmatpush1.msra.mxu0 0.0
    %3385 = vmatprep.subr.mxu0 0.0
    %3386 = vmatpush1.msra.mxu0 0.0
    %3387 = vmatprep.subr.mxu0 0.0
    %3388 = vmatpush1.msra.mxu0 0.0
    %3389 = vmatprep.subr.mxu0 0.0
    %3390 = vmatpush1.msra.mxu0 0.0
    %3391 = vmatprep.subr.mxu0 0.0
    %3392 = vmatpush1.msra.mxu0 0.0
    %3393 = vmatprep.subr.mxu0 0.0
    %3394 = vmatpush1.msra.mxu0 0.0
    %3395 = vmatprep.subr.mxu0 0.0
    %3396 = vmatpush1.msra.mxu0 0.0
    %3397 = vmatprep.subr.mxu0 0.0
    %3398 = vmatpush1.msra.mxu0 0.0
    %3399 = vmatprep.subr.mxu0 0.0
    %3400 = vmatpush1.msra.mxu0 0.0
    %3401 = vmatprep.subr.mxu0 0.0
    %3402 = vmatpush1.msra.mxu0 0.0
    %3403 = vmatprep.subr.mxu0 0.0
    %3404 = vmatpush1.msra.mxu0 0.0
    %3405 = vmatprep.subr.mxu0 0.0
    %3406 = vmatpush1.msra.mxu0 0.0
    %3407 = vmatprep.subr.mxu0 0.0
    %3408 = vmatpush1.msra.mxu0 0.0
    %3409 = vmatprep.subr.mxu0 0.0
    %3410 = vmatpush1.msra.mxu0 0.0
    %3411 = vmatprep.subr.mxu0 0.0
    %3412 = vmatpush1.msra.mxu0 0.0
    %3413 = vmatprep.subr.mxu0 0.0
    %3414 = vmatpush1.msra.mxu0 0.0
    %3415 = vmatprep.subr.mxu0 0.0
    %3416 = vmatpush1.msra.mxu0 0.0
    %3417 = vmatprep.subr.mxu0 0.0
    %3418 = vmatpush1.msra.mxu0 0.0
    %3419 = vmatprep.subr.mxu0 0.0
    %3420 = vmatpush1.msra.mxu0 0.0
    %3421 = vmatprep.subr.mxu0 0.0
    %3422 = vmatpush1.msra.mxu0 0.0
    %3423 = vmatprep.subr.mxu0 0.0
    %3424 = vmatpush1.msra.mxu0 0.0
    %3425 = vmatprep.subr.mxu0 0.0
    %3426 = vmatpush1.msra.mxu0 0.0
    %3427 = vmatprep.mubr.f32.mxu0 0.0
    %3428 = vmatmul.mubr.f32.gmra.mrb[0].mxu0 %v3106
    %v3429 = vpop.f32.mrb[0].mxu0
    %v3430 = vadd.f32 0.0, %v3429
    %v3431 = vpop.f32.mrb[0].mxu0
    %3432 = vdwg.mxu0
    %3434 = vrot.lane.b32.xlu0 %v3362, 32
    %v3435 = vpop.permute.xlu0 %3434
    %v3436 = vsel %vm160, %v3435, 0
    %3438 = vmatprep.subr.mxu0 0.0
    %3439 = vmatpush1.msra.mxu0 %v136
    %3440 = vmatprep.subr.mxu0 0.0
    %3441 = vmatpush1.msra.mxu0 %v137
    %3442 = vmatprep.subr.mxu0 0.0
    %3443 = vmatpush1.msra.mxu0 %v138
    %3444 = vmatprep.subr.mxu0 0.0
    %3445 = vmatpush1.msra.mxu0 %v139
    %3446 = vmatprep.subr.mxu0 0.0
    %3447 = vmatpush1.msra.mxu0 0.0
    %3448 = vmatprep.subr.mxu0 0.0
    %3449 = vmatpush1.msra.mxu0 0.0
    %3450 = vmatprep.subr.mxu0 0.0
    %3451 = vmatpush1.msra.mxu0 0.0
    %3452 = vmatprep.subr.mxu0 0.0
    %3453 = vmatpush1.msra.mxu0 0.0
    %3454 = vmatprep.subr.mxu0 0.0
    %3455 = vmatpush1.msra.mxu0 0.0
    %3456 = vmatprep.subr.mxu0 0.0
    %3457 = vmatpush1.msra.mxu0 0.0
    %3458 = vmatprep.subr.mxu0 0.0
    %3459 = vmatpush1.msra.mxu0 0.0
    %3460 = vmatprep.subr.mxu0 0.0
    %3461 = vmatpush1.msra.mxu0 0.0
    %3462 = vmatprep.subr.mxu0 0.0
    %3463 = vmatpush1.msra.mxu0 0.0
    %3464 = vmatprep.subr.mxu0 0.0
    %3465 = vmatpush1.msra.mxu0 0.0
    %3466 = vmatprep.subr.mxu0 0.0
    %3467 = vmatpush1.msra.mxu0 0.0
    %3468 = vmatprep.subr.mxu0 0.0
    %3469 = vmatpush1.msra.mxu0 0.0
    %3470 = vmatprep.subr.mxu0 0.0
    %3471 = vmatpush1.msra.mxu0 0.0
    %3472 = vmatprep.subr.mxu0 0.0
    %3473 = vmatpush1.msra.mxu0 0.0
    %3474 = vmatprep.subr.mxu0 0.0
    %3475 = vmatpush1.msra.mxu0 0.0
    %3476 = vmatprep.subr.mxu0 0.0
    %3477 = vmatpush1.msra.mxu0 0.0
    %3478 = vmatprep.subr.mxu0 0.0
    %3479 = vmatpush1.msra.mxu0 0.0
    %3480 = vmatprep.subr.mxu0 0.0
    %3481 = vmatpush1.msra.mxu0 0.0
    %3482 = vmatprep.subr.mxu0 0.0
    %3483 = vmatpush1.msra.mxu0 0.0
    %3484 = vmatprep.subr.mxu0 0.0
    %3485 = vmatpush1.msra.mxu0 0.0
    %3486 = vmatprep.subr.mxu0 0.0
    %3487 = vmatpush1.msra.mxu0 0.0
    %3488 = vmatprep.subr.mxu0 0.0
    %3489 = vmatpush1.msra.mxu0 0.0
    %3490 = vmatprep.subr.mxu0 0.0
    %3491 = vmatpush1.msra.mxu0 0.0
    %3492 = vmatprep.subr.mxu0 0.0
    %3493 = vmatpush1.msra.mxu0 0.0
    %3494 = vmatprep.subr.mxu0 0.0
    %3495 = vmatpush1.msra.mxu0 0.0
    %3496 = vmatprep.subr.mxu0 0.0
    %3497 = vmatpush1.msra.mxu0 0.0
    %3498 = vmatprep.subr.mxu0 0.0
    %3499 = vmatpush1.msra.mxu0 0.0
    %3500 = vmatprep.subr.mxu0 0.0
    %3501 = vmatpush1.msra.mxu0 0.0
    %3502 = vmatprep.mubr.f32.mxu0 0.0
    %3503 = vmatmul.mubr.f32.gmra.mrb[0].mxu0 %v3436
    %v3504 = vpop.f32.mrb[0].mxu0
    %v3505 = vadd.f32 %v3430, %v3504
    %v3506 = vpop.f32.mrb[0].mxu0
    %3507 = vdwg.mxu0
    %v3508 = vadd.f32 %v3505, %v144
    %v3509 = vxor.u32 %v3508, 2147483648
    %v3510 = vmul.f32 %v3509, 1.442695
    %v3511 = vpow.pop %v3510
    %v3512 = vadd.f32 %v3511, 1.0
    %v3513 = vrcp.pop %v3512
    %v3514 = vmul.f32 1.0, %v3513
    %v3515 = vtanh.pop %v3508
    %v3516 = vmul.f32 %v3514, %v3096
    %3518 = vrot.lane.b32.xlu0 %v3515, 64
    %v3519 = vpop.permute.xlu0 %3518
    %v3521 = vmul.f32 %v3514, %v3519
    %3523 = vrot.lane.b32.xlu0 %v3521, 32
    %v3524 = vpop.permute.xlu0 %3523
    %v3526 = vadd.f32 %v3516, %v3524
    %v3527 = vtanh.pop %v3526
    %3529 = vrot.lane.b32.xlu0 %v3527, 64
    %v3530 = vpop.permute.xlu0 %3529
    %v3532 = vmul.f32 %v3514, %v3530
    %3534 = vrot.lane.b32.xlu0 %v3532, 32
    %v3535 = vpop.permute.xlu0 %3534
    %v3536 = vsel %vm160, %v3535, 0
    %3538 = vmatprep.subr.mxu0 0.0
    %3539 = vmatpush1.msra.mxu0 %v145
    %3540 = vmatprep.subr.mxu0 0.0
    %3541 = vmatpush1.msra.mxu0 %v146
    %3542 = vmatprep.subr.mxu0 0.0
    %3543 = vmatpush1.msra.mxu0 %v147
    %3544 = vmatprep.subr.mxu0 0.0
    %3545 = vmatpush1.msra.mxu0 %v148
    %3546 = vmatprep.subr.mxu0 0.0
    %3547 = vmatpush1.msra.mxu0 0.0
    %3548 = vmatprep.subr.mxu0 0.0
    %3549 = vmatpush1.msra.mxu0 0.0
    %3550 = vmatprep.subr.mxu0 0.0
    %3551 = vmatpush1.msra.mxu0 0.0
    %3552 = vmatprep.subr.mxu0 0.0
    %3553 = vmatpush1.msra.mxu0 0.0
    %3554 = vmatprep.subr.mxu0 0.0
    %3555 = vmatpush1.msra.mxu0 0.0
    %3556 = vmatprep.subr.mxu0 0.0
    %3557 = vmatpush1.msra.mxu0 0.0
    %3558 = vmatprep.subr.mxu0 0.0
    %3559 = vmatpush1.msra.mxu0 0.0
    %3560 = vmatprep.subr.mxu0 0.0
    %3561 = vmatpush1.msra.mxu0 0.0
    %3562 = vmatprep.subr.mxu0 0.0
    %3563 = vmatpush1.msra.mxu0 0.0
    %3564 = vmatprep.subr.mxu0 0.0
    %3565 = vmatpush1.msra.mxu0 0.0
    %3566 = vmatprep.subr.mxu0 0.0
    %3567 = vmatpush1.msra.mxu0 0.0
    %3568 = vmatprep.subr.mxu0 0.0
    %3569 = vmatpush1.msra.mxu0 0.0
    %3570 = vmatprep.subr.mxu0 0.0
    %3571 = vmatpush1.msra.mxu0 0.0
    %3572 = vmatprep.subr.mxu0 0.0
    %3573 = vmatpush1.msra.mxu0 0.0
    %3574 = vmatprep.subr.mxu0 0.0
    %3575 = vmatpush1.msra.mxu0 0.0
    %3576 = vmatprep.subr.mxu0 0.0
    %3577 = vmatpush1.msra.mxu0 0.0
    %3578 = vmatprep.subr.mxu0 0.0
    %3579 = vmatpush1.msra.mxu0 0.0
    %3580 = vmatprep.subr.mxu0 0.0
    %3581 = vmatpush1.msra.mxu0 0.0
    %3582 = vmatprep.subr.mxu0 0.0
    %3583 = vmatpush1.msra.mxu0 0.0
    %3584 = vmatprep.subr.mxu0 0.0
    %3585 = vmatpush1.msra.mxu0 0.0
    %3586 = vmatprep.subr.mxu0 0.0
    %3587 = vmatpush1.msra.mxu0 0.0
    %3588 = vmatprep.subr.mxu0 0.0
    %3589 = vmatpush1.msra.mxu0 0.0
    %3590 = vmatprep.subr.mxu0 0.0
    %3591 = vmatpush1.msra.mxu0 0.0
    %3592 = vmatprep.subr.mxu0 0.0
    %3593 = vmatpush1.msra.mxu0 0.0
    %3594 = vmatprep.subr.mxu0 0.0
    %3595 = vmatpush1.msra.mxu0 0.0
    %3596 = vmatprep.subr.mxu0 0.0
    %3597 = vmatpush1.msra.mxu0 0.0
    %3598 = vmatprep.subr.mxu0 0.0
    %3599 = vmatpush1.msra.mxu0 0.0
    %3600 = vmatprep.subr.mxu0 0.0
    %3601 = vmatpush1.msra.mxu0 0.0
    %3602 = vmatprep.mubr.f32.mxu0 0.0
    %3603 = vmatmul.mubr.f32.gmra.mrb[0].mxu0 %v3536
    %v3604 = vpop.f32.mrb[0].mxu0
    %v3605 = vadd.f32 %v149, %v3604
    %v3606 = vpop.f32.mrb[0].mxu0
    %3607 = vdwg.mxu0
    %v3608 = vsel %vm597, %v3605, -inf
    %3609 = vmax.xlane.f32.xlu0 %v3608
    %v3610 = vpop.xlane.xlu0 %3609
    %v3611 = vsub.f32 %v3605, %v3610
    %v3612 = vmul.f32 %v3611, 1.442695
    %v3613 = vpow.pop %v3612
    %v3614 = vsel %vm597, %v3613, 0.0
    %3615 = vadd.xlane.f32.xlu0 %v3614
    %v3616 = vpop.xlane.xlu0 %3615
    %v3617 = vlog2.pop %v3616
    %v3618 = vmul.f32 %v3617, 0.6931472
    %v3619 = vadd.f32 %v3618, %v3610
    %v3620 = vsub.f32 %v3605, %v3619
    %v3622 = vrot.slane %v1040, 7
    %v3625 = vrot.slane %v1470, 6
    %v3628 = vrot.slane %v1900, 5
    %v3631 = vrot.slane %v2330, 4
    %v3634 = vrot.slane %v2760, 3
    %v3637 = vrot.slane %v3190, 2
    %v3640 = vrot.slane %v3620, 1
    %v3642 = vsel %vm597, %v610, %v3622
    %vm3643 = vcmask 1041408
    %v3644 = vsel %vm3643, %v3642, %v3625
    %vm3645 = vcmask 1042432
    %v3646 = vsel %vm3645, %v3644, %v3628
    %vm3647 = vcmask 1043456
    %v3648 = vsel %vm3647, %v3646, %v3631
    %vm3649 = vcmask 1044480
    %v3650 = vsel %vm3649, %v3648, %v3634
    %vm3651 = vcmask 1045504
    %v3652 = vsel %vm3651, %v3650, %v3637
    %vm3653 = vcmask 1046528
    %v3654 = vsel %vm3653, %v3652, %v3640
    %3655 = vst [vmem:[#allocation15] sm:$0xff] %v3654
    %3657 = vrot.lane.b32.xlu0 %v3532, 64
    %v3658 = vpop.permute.xlu0 %3657
    %3661 = vrot.lane.b32.xlu0 %v3356, 32
    %v3662 = vpop.permute.xlu0 %3661
    %3665 = vrot.lane.b32.xlu0 %v3526, 64
    %v3666 = vpop.permute.xlu0 %3665
    %v3668 = vsel %vm160, %v3435, %v3658
    %vm3669 = vcmask 523264
    %v3670 = vsel %vm3669, %v3668, %v3662
    %vm3671 = vcmask 785408
    %v3672 = vsel %vm3671, %v3670, %v3666
    %3673 = vst [vmem:[#allocation16] sm:$0x1] %v3672
    // Predicated region
    $region70: #{tpu_custom_call.1} parent=1 // pred_check
      _
    $region71: #{tpu_custom_call.1} parent=1 // pred_check_branch
      %3675 = sbr.rel (0) target = $region73
    $region72: #{tpu_custom_call.1} parent=1 // pred_region
      %s3677 = ssub.s32 128, 128
      %3678 = vsyncadd [#allocation6], %s3677
      %s3680 = sshll.u32 [#allocation15], 4
      %s3681 = int_to_ptr.vmem [resolvable:$true] %s3680
      %3683 = dma.vmem_to_hbm [thread:$0]  %s3681, 128, %s12, [#allocation6]
    $region73: #{tpu_custom_call.1} parent=1 // pred_fallthru
      _
    // Predicated region
    $region74: #{tpu_custom_call.1} parent=1 // pred_check
      _
    $region75: #{tpu_custom_call.1} parent=1 // pred_check_branch
      %3685 = sbr.rel (0) target = $region77
    $region76: #{tpu_custom_call.1} parent=1 // pred_region
      %s3687 = ssub.s32 16, 16
      %3688 = vsyncadd [#allocation17], %s3687
      %s3690 = sshll.u32 [#allocation16], 4
      %s3691 = int_to_ptr.vmem [resolvable:$true] %s3690
      %3693 = dma.vmem_to_hbm [thread:$0]  %s3691, 16, %s13, [#allocation17]
    $region77: #{tpu_custom_call.1} parent=1 // pred_fallthru
      _
    // Predicated region
    $region78: #{tpu_custom_call.1} parent=1 // pred_check
      _
    $region79: #{tpu_custom_call.1} parent=1 // pred_check_branch
      %3695 = sbr.rel (0) target = $region81
    $region80: #{tpu_custom_call.1} parent=1 // pred_region
      %3696 = dma.done [#allocation6], 128
    $region81: #{tpu_custom_call.1} parent=1 // pred_fallthru
      _
    // Predicated region
    $region82: #{tpu_custom_call.1} parent=1 // pred_check
      _
    $region83: #{tpu_custom_call.1} parent=1 // pred_check_branch
      %3698 = sbr.rel (0) target = $region85
    $region84: #{tpu_custom_call.1} parent=1 // pred_region
      %3699 = dma.done [#allocation17], 16
    $region85: #{tpu_custom_call.1} parent=1 // pred_fallthru
      _
    %3700 = vsyncpa [#allocation5], 1
    %3701 = vsyncpa [#allocation8], 1
    %3702 = vsyncpa [#allocation11], 1
    %3703 = vsyncpa [#allocation14], 1
    %3704 = vsyncpa [#allocation6], 1
    %3705 = vsyncpa [#allocation17], 1

</llo_original>
